<compile_context>
chip_gen: v7x
topology: tpu7x:2x2x1
jax: 0.10.0
libtpu: 0.0.40
codegen_flags: <defaults>
</compile_context>

<pallas_src>
import functools

import jax
import jax.numpy as jnp
from jax.experimental import pallas as pl
from jax.experimental.pallas import tpu as pltpu

_BN_EPS = 1e-5
_LANES = 128


def _round_up(x, m):
    return ((x + m - 1) // m) * m


# ---------------------------------------------------------------------------
# Fused kernel: depthwise 3x3 (+BN1 bias+ReLU) -> pointwise 1x1 (+BN2 bias+opt ReLU)
# One (batch, output-row-tile) per grid step.
# ---------------------------------------------------------------------------
def _fused_dsconv_kernel(x_main_ref, x_halo_ref, dw_w_ref, b1_ref,
                         pw_w_ref, b2_ref, o_ref, dw_act_ref, *,
                         TH, Wo, stride, dilation, relu):
    # x_main_ref : (1, Hm, Wp, Cin_p)   main padded-input rows of this tile
    # x_halo_ref : (1, Hh, Wp, Cin_p)   bottom halo rows (rows right below the main block)
    # dw_w_ref   : (3, 3, Cin_p)        depthwise weights (BN1 scale pre-folded)
    # b1_ref     : (1, Cin_p)           BN1 bias
    # pw_w_ref   : (Cin_p, Cout_p)      pointwise weights (BN2 scale pre-folded, resident)
    # b2_ref     : (1, Cout_p)          BN2 bias
    # o_ref      : (1, TH*Wo, Cout_p)   final output tile (lane-dense, flattened rows)
    # dw_act_ref : VMEM scratch (TH*Wo, Cin_p) in pw_w dtype (DW activation, written once)
    Hm = x_main_ref.shape[1]
    cin = x_main_ref.shape[3]

    w = dw_w_ref[...].astype(jnp.float32)          # (3, 3, Cin_p)
    b1 = b1_ref[...].astype(jnp.float32)           # (1, Cin_p)

    # Depthwise 3x3: per-output-row accumulation, 9 taps innermost (static unroll).
    # acc is (Wo, Cin_p) f32 -> stays in vregs for typical tiles; each row is stored
    # exactly once into the DW activation scratch (no 9x VMEM round trips).
    for r in range(TH):
        acc = jnp.zeros((Wo, cin), jnp.float32)
        for ky in range(3):
            row_idx = r * stride + ky * dilation
            if row_idx < Hm:
                row_v = x_main_ref[0, row_idx]     # (Wp, Cin_p)
            else:
                row_v = x_halo_ref[0, row_idx - Hm]
            if stride == 2:
                # One-time even/odd column split per loaded row, then unit-stride
                # slices per tap (fewer sublane repacks than 3 strided slices).
                parity = {}
                for kx in range(3):
                    x0 = kx * dilation
                    p = x0 % 2
                    if p not in parity:
                        parity[p] = row_v[p::2, :]
                    patch = parity[p][x0 // 2:x0 // 2 + Wo, :]
                    acc = acc + patch.astype(jnp.float32) * w[ky, kx][None, :]
            else:
                for kx in range(3):
                    x0 = kx * dilation
                    patch = row_v[x0:x0 + (Wo - 1) * stride + 1:stride, :]
                    acc = acc + patch.astype(jnp.float32) * w[ky, kx][None, :]
        dw_row = jnp.maximum(acc + b1, 0.0)        # BN1 bias + ReLU (scale folded in w)
        dw_act_ref[r * Wo:(r + 1) * Wo, :] = dw_row.astype(dw_act_ref.dtype)

    # Fused pointwise 1x1 conv: one MXU matmul per tile against the resident weight.
    act = dw_act_ref[...]                          # (TH*Wo, Cin_p), pw dtype
    y = jnp.dot(act, pw_w_ref[...], preferred_element_type=jnp.float32)
    y = y + b2_ref[...].astype(jnp.float32)        # BN2 bias (scale folded in pw_w)
    if relu:
        y = jnp.maximum(y, 0.0)
    o_ref[0] = y.astype(o_ref.dtype)


# ---------------------------------------------------------------------------
# NHWC wrapper (preferred entry point: no layout transposes)
# ---------------------------------------------------------------------------
def dsconv3x3_nhwc(x_nhwc, params, *, stride=1, dilation=1, relu=True,
                   row_tile=32, vmem_budget_bytes=20 * 1024 * 1024):
    dw_w, pw_w, scale1, bias1, scale2, bias2 = params
    N, H, W, Cin = x_nhwc.shape
    Cout = pw_w.shape[1]
    s, d = stride, dilation
    # out size with k=3, p=d, dilation=d:  (H-1)//s + 1
    Ho = (H - 1) // s + 1
    Wo = (W - 1) // s + 1

    # Lane-align channels to 128 (lane-dense stores, full MXU K/N).
    Cin_p = _round_up(Cin, _LANES)
    Cout_p = _round_up(Cout, _LANES)
    Wp = W + 2 * d

    act_dtype = pw_w.dtype                     # DW activation / matmul operand dtype
    x_itemsize = x_nhwc.dtype.itemsize
    act_itemsize = jnp.dtype(act_dtype).itemsize

    halo_need = max(1, 2 * d + 1 - s)

    def _halo_rows(hm):
        return next(h for h in range(halo_need, hm + 1) if hm % h == 0)

    # Row-tile selection: TH must divide Ho (no partial boundary blocks), provide a
    # big-enough main block for the halo, and keep TH*Wo sublane-aligned (or be a
    # single full tile) so the matmul result stores lane/sublane-dense.
    valid = [t for t in range(1, Ho + 1)
             if Ho % t == 0 and t * s >= halo_need
             and ((t * Wo) % 8 == 0 or t == Ho)]
    if not valid:
        raise ValueError("spatial size too small for this stride/dilation")

    def footprint(t):
        hm = t * s
        hh = _halo_rows(hm)
        in_b = (hm + hh) * Wp * Cin_p * x_itemsize
        out_b = t * Wo * Cout_p * x_itemsize
        act_b = t * Wo * Cin_p * act_itemsize
        const_b = (9 + 1) * Cin_p * 4 + Cout_p * 4 + Cin_p * Cout_p * act_itemsize
        return 2 * (in_b + out_b) + act_b + const_b   # x2: double-buffered blocks

    TH = None
    for t in sorted(valid, reverse=True):
        # prefer: under budget, <= requested tile, and >= 4 parallel grid steps
        if t <= row_tile and footprint(t) <= vmem_budget_bytes and N * (Ho // t) >= 4:
            TH = t
            break
    if TH is None:
        fitting = [t for t in valid if t <= row_tile and footprint(t) <= vmem_budget_bytes]
        TH = max(fitting) if fitting else min(valid, key=footprint)

    Hm = TH * s                               # padded-input rows per main block
    Hh = _halo_rows(Hm)                       # halo rows (divides Hm -> blocked index map)
    halo_step = Hm // Hh
    n_tiles = Ho // TH

    # Extra zero rows so the last tile's halo block stays in-bounds.
    Hp = max(H + 2 * d, n_tiles * Hm + Hh)
    xp = jnp.pad(x_nhwc, ((0, 0), (d, Hp - H - d), (d, d), (0, Cin_p - Cin)))

    # Fold eval-mode BN scales into the conv weights (one-time prep, removes two
    # VMEM operands and 1-2 VALU ops per output element in the kernel).
    dw_w_f = (dw_w.astype(jnp.float32) * scale1[None, None, :]).astype(dw_w.dtype)
    pw_w_f = (pw_w.astype(jnp.float32) * scale2[None, :]).astype(pw_w.dtype)
    dw_w_p = jnp.pad(dw_w_f, ((0, 0), (0, 0), (0, Cin_p - Cin)))
    pw_w_p = jnp.pad(pw_w_f, ((0, Cin_p - Cin), (0, Cout_p - Cout)))
    b1 = jnp.pad(bias1, (0, Cin_p - Cin)).reshape(1, Cin_p).astype(jnp.float32)
    b2 = jnp.pad(bias2, (0, Cout_p - Cout)).reshape(1, Cout_p).astype(jnp.float32)

    flops = int(2 * N * Ho * Wo * Cin_p * 9 + 2 * N * Ho * Wo * Cin_p * Cout_p)
    bytes_accessed = int(xp.size * x_itemsize
                         + N * Ho * Wo * Cout_p * x_itemsize
                         + pw_w_p.size * act_itemsize)

    kernel = functools.partial(_fused_dsconv_kernel, TH=TH, Wo=Wo,
                               stride=s, dilation=d, relu=relu)

    def build_call(single_buffer):
        def const_spec(shape):
            nd = len(shape)
            imap = lambda n, i, _nd=nd: (0,) * _nd
            if single_buffer:
                # Constant index_map -> single buffer (don't waste VMEM double-buffering
                # the resident Cin_p x Cout_p pointwise weight / biases).
                return pl.BlockSpec(shape, imap, pipeline_mode=pl.Buffered(1))
            return pl.BlockSpec(shape, imap)

        return pl.pallas_call(
            kernel,
            out_shape=jax.ShapeDtypeStruct((N, Ho * Wo, Cout_p), x_nhwc.dtype),
            grid=(N, n_tiles),
            in_specs=[
                # main input rows of the stripe
                pl.BlockSpec((1, Hm, Wp, Cin_p), lambda n, i: (n, i, 0, 0)),
                # bottom halo rows (same array, small block right below the main block)
                pl.BlockSpec((1, Hh, Wp, Cin_p),
                             lambda n, i: (n, (i + 1) * halo_step, 0, 0)),
                const_spec((3, 3, Cin_p)),        # depthwise weights (scale folded)
                const_spec((1, Cin_p)),           # BN1 bias
                const_spec((Cin_p, Cout_p)),      # pointwise weights (scale folded)
                const_spec((1, Cout_p)),          # BN2 bias
            ],
            out_specs=pl.BlockSpec((1, TH * Wo, Cout_p), lambda n, i: (n, i, 0)),
            scratch_shapes=[pltpu.VMEM((TH * Wo, Cin_p), act_dtype)],
            compiler_params=pltpu.CompilerParams(
                dimension_semantics=("parallel", "parallel")),
            cost_estimate=pl.CostEstimate(flops=flops, transcendentals=0,
                                          bytes_accessed=bytes_accessed),
        )

    try:
        out_flat = build_call(True)(xp, xp, dw_w_p, b1, pw_w_p, b2)
    except Exception:
        # TODO(synk): pipeline_mode=pl.Buffered(1) rejected by this JAX version;
        # fall back to default double buffering for the constant operands.
        out_flat = build_call(False)(xp, xp, dw_w_p, b1, pw_w_p, b2)

    out = out_flat.reshape(N, Ho, Wo, Cout_p)     # free metadata reshape
    # TODO(synk): for Cout % 128 != 0 this channel slice is an extra HBM pass; keep model
    # channel counts at multiples of 128 (or consume the padded output) to avoid it.
    return out[..., :Cout]


# ---------------------------------------------------------------------------
# NCHW wrapper (PyTorch interface parity). Prefer dsconv3x3_nhwc end-to-end to
# avoid the two full-tensor transpose HBM passes.
# ---------------------------------------------------------------------------
def dsconv3x3(x_nchw, params, *, stride=1, dilation=1, relu=True):
    x = jnp.transpose(x_nchw, (0, 2, 3, 1))                      # NCHW -> NHWC
    y = dsconv3x3_nhwc(x, params, stride=stride, dilation=dilation, relu=relu)
    return jnp.transpose(y, (0, 3, 1, 2))                        # NHWC -> NCHW


# ---------------------------------------------------------------------------
# Deterministic parameter construction (synthetic, matches module shapes)
# ---------------------------------------------------------------------------
def init_params(key, cin, cout):
    ks = jax.random.split(key, 10)
    # depthwise Conv2d weight (cin, 1, 3, 3) stored here as HWC (3, 3, cin)
    dw_w = jax.random.normal(ks[0], (3, 3, cin), jnp.float32) * 0.2
    # pointwise Conv2d weight (cout, cin, 1, 1) stored here as (cin, cout)
    pw_w = jax.random.normal(ks[1], (cin, cout), jnp.float32) * 0.2
    # BN1 (cin)
    g1 = 1.0 + 0.1 * jax.random.normal(ks[2], (cin,), jnp.float32)
    b1 = 0.1 * jax.random.normal(ks[3], (cin,), jnp.float32)
    m1 = 0.1 * jax.random.normal(ks[4], (cin,), jnp.float32)
    v1 = 0.5 + jnp.abs(jax.random.normal(ks[5], (cin,), jnp.float32)) * 0.5
    # BN2 (cout)
    g2 = 1.0 + 0.1 * jax.random.normal(ks[6], (cout,), jnp.float32)
    b2 = 0.1 * jax.random.normal(ks[7], (cout,), jnp.float32)
    m2 = 0.1 * jax.random.normal(ks[8], (cout,), jnp.float32)
    v2 = 0.5 + jnp.abs(jax.random.normal(ks[9], (cout,), jnp.float32)) * 0.5
    # fold eval-mode BN into scale/bias
    scale1 = g1 / jnp.sqrt(v1 + _BN_EPS)
    bias1 = b1 - m1 * scale1
    scale2 = g2 / jnp.sqrt(v2 + _BN_EPS)
    bias2 = b2 - m2 * scale2
    return dw_w, pw_w, scale1, bias1, scale2, bias2


# ---------------------------------------------------------------------------
# Pure-JAX reference (same math, via lax.conv_general_dilated)
# ---------------------------------------------------------------------------
def reference(x_nchw, params, *, stride=1, dilation=1, relu=True):
    dw_w, pw_w, scale1, bias1, scale2, bias2 = params
    cin = x_nchw.shape[1]
    dw_oihw = jnp.transpose(dw_w, (2, 0, 1))[:, None, :, :]       # (cin,1,3,3)
    y = jax.lax.conv_general_dilated(
        x_nchw, dw_oihw, window_strides=(stride, stride),
        padding=[(dilation, dilation), (dilation, dilation)],
        rhs_dilation=(dilation, dilation), feature_group_count=cin,
        dimension_numbers=("NCHW", "OIHW", "NCHW"),
        precision=jax.lax.Precision.HIGHEST)
    y = y * scale1[None, :, None, None] + bias1[None, :, None, None]
    y = jnp.maximum(y, 0.0)
    pw_oihw = pw_w.T[:, :, None, None]                            # (cout,cin,1,1)
    z = jax.lax.conv_general_dilated(
        y, pw_oihw, window_strides=(1, 1), padding="VALID",
        dimension_numbers=("NCHW", "OIHW", "NCHW"),
        precision=jax.lax.Precision.HIGHEST)
    z = z * scale2[None, :, None, None] + bias2[None, :, None, None]
    if relu:
        z = jnp.maximum(z, 0.0)
    return z


if __name__ == "__main__":
    key = jax.random.PRNGKey(0)
    kx, kp = jax.random.split(key)

    N, Cin, H, W = 2, 4, 16, 16
    Cout = 8
    x = jax.random.normal(kx, (N, Cin, H, W), jnp.float32)   # NCHW like PyTorch
    params = init_params(kp, Cin, Cout)

    # Exercise the multi-tile halo, stride=2, and dilation=2 paths (per review).
    for (s, d, use_relu) in [(1, 1, True), (2, 1, True), (1, 2, False)]:
        out = dsconv3x3(x, params, stride=s, dilation=d, relu=use_relu)
        out = jax.block_until_ready(out)
        ref = reference(x, params, stride=s, dilation=d, relu=use_relu)
        Ho = (H - 1) // s + 1
        Wo = (W - 1) // s + 1
        assert out.shape == (N, Cout, Ho, Wo), (out.shape, s, d)
        err = float(jnp.max(jnp.abs(out - ref)))
        assert jnp.allclose(out, ref, rtol=1e-2, atol=1e-2), (s, d, err)

    print("KERNEL_OK")
</pallas_src>

<mosaic_0001>
module attributes {stable_mosaic.version = 11 : i64} {
  func.func @_fused_dsconv_kernel(%arg0: i32, %arg1: i32, %arg2: memref<1x8x18x128xf32, #tpu.memory_space<vmem>>, %arg3: memref<1x2x18x128xf32, #tpu.memory_space<vmem>>, %arg4: memref<3x3x128xf32, #tpu.memory_space<vmem>>, %arg5: memref<1x128xf32, #tpu.memory_space<vmem>>, %arg6: memref<128x128xf32, #tpu.memory_space<vmem>>, %arg7: memref<1x128xf32, #tpu.memory_space<vmem>>, %arg8: memref<1x128x128xf32, #tpu.memory_space<vmem>>, %arg9: memref<128x128xf32, #tpu.memory_space<vmem>>) attributes {dimension_semantics = [#tpu.dimension_semantics<parallel>, #tpu.dimension_semantics<parallel>], iteration_bounds = array<i64: 2, 2>, scalar_prefetch = 0 : i64, scratch_operands = 1 : i64, tpu.core_type = #tpu.core_type<tc>, window_params = [{transform_indices = @transform_0, window_bounds = array<i64: 1, 8, 18, 128>}, {transform_indices = @transform_1, window_bounds = array<i64: 1, 2, 18, 128>}, {pipeline_mode = #tpu.pipeline_mode<synchronous>, transform_indices = @transform_2, window_bounds = array<i64: 3, 3, 128>}, {pipeline_mode = #tpu.pipeline_mode<synchronous>, transform_indices = @transform_3, window_bounds = array<i64: 1, 128>}, {pipeline_mode = #tpu.pipeline_mode<synchronous>, transform_indices = @transform_4, window_bounds = array<i64: 128, 128>}, {pipeline_mode = #tpu.pipeline_mode<synchronous>, transform_indices = @transform_5, window_bounds = array<i64: 1, 128>}, {transform_indices = @transform_6, window_bounds = array<i64: 1, 128, 128>}]} {
    %c0 = arith.constant 0 : index
    %c0_0 = arith.constant 0 : index
    %c0_1 = arith.constant 0 : index
    %0 = vector.load %arg4[%c0, %c0_0, %c0_1] : memref<3x3x128xf32, #tpu.memory_space<vmem>>, vector<3x3x128xf32>
    %c0_2 = arith.constant 0 : index
    %c0_3 = arith.constant 0 : index
    %1 = vector.load %arg5[%c0_2, %c0_3] : memref<1x128xf32, #tpu.memory_space<vmem>>, vector<1x128xf32>
    %cst = arith.constant 0.000000e+00 : f32
    %2 = vector.broadcast %cst : f32 to vector<16x128xf32>
    %c0_4 = arith.constant 0 : index
    %c0_5 = arith.constant 0 : index
    %c0_6 = arith.constant 0 : index
    %c0_7 = arith.constant 0 : index
    %3 = vector.load %arg2[%c0_4, %c0_5, %c0_6, %c0_7] : memref<1x8x18x128xf32, #tpu.memory_space<vmem>>, vector<1x1x18x128xf32>
    %4 = vector.shape_cast %3 : vector<1x1x18x128xf32> to vector<18x128xf32>
    %5 = vector.extract_strided_slice %4 {offsets = [0, 0], sizes = [16, 128], strides = [1, 1]} : vector<18x128xf32> to vector<16x128xf32>
    %6 = vector.extract_strided_slice %0 {offsets = [0, 0, 0], sizes = [1, 1, 128], strides = [1, 1, 1]} : vector<3x3x128xf32> to vector<1x1x128xf32>
    %7 = vector.shape_cast %6 : vector<1x1x128xf32> to vector<128xf32>
    %8 = vector.shape_cast %7 : vector<128xf32> to vector<1x128xf32>
    %9 = vector.broadcast %8 : vector<1x128xf32> to vector<16x128xf32>
    %10 = arith.mulf %5, %9 : vector<16x128xf32>
    %11 = arith.addf %2, %10 : vector<16x128xf32>
    %12 = vector.extract_strided_slice %4 {offsets = [1, 0], sizes = [16, 128], strides = [1, 1]} : vector<18x128xf32> to vector<16x128xf32>
    %13 = vector.extract_strided_slice %0 {offsets = [0, 1, 0], sizes = [1, 1, 128], strides = [1, 1, 1]} : vector<3x3x128xf32> to vector<1x1x128xf32>
    %14 = vector.shape_cast %13 : vector<1x1x128xf32> to vector<128xf32>
    %15 = vector.shape_cast %14 : vector<128xf32> to vector<1x128xf32>
    %16 = vector.broadcast %15 : vector<1x128xf32> to vector<16x128xf32>
    %17 = arith.mulf %12, %16 : vector<16x128xf32>
    %18 = arith.addf %11, %17 : vector<16x128xf32>
    %19 = vector.extract_strided_slice %4 {offsets = [2, 0], sizes = [16, 128], strides = [1, 1]} : vector<18x128xf32> to vector<16x128xf32>
    %20 = vector.extract_strided_slice %0 {offsets = [0, 2, 0], sizes = [1, 1, 128], strides = [1, 1, 1]} : vector<3x3x128xf32> to vector<1x1x128xf32>
    %21 = vector.shape_cast %20 : vector<1x1x128xf32> to vector<128xf32>
    %22 = vector.shape_cast %21 : vector<128xf32> to vector<1x128xf32>
    %23 = vector.broadcast %22 : vector<1x128xf32> to vector<16x128xf32>
    %24 = arith.mulf %19, %23 : vector<16x128xf32>
    %25 = arith.addf %18, %24 : vector<16x128xf32>
    %c0_8 = arith.constant 0 : index
    %c1 = arith.constant 1 : index
    %c0_9 = arith.constant 0 : index
    %c0_10 = arith.constant 0 : index
    %26 = vector.load %arg2[%c0_8, %c1, %c0_9, %c0_10] : memref<1x8x18x128xf32, #tpu.memory_space<vmem>>, vector<1x1x18x128xf32>
    %27 = vector.shape_cast %26 : vector<1x1x18x128xf32> to vector<18x128xf32>
    %28 = vector.extract_strided_slice %27 {offsets = [0, 0], sizes = [16, 128], strides = [1, 1]} : vector<18x128xf32> to vector<16x128xf32>
    %29 = vector.extract_strided_slice %0 {offsets = [1, 0, 0], sizes = [1, 1, 128], strides = [1, 1, 1]} : vector<3x3x128xf32> to vector<1x1x128xf32>
    %30 = vector.shape_cast %29 : vector<1x1x128xf32> to vector<128xf32>
    %31 = vector.shape_cast %30 : vector<128xf32> to vector<1x128xf32>
    %32 = vector.broadcast %31 : vector<1x128xf32> to vector<16x128xf32>
    %33 = arith.mulf %28, %32 : vector<16x128xf32>
    %34 = arith.addf %25, %33 : vector<16x128xf32>
    %35 = vector.extract_strided_slice %27 {offsets = [1, 0], sizes = [16, 128], strides = [1, 1]} : vector<18x128xf32> to vector<16x128xf32>
    %36 = vector.extract_strided_slice %0 {offsets = [1, 1, 0], sizes = [1, 1, 128], strides = [1, 1, 1]} : vector<3x3x128xf32> to vector<1x1x128xf32>
    %37 = vector.shape_cast %36 : vector<1x1x128xf32> to vector<128xf32>
    %38 = vector.shape_cast %37 : vector<128xf32> to vector<1x128xf32>
    %39 = vector.broadcast %38 : vector<1x128xf32> to vector<16x128xf32>
    %40 = arith.mulf %35, %39 : vector<16x128xf32>
    %41 = arith.addf %34, %40 : vector<16x128xf32>
    %42 = vector.extract_strided_slice %27 {offsets = [2, 0], sizes = [16, 128], strides = [1, 1]} : vector<18x128xf32> to vector<16x128xf32>
    %43 = vector.extract_strided_slice %0 {offsets = [1, 2, 0], sizes = [1, 1, 128], strides = [1, 1, 1]} : vector<3x3x128xf32> to vector<1x1x128xf32>
    %44 = vector.shape_cast %43 : vector<1x1x128xf32> to vector<128xf32>
    %45 = vector.shape_cast %44 : vector<128xf32> to vector<1x128xf32>
    %46 = vector.broadcast %45 : vector<1x128xf32> to vector<16x128xf32>
    %47 = arith.mulf %42, %46 : vector<16x128xf32>
    %48 = arith.addf %41, %47 : vector<16x128xf32>
    %c0_11 = arith.constant 0 : index
    %c2 = arith.constant 2 : index
    %c0_12 = arith.constant 0 : index
    %c0_13 = arith.constant 0 : index
    %49 = vector.load %arg2[%c0_11, %c2, %c0_12, %c0_13] : memref<1x8x18x128xf32, #tpu.memory_space<vmem>>, vector<1x1x18x128xf32>
    %50 = vector.shape_cast %49 : vector<1x1x18x128xf32> to vector<18x128xf32>
    %51 = vector.extract_strided_slice %50 {offsets = [0, 0], sizes = [16, 128], strides = [1, 1]} : vector<18x128xf32> to vector<16x128xf32>
    %52 = vector.extract_strided_slice %0 {offsets = [2, 0, 0], sizes = [1, 1, 128], strides = [1, 1, 1]} : vector<3x3x128xf32> to vector<1x1x128xf32>
    %53 = vector.shape_cast %52 : vector<1x1x128xf32> to vector<128xf32>
    %54 = vector.shape_cast %53 : vector<128xf32> to vector<1x128xf32>
    %55 = vector.broadcast %54 : vector<1x128xf32> to vector<16x128xf32>
    %56 = arith.mulf %51, %55 : vector<16x128xf32>
    %57 = arith.addf %48, %56 : vector<16x128xf32>
    %58 = vector.extract_strided_slice %50 {offsets = [1, 0], sizes = [16, 128], strides = [1, 1]} : vector<18x128xf32> to vector<16x128xf32>
    %59 = vector.extract_strided_slice %0 {offsets = [2, 1, 0], sizes = [1, 1, 128], strides = [1, 1, 1]} : vector<3x3x128xf32> to vector<1x1x128xf32>
    %60 = vector.shape_cast %59 : vector<1x1x128xf32> to vector<128xf32>
    %61 = vector.shape_cast %60 : vector<128xf32> to vector<1x128xf32>
    %62 = vector.broadcast %61 : vector<1x128xf32> to vector<16x128xf32>
    %63 = arith.mulf %58, %62 : vector<16x128xf32>
    %64 = arith.addf %57, %63 : vector<16x128xf32>
    %65 = vector.extract_strided_slice %50 {offsets = [2, 0], sizes = [16, 128], strides = [1, 1]} : vector<18x128xf32> to vector<16x128xf32>
    %66 = vector.extract_strided_slice %0 {offsets = [2, 2, 0], sizes = [1, 1, 128], strides = [1, 1, 1]} : vector<3x3x128xf32> to vector<1x1x128xf32>
    %67 = vector.shape_cast %66 : vector<1x1x128xf32> to vector<128xf32>
    %68 = vector.shape_cast %67 : vector<128xf32> to vector<1x128xf32>
    %69 = vector.broadcast %68 : vector<1x128xf32> to vector<16x128xf32>
    %70 = arith.mulf %65, %69 : vector<16x128xf32>
    %71 = arith.addf %64, %70 : vector<16x128xf32>
    %72 = vector.broadcast %1 : vector<1x128xf32> to vector<16x128xf32>
    %73 = arith.addf %71, %72 : vector<16x128xf32>
    %cst_14 = arith.constant 0.000000e+00 : f32
    %74 = vector.broadcast %cst_14 : f32 to vector<16x128xf32>
    %75 = arith.maximumf %73, %74 : vector<16x128xf32>
    %c0_15 = arith.constant 0 : index
    %c0_16 = arith.constant 0 : index
    %76 = vector.load %arg9[%c0_15, %c0_16] : memref<128x128xf32, #tpu.memory_space<vmem>>, vector<16x128xf32>
    tpu.vector_store %arg9[%c0_15, %c0_16], %75 {strides = array<i32>} : memref<128x128xf32, #tpu.memory_space<vmem>>, vector<16x128xf32>,
    %cst_17 = arith.constant 0.000000e+00 : f32
    %77 = vector.broadcast %cst_17 : f32 to vector<16x128xf32>
    %c0_18 = arith.constant 0 : index
    %c1_19 = arith.constant 1 : index
    %c0_20 = arith.constant 0 : index
    %c0_21 = arith.constant 0 : index
    %78 = vector.load %arg2[%c0_18, %c1_19, %c0_20, %c0_21] : memref<1x8x18x128xf32, #tpu.memory_space<vmem>>, vector<1x1x18x128xf32>
    %79 = vector.shape_cast %78 : vector<1x1x18x128xf32> to vector<18x128xf32>
    %80 = vector.extract_strided_slice %79 {offsets = [0, 0], sizes = [16, 128], strides = [1, 1]} : vector<18x128xf32> to vector<16x128xf32>
    %81 = vector.extract_strided_slice %0 {offsets = [0, 0, 0], sizes = [1, 1, 128], strides = [1, 1, 1]} : vector<3x3x128xf32> to vector<1x1x128xf32>
    %82 = vector.shape_cast %81 : vector<1x1x128xf32> to vector<128xf32>
    %83 = vector.shape_cast %82 : vector<128xf32> to vector<1x128xf32>
    %84 = vector.broadcast %83 : vector<1x128xf32> to vector<16x128xf32>
    %85 = arith.mulf %80, %84 : vector<16x128xf32>
    %86 = arith.addf %77, %85 : vector<16x128xf32>
    %87 = vector.extract_strided_slice %79 {offsets = [1, 0], sizes = [16, 128], strides = [1, 1]} : vector<18x128xf32> to vector<16x128xf32>
    %88 = vector.extract_strided_slice %0 {offsets = [0, 1, 0], sizes = [1, 1, 128], strides = [1, 1, 1]} : vector<3x3x128xf32> to vector<1x1x128xf32>
    %89 = vector.shape_cast %88 : vector<1x1x128xf32> to vector<128xf32>
    %90 = vector.shape_cast %89 : vector<128xf32> to vector<1x128xf32>
    %91 = vector.broadcast %90 : vector<1x128xf32> to vector<16x128xf32>
    %92 = arith.mulf %87, %91 : vector<16x128xf32>
    %93 = arith.addf %86, %92 : vector<16x128xf32>
    %94 = vector.extract_strided_slice %79 {offsets = [2, 0], sizes = [16, 128], strides = [1, 1]} : vector<18x128xf32> to vector<16x128xf32>
    %95 = vector.extract_strided_slice %0 {offsets = [0, 2, 0], sizes = [1, 1, 128], strides = [1, 1, 1]} : vector<3x3x128xf32> to vector<1x1x128xf32>
    %96 = vector.shape_cast %95 : vector<1x1x128xf32> to vector<128xf32>
    %97 = vector.shape_cast %96 : vector<128xf32> to vector<1x128xf32>
    %98 = vector.broadcast %97 : vector<1x128xf32> to vector<16x128xf32>
    %99 = arith.mulf %94, %98 : vector<16x128xf32>
    %100 = arith.addf %93, %99 : vector<16x128xf32>
    %c0_22 = arith.constant 0 : index
    %c2_23 = arith.constant 2 : index
    %c0_24 = arith.constant 0 : index
    %c0_25 = arith.constant 0 : index
    %101 = vector.load %arg2[%c0_22, %c2_23, %c0_24, %c0_25] : memref<1x8x18x128xf32, #tpu.memory_space<vmem>>, vector<1x1x18x128xf32>
    %102 = vector.shape_cast %101 : vector<1x1x18x128xf32> to vector<18x128xf32>
    %103 = vector.extract_strided_slice %102 {offsets = [0, 0], sizes = [16, 128], strides = [1, 1]} : vector<18x128xf32> to vector<16x128xf32>
    %104 = vector.extract_strided_slice %0 {offsets = [1, 0, 0], sizes = [1, 1, 128], strides = [1, 1, 1]} : vector<3x3x128xf32> to vector<1x1x128xf32>
    %105 = vector.shape_cast %104 : vector<1x1x128xf32> to vector<128xf32>
    %106 = vector.shape_cast %105 : vector<128xf32> to vector<1x128xf32>
    %107 = vector.broadcast %106 : vector<1x128xf32> to vector<16x128xf32>
    %108 = arith.mulf %103, %107 : vector<16x128xf32>
    %109 = arith.addf %100, %108 : vector<16x128xf32>
    %110 = vector.extract_strided_slice %102 {offsets = [1, 0], sizes = [16, 128], strides = [1, 1]} : vector<18x128xf32> to vector<16x128xf32>
    %111 = vector.extract_strided_slice %0 {offsets = [1, 1, 0], sizes = [1, 1, 128], strides = [1, 1, 1]} : vector<3x3x128xf32> to vector<1x1x128xf32>
    %112 = vector.shape_cast %111 : vector<1x1x128xf32> to vector<128xf32>
    %113 = vector.shape_cast %112 : vector<128xf32> to vector<1x128xf32>
    %114 = vector.broadcast %113 : vector<1x128xf32> to vector<16x128xf32>
    %115 = arith.mulf %110, %114 : vector<16x128xf32>
    %116 = arith.addf %109, %115 : vector<16x128xf32>
    %117 = vector.extract_strided_slice %102 {offsets = [2, 0], sizes = [16, 128], strides = [1, 1]} : vector<18x128xf32> to vector<16x128xf32>
    %118 = vector.extract_strided_slice %0 {offsets = [1, 2, 0], sizes = [1, 1, 128], strides = [1, 1, 1]} : vector<3x3x128xf32> to vector<1x1x128xf32>
    %119 = vector.shape_cast %118 : vector<1x1x128xf32> to vector<128xf32>
    %120 = vector.shape_cast %119 : vector<128xf32> to vector<1x128xf32>
    %121 = vector.broadcast %120 : vector<1x128xf32> to vector<16x128xf32>
    %122 = arith.mulf %117, %121 : vector<16x128xf32>
    %123 = arith.addf %116, %122 : vector<16x128xf32>
    %c0_26 = arith.constant 0 : index
    %c3 = arith.constant 3 : index
    %c0_27 = arith.constant 0 : index
    %c0_28 = arith.constant 0 : index
    %124 = vector.load %arg2[%c0_26, %c3, %c0_27, %c0_28] : memref<1x8x18x128xf32, #tpu.memory_space<vmem>>, vector<1x1x18x128xf32>
    %125 = vector.shape_cast %124 : vector<1x1x18x128xf32> to vector<18x128xf32>
    %126 = vector.extract_strided_slice %125 {offsets = [0, 0], sizes = [16, 128], strides = [1, 1]} : vector<18x128xf32> to vector<16x128xf32>
    %127 = vector.extract_strided_slice %0 {offsets = [2, 0, 0], sizes = [1, 1, 128], strides = [1, 1, 1]} : vector<3x3x128xf32> to vector<1x1x128xf32>
    %128 = vector.shape_cast %127 : vector<1x1x128xf32> to vector<128xf32>
    %129 = vector.shape_cast %128 : vector<128xf32> to vector<1x128xf32>
    %130 = vector.broadcast %129 : vector<1x128xf32> to vector<16x128xf32>
    %131 = arith.mulf %126, %130 : vector<16x128xf32>
    %132 = arith.addf %123, %131 : vector<16x128xf32>
    %133 = vector.extract_strided_slice %125 {offsets = [1, 0], sizes = [16, 128], strides = [1, 1]} : vector<18x128xf32> to vector<16x128xf32>
    %134 = vector.extract_strided_slice %0 {offsets = [2, 1, 0], sizes = [1, 1, 128], strides = [1, 1, 1]} : vector<3x3x128xf32> to vector<1x1x128xf32>
    %135 = vector.shape_cast %134 : vector<1x1x128xf32> to vector<128xf32>
    %136 = vector.shape_cast %135 : vector<128xf32> to vector<1x128xf32>
    %137 = vector.broadcast %136 : vector<1x128xf32> to vector<16x128xf32>
    %138 = arith.mulf %133, %137 : vector<16x128xf32>
    %139 = arith.addf %132, %138 : vector<16x128xf32>
    %140 = vector.extract_strided_slice %125 {offsets = [2, 0], sizes = [16, 128], strides = [1, 1]} : vector<18x128xf32> to vector<16x128xf32>
    %141 = vector.extract_strided_slice %0 {offsets = [2, 2, 0], sizes = [1, 1, 128], strides = [1, 1, 1]} : vector<3x3x128xf32> to vector<1x1x128xf32>
    %142 = vector.shape_cast %141 : vector<1x1x128xf32> to vector<128xf32>
    %143 = vector.shape_cast %142 : vector<128xf32> to vector<1x128xf32>
    %144 = vector.broadcast %143 : vector<1x128xf32> to vector<16x128xf32>
    %145 = arith.mulf %140, %144 : vector<16x128xf32>
    %146 = arith.addf %139, %145 : vector<16x128xf32>
    %147 = vector.broadcast %1 : vector<1x128xf32> to vector<16x128xf32>
    %148 = arith.addf %146, %147 : vector<16x128xf32>
    %cst_29 = arith.constant 0.000000e+00 : f32
    %149 = vector.broadcast %cst_29 : f32 to vector<16x128xf32>
    %150 = arith.maximumf %148, %149 : vector<16x128xf32>
    %c16 = arith.constant 16 : index
    %c0_30 = arith.constant 0 : index
    %151 = vector.load %arg9[%c16, %c0_30] : memref<128x128xf32, #tpu.memory_space<vmem>>, vector<16x128xf32>
    tpu.vector_store %arg9[%c16, %c0_30], %150 {strides = array<i32>} : memref<128x128xf32, #tpu.memory_space<vmem>>, vector<16x128xf32>,
    %cst_31 = arith.constant 0.000000e+00 : f32
    %152 = vector.broadcast %cst_31 : f32 to vector<16x128xf32>
    %c0_32 = arith.constant 0 : index
    %c2_33 = arith.constant 2 : index
    %c0_34 = arith.constant 0 : index
    %c0_35 = arith.constant 0 : index
    %153 = vector.load %arg2[%c0_32, %c2_33, %c0_34, %c0_35] : memref<1x8x18x128xf32, #tpu.memory_space<vmem>>, vector<1x1x18x128xf32>
    %154 = vector.shape_cast %153 : vector<1x1x18x128xf32> to vector<18x128xf32>
    %155 = vector.extract_strided_slice %154 {offsets = [0, 0], sizes = [16, 128], strides = [1, 1]} : vector<18x128xf32> to vector<16x128xf32>
    %156 = vector.extract_strided_slice %0 {offsets = [0, 0, 0], sizes = [1, 1, 128], strides = [1, 1, 1]} : vector<3x3x128xf32> to vector<1x1x128xf32>
    %157 = vector.shape_cast %156 : vector<1x1x128xf32> to vector<128xf32>
    %158 = vector.shape_cast %157 : vector<128xf32> to vector<1x128xf32>
    %159 = vector.broadcast %158 : vector<1x128xf32> to vector<16x128xf32>
    %160 = arith.mulf %155, %159 : vector<16x128xf32>
    %161 = arith.addf %152, %160 : vector<16x128xf32>
    %162 = vector.extract_strided_slice %154 {offsets = [1, 0], sizes = [16, 128], strides = [1, 1]} : vector<18x128xf32> to vector<16x128xf32>
    %163 = vector.extract_strided_slice %0 {offsets = [0, 1, 0], sizes = [1, 1, 128], strides = [1, 1, 1]} : vector<3x3x128xf32> to vector<1x1x128xf32>
    %164 = vector.shape_cast %163 : vector<1x1x128xf32> to vector<128xf32>
    %165 = vector.shape_cast %164 : vector<128xf32> to vector<1x128xf32>
    %166 = vector.broadcast %165 : vector<1x128xf32> to vector<16x128xf32>
    %167 = arith.mulf %162, %166 : vector<16x128xf32>
    %168 = arith.addf %161, %167 : vector<16x128xf32>
    %169 = vector.extract_strided_slice %154 {offsets = [2, 0], sizes = [16, 128], strides = [1, 1]} : vector<18x128xf32> to vector<16x128xf32>
    %170 = vector.extract_strided_slice %0 {offsets = [0, 2, 0], sizes = [1, 1, 128], strides = [1, 1, 1]} : vector<3x3x128xf32> to vector<1x1x128xf32>
    %171 = vector.shape_cast %170 : vector<1x1x128xf32> to vector<128xf32>
    %172 = vector.shape_cast %171 : vector<128xf32> to vector<1x128xf32>
    %173 = vector.broadcast %172 : vector<1x128xf32> to vector<16x128xf32>
    %174 = arith.mulf %169, %173 : vector<16x128xf32>
    %175 = arith.addf %168, %174 : vector<16x128xf32>
    %c0_36 = arith.constant 0 : index
    %c3_37 = arith.constant 3 : index
    %c0_38 = arith.constant 0 : index
    %c0_39 = arith.constant 0 : index
    %176 = vector.load %arg2[%c0_36, %c3_37, %c0_38, %c0_39] : memref<1x8x18x128xf32, #tpu.memory_space<vmem>>, vector<1x1x18x128xf32>
    %177 = vector.shape_cast %176 : vector<1x1x18x128xf32> to vector<18x128xf32>
    %178 = vector.extract_strided_slice %177 {offsets = [0, 0], sizes = [16, 128], strides = [1, 1]} : vector<18x128xf32> to vector<16x128xf32>
    %179 = vector.extract_strided_slice %0 {offsets = [1, 0, 0], sizes = [1, 1, 128], strides = [1, 1, 1]} : vector<3x3x128xf32> to vector<1x1x128xf32>
    %180 = vector.shape_cast %179 : vector<1x1x128xf32> to vector<128xf32>
    %181 = vector.shape_cast %180 : vector<128xf32> to vector<1x128xf32>
    %182 = vector.broadcast %181 : vector<1x128xf32> to vector<16x128xf32>
    %183 = arith.mulf %178, %182 : vector<16x128xf32>
    %184 = arith.addf %175, %183 : vector<16x128xf32>
    %185 = vector.extract_strided_slice %177 {offsets = [1, 0], sizes = [16, 128], strides = [1, 1]} : vector<18x128xf32> to vector<16x128xf32>
    %186 = vector.extract_strided_slice %0 {offsets = [1, 1, 0], sizes = [1, 1, 128], strides = [1, 1, 1]} : vector<3x3x128xf32> to vector<1x1x128xf32>
    %187 = vector.shape_cast %186 : vector<1x1x128xf32> to vector<128xf32>
    %188 = vector.shape_cast %187 : vector<128xf32> to vector<1x128xf32>
    %189 = vector.broadcast %188 : vector<1x128xf32> to vector<16x128xf32>
    %190 = arith.mulf %185, %189 : vector<16x128xf32>
    %191 = arith.addf %184, %190 : vector<16x128xf32>
    %192 = vector.extract_strided_slice %177 {offsets = [2, 0], sizes = [16, 128], strides = [1, 1]} : vector<18x128xf32> to vector<16x128xf32>
    %193 = vector.extract_strided_slice %0 {offsets = [1, 2, 0], sizes = [1, 1, 128], strides = [1, 1, 1]} : vector<3x3x128xf32> to vector<1x1x128xf32>
    %194 = vector.shape_cast %193 : vector<1x1x128xf32> to vector<128xf32>
    %195 = vector.shape_cast %194 : vector<128xf32> to vector<1x128xf32>
    %196 = vector.broadcast %195 : vector<1x128xf32> to vector<16x128xf32>
    %197 = arith.mulf %192, %196 : vector<16x128xf32>
    %198 = arith.addf %191, %197 : vector<16x128xf32>
    %c0_40 = arith.constant 0 : index
    %c4 = arith.constant 4 : index
    %c0_41 = arith.constant 0 : index
    %c0_42 = arith.constant 0 : index
    %199 = vector.load %arg2[%c0_40, %c4, %c0_41, %c0_42] : memref<1x8x18x128xf32, #tpu.memory_space<vmem>>, vector<1x1x18x128xf32>
    %200 = vector.shape_cast %199 : vector<1x1x18x128xf32> to vector<18x128xf32>
    %201 = vector.extract_strided_slice %200 {offsets = [0, 0], sizes = [16, 128], strides = [1, 1]} : vector<18x128xf32> to vector<16x128xf32>
    %202 = vector.extract_strided_slice %0 {offsets = [2, 0, 0], sizes = [1, 1, 128], strides = [1, 1, 1]} : vector<3x3x128xf32> to vector<1x1x128xf32>
    %203 = vector.shape_cast %202 : vector<1x1x128xf32> to vector<128xf32>
    %204 = vector.shape_cast %203 : vector<128xf32> to vector<1x128xf32>
    %205 = vector.broadcast %204 : vector<1x128xf32> to vector<16x128xf32>
    %206 = arith.mulf %201, %205 : vector<16x128xf32>
    %207 = arith.addf %198, %206 : vector<16x128xf32>
    %208 = vector.extract_strided_slice %200 {offsets = [1, 0], sizes = [16, 128], strides = [1, 1]} : vector<18x128xf32> to vector<16x128xf32>
    %209 = vector.extract_strided_slice %0 {offsets = [2, 1, 0], sizes = [1, 1, 128], strides = [1, 1, 1]} : vector<3x3x128xf32> to vector<1x1x128xf32>
    %210 = vector.shape_cast %209 : vector<1x1x128xf32> to vector<128xf32>
    %211 = vector.shape_cast %210 : vector<128xf32> to vector<1x128xf32>
    %212 = vector.broadcast %211 : vector<1x128xf32> to vector<16x128xf32>
    %213 = arith.mulf %208, %212 : vector<16x128xf32>
    %214 = arith.addf %207, %213 : vector<16x128xf32>
    %215 = vector.extract_strided_slice %200 {offsets = [2, 0], sizes = [16, 128], strides = [1, 1]} : vector<18x128xf32> to vector<16x128xf32>
    %216 = vector.extract_strided_slice %0 {offsets = [2, 2, 0], sizes = [1, 1, 128], strides = [1, 1, 1]} : vector<3x3x128xf32> to vector<1x1x128xf32>
    %217 = vector.shape_cast %216 : vector<1x1x128xf32> to vector<128xf32>
    %218 = vector.shape_cast %217 : vector<128xf32> to vector<1x128xf32>
    %219 = vector.broadcast %218 : vector<1x128xf32> to vector<16x128xf32>
    %220 = arith.mulf %215, %219 : vector<16x128xf32>
    %221 = arith.addf %214, %220 : vector<16x128xf32>
    %222 = vector.broadcast %1 : vector<1x128xf32> to vector<16x128xf32>
    %223 = arith.addf %221, %222 : vector<16x128xf32>
    %cst_43 = arith.constant 0.000000e+00 : f32
    %224 = vector.broadcast %cst_43 : f32 to vector<16x128xf32>
    %225 = arith.maximumf %223, %224 : vector<16x128xf32>
    %c32 = arith.constant 32 : index
    %c0_44 = arith.constant 0 : index
    %226 = vector.load %arg9[%c32, %c0_44] : memref<128x128xf32, #tpu.memory_space<vmem>>, vector<16x128xf32>
    tpu.vector_store %arg9[%c32, %c0_44], %225 {strides = array<i32>} : memref<128x128xf32, #tpu.memory_space<vmem>>, vector<16x128xf32>,
    %cst_45 = arith.constant 0.000000e+00 : f32
    %227 = vector.broadcast %cst_45 : f32 to vector<16x128xf32>
    %c0_46 = arith.constant 0 : index
    %c3_47 = arith.constant 3 : index
    %c0_48 = arith.constant 0 : index
    %c0_49 = arith.constant 0 : index
    %228 = vector.load %arg2[%c0_46, %c3_47, %c0_48, %c0_49] : memref<1x8x18x128xf32, #tpu.memory_space<vmem>>, vector<1x1x18x128xf32>
    %229 = vector.shape_cast %228 : vector<1x1x18x128xf32> to vector<18x128xf32>
    %230 = vector.extract_strided_slice %229 {offsets = [0, 0], sizes = [16, 128], strides = [1, 1]} : vector<18x128xf32> to vector<16x128xf32>
    %231 = vector.extract_strided_slice %0 {offsets = [0, 0, 0], sizes = [1, 1, 128], strides = [1, 1, 1]} : vector<3x3x128xf32> to vector<1x1x128xf32>
    %232 = vector.shape_cast %231 : vector<1x1x128xf32> to vector<128xf32>
    %233 = vector.shape_cast %232 : vector<128xf32> to vector<1x128xf32>
    %234 = vector.broadcast %233 : vector<1x128xf32> to vector<16x128xf32>
    %235 = arith.mulf %230, %234 : vector<16x128xf32>
    %236 = arith.addf %227, %235 : vector<16x128xf32>
    %237 = vector.extract_strided_slice %229 {offsets = [1, 0], sizes = [16, 128], strides = [1, 1]} : vector<18x128xf32> to vector<16x128xf32>
    %238 = vector.extract_strided_slice %0 {offsets = [0, 1, 0], sizes = [1, 1, 128], strides = [1, 1, 1]} : vector<3x3x128xf32> to vector<1x1x128xf32>
    %239 = vector.shape_cast %238 : vector<1x1x128xf32> to vector<128xf32>
    %240 = vector.shape_cast %239 : vector<128xf32> to vector<1x128xf32>
    %241 = vector.broadcast %240 : vector<1x128xf32> to vector<16x128xf32>
    %242 = arith.mulf %237, %241 : vector<16x128xf32>
    %243 = arith.addf %236, %242 : vector<16x128xf32>
    %244 = vector.extract_strided_slice %229 {offsets = [2, 0], sizes = [16, 128], strides = [1, 1]} : vector<18x128xf32> to vector<16x128xf32>
    %245 = vector.extract_strided_slice %0 {offsets = [0, 2, 0], sizes = [1, 1, 128], strides = [1, 1, 1]} : vector<3x3x128xf32> to vector<1x1x128xf32>
    %246 = vector.shape_cast %245 : vector<1x1x128xf32> to vector<128xf32>
    %247 = vector.shape_cast %246 : vector<128xf32> to vector<1x128xf32>
    %248 = vector.broadcast %247 : vector<1x128xf32> to vector<16x128xf32>
    %249 = arith.mulf %244, %248 : vector<16x128xf32>
    %250 = arith.addf %243, %249 : vector<16x128xf32>
    %c0_50 = arith.constant 0 : index
    %c4_51 = arith.constant 4 : index
    %c0_52 = arith.constant 0 : index
    %c0_53 = arith.constant 0 : index
    %251 = vector.load %arg2[%c0_50, %c4_51, %c0_52, %c0_53] : memref<1x8x18x128xf32, #tpu.memory_space<vmem>>, vector<1x1x18x128xf32>
    %252 = vector.shape_cast %251 : vector<1x1x18x128xf32> to vector<18x128xf32>
    %253 = vector.extract_strided_slice %252 {offsets = [0, 0], sizes = [16, 128], strides = [1, 1]} : vector<18x128xf32> to vector<16x128xf32>
    %254 = vector.extract_strided_slice %0 {offsets = [1, 0, 0], sizes = [1, 1, 128], strides = [1, 1, 1]} : vector<3x3x128xf32> to vector<1x1x128xf32>
    %255 = vector.shape_cast %254 : vector<1x1x128xf32> to vector<128xf32>
    %256 = vector.shape_cast %255 : vector<128xf32> to vector<1x128xf32>
    %257 = vector.broadcast %256 : vector<1x128xf32> to vector<16x128xf32>
    %258 = arith.mulf %253, %257 : vector<16x128xf32>
    %259 = arith.addf %250, %258 : vector<16x128xf32>
    %260 = vector.extract_strided_slice %252 {offsets = [1, 0], sizes = [16, 128], strides = [1, 1]} : vector<18x128xf32> to vector<16x128xf32>
    %261 = vector.extract_strided_slice %0 {offsets = [1, 1, 0], sizes = [1, 1, 128], strides = [1, 1, 1]} : vector<3x3x128xf32> to vector<1x1x128xf32>
    %262 = vector.shape_cast %261 : vector<1x1x128xf32> to vector<128xf32>
    %263 = vector.shape_cast %262 : vector<128xf32> to vector<1x128xf32>
    %264 = vector.broadcast %263 : vector<1x128xf32> to vector<16x128xf32>
    %265 = arith.mulf %260, %264 : vector<16x128xf32>
    %266 = arith.addf %259, %265 : vector<16x128xf32>
    %267 = vector.extract_strided_slice %252 {offsets = [2, 0], sizes = [16, 128], strides = [1, 1]} : vector<18x128xf32> to vector<16x128xf32>
    %268 = vector.extract_strided_slice %0 {offsets = [1, 2, 0], sizes = [1, 1, 128], strides = [1, 1, 1]} : vector<3x3x128xf32> to vector<1x1x128xf32>
    %269 = vector.shape_cast %268 : vector<1x1x128xf32> to vector<128xf32>
    %270 = vector.shape_cast %269 : vector<128xf32> to vector<1x128xf32>
    %271 = vector.broadcast %270 : vector<1x128xf32> to vector<16x128xf32>
    %272 = arith.mulf %267, %271 : vector<16x128xf32>
    %273 = arith.addf %266, %272 : vector<16x128xf32>
    %c0_54 = arith.constant 0 : index
    %c5 = arith.constant 5 : index
    %c0_55 = arith.constant 0 : index
    %c0_56 = arith.constant 0 : index
    %274 = vector.load %arg2[%c0_54, %c5, %c0_55, %c0_56] : memref<1x8x18x128xf32, #tpu.memory_space<vmem>>, vector<1x1x18x128xf32>
    %275 = vector.shape_cast %274 : vector<1x1x18x128xf32> to vector<18x128xf32>
    %276 = vector.extract_strided_slice %275 {offsets = [0, 0], sizes = [16, 128], strides = [1, 1]} : vector<18x128xf32> to vector<16x128xf32>
    %277 = vector.extract_strided_slice %0 {offsets = [2, 0, 0], sizes = [1, 1, 128], strides = [1, 1, 1]} : vector<3x3x128xf32> to vector<1x1x128xf32>
    %278 = vector.shape_cast %277 : vector<1x1x128xf32> to vector<128xf32>
    %279 = vector.shape_cast %278 : vector<128xf32> to vector<1x128xf32>
    %280 = vector.broadcast %279 : vector<1x128xf32> to vector<16x128xf32>
    %281 = arith.mulf %276, %280 : vector<16x128xf32>
    %282 = arith.addf %273, %281 : vector<16x128xf32>
    %283 = vector.extract_strided_slice %275 {offsets = [1, 0], sizes = [16, 128], strides = [1, 1]} : vector<18x128xf32> to vector<16x128xf32>
    %284 = vector.extract_strided_slice %0 {offsets = [2, 1, 0], sizes = [1, 1, 128], strides = [1, 1, 1]} : vector<3x3x128xf32> to vector<1x1x128xf32>
    %285 = vector.shape_cast %284 : vector<1x1x128xf32> to vector<128xf32>
    %286 = vector.shape_cast %285 : vector<128xf32> to vector<1x128xf32>
    %287 = vector.broadcast %286 : vector<1x128xf32> to vector<16x128xf32>
    %288 = arith.mulf %283, %287 : vector<16x128xf32>
    %289 = arith.addf %282, %288 : vector<16x128xf32>
    %290 = vector.extract_strided_slice %275 {offsets = [2, 0], sizes = [16, 128], strides = [1, 1]} : vector<18x128xf32> to vector<16x128xf32>
    %291 = vector.extract_strided_slice %0 {offsets = [2, 2, 0], sizes = [1, 1, 128], strides = [1, 1, 1]} : vector<3x3x128xf32> to vector<1x1x128xf32>
    %292 = vector.shape_cast %291 : vector<1x1x128xf32> to vector<128xf32>
    %293 = vector.shape_cast %292 : vector<128xf32> to vector<1x128xf32>
    %294 = vector.broadcast %293 : vector<1x128xf32> to vector<16x128xf32>
    %295 = arith.mulf %290, %294 : vector<16x128xf32>
    %296 = arith.addf %289, %295 : vector<16x128xf32>
    %297 = vector.broadcast %1 : vector<1x128xf32> to vector<16x128xf32>
    %298 = arith.addf %296, %297 : vector<16x128xf32>
    %cst_57 = arith.constant 0.000000e+00 : f32
    %299 = vector.broadcast %cst_57 : f32 to vector<16x128xf32>
    %300 = arith.maximumf %298, %299 : vector<16x128xf32>
    %c48 = arith.constant 48 : index
    %c0_58 = arith.constant 0 : index
    %301 = vector.load %arg9[%c48, %c0_58] : memref<128x128xf32, #tpu.memory_space<vmem>>, vector<16x128xf32>
    tpu.vector_store %arg9[%c48, %c0_58], %300 {strides = array<i32>} : memref<128x128xf32, #tpu.memory_space<vmem>>, vector<16x128xf32>,
    %cst_59 = arith.constant 0.000000e+00 : f32
    %302 = vector.broadcast %cst_59 : f32 to vector<16x128xf32>
    %c0_60 = arith.constant 0 : index
    %c4_61 = arith.constant 4 : index
    %c0_62 = arith.constant 0 : index
    %c0_63 = arith.constant 0 : index
    %303 = vector.load %arg2[%c0_60, %c4_61, %c0_62, %c0_63] : memref<1x8x18x128xf32, #tpu.memory_space<vmem>>, vector<1x1x18x128xf32>
    %304 = vector.shape_cast %303 : vector<1x1x18x128xf32> to vector<18x128xf32>
    %305 = vector.extract_strided_slice %304 {offsets = [0, 0], sizes = [16, 128], strides = [1, 1]} : vector<18x128xf32> to vector<16x128xf32>
    %306 = vector.extract_strided_slice %0 {offsets = [0, 0, 0], sizes = [1, 1, 128], strides = [1, 1, 1]} : vector<3x3x128xf32> to vector<1x1x128xf32>
    %307 = vector.shape_cast %306 : vector<1x1x128xf32> to vector<128xf32>
    %308 = vector.shape_cast %307 : vector<128xf32> to vector<1x128xf32>
    %309 = vector.broadcast %308 : vector<1x128xf32> to vector<16x128xf32>
    %310 = arith.mulf %305, %309 : vector<16x128xf32>
    %311 = arith.addf %302, %310 : vector<16x128xf32>
    %312 = vector.extract_strided_slice %304 {offsets = [1, 0], sizes = [16, 128], strides = [1, 1]} : vector<18x128xf32> to vector<16x128xf32>
    %313 = vector.extract_strided_slice %0 {offsets = [0, 1, 0], sizes = [1, 1, 128], strides = [1, 1, 1]} : vector<3x3x128xf32> to vector<1x1x128xf32>
    %314 = vector.shape_cast %313 : vector<1x1x128xf32> to vector<128xf32>
    %315 = vector.shape_cast %314 : vector<128xf32> to vector<1x128xf32>
    %316 = vector.broadcast %315 : vector<1x128xf32> to vector<16x128xf32>
    %317 = arith.mulf %312, %316 : vector<16x128xf32>
    %318 = arith.addf %311, %317 : vector<16x128xf32>
    %319 = vector.extract_strided_slice %304 {offsets = [2, 0], sizes = [16, 128], strides = [1, 1]} : vector<18x128xf32> to vector<16x128xf32>
    %320 = vector.extract_strided_slice %0 {offsets = [0, 2, 0], sizes = [1, 1, 128], strides = [1, 1, 1]} : vector<3x3x128xf32> to vector<1x1x128xf32>
    %321 = vector.shape_cast %320 : vector<1x1x128xf32> to vector<128xf32>
    %322 = vector.shape_cast %321 : vector<128xf32> to vector<1x128xf32>
    %323 = vector.broadcast %322 : vector<1x128xf32> to vector<16x128xf32>
    %324 = arith.mulf %319, %323 : vector<16x128xf32>
    %325 = arith.addf %318, %324 : vector<16x128xf32>
    %c0_64 = arith.constant 0 : index
    %c5_65 = arith.constant 5 : index
    %c0_66 = arith.constant 0 : index
    %c0_67 = arith.constant 0 : index
    %326 = vector.load %arg2[%c0_64, %c5_65, %c0_66, %c0_67] : memref<1x8x18x128xf32, #tpu.memory_space<vmem>>, vector<1x1x18x128xf32>
    %327 = vector.shape_cast %326 : vector<1x1x18x128xf32> to vector<18x128xf32>
    %328 = vector.extract_strided_slice %327 {offsets = [0, 0], sizes = [16, 128], strides = [1, 1]} : vector<18x128xf32> to vector<16x128xf32>
    %329 = vector.extract_strided_slice %0 {offsets = [1, 0, 0], sizes = [1, 1, 128], strides = [1, 1, 1]} : vector<3x3x128xf32> to vector<1x1x128xf32>
    %330 = vector.shape_cast %329 : vector<1x1x128xf32> to vector<128xf32>
    %331 = vector.shape_cast %330 : vector<128xf32> to vector<1x128xf32>
    %332 = vector.broadcast %331 : vector<1x128xf32> to vector<16x128xf32>
    %333 = arith.mulf %328, %332 : vector<16x128xf32>
    %334 = arith.addf %325, %333 : vector<16x128xf32>
    %335 = vector.extract_strided_slice %327 {offsets = [1, 0], sizes = [16, 128], strides = [1, 1]} : vector<18x128xf32> to vector<16x128xf32>
    %336 = vector.extract_strided_slice %0 {offsets = [1, 1, 0], sizes = [1, 1, 128], strides = [1, 1, 1]} : vector<3x3x128xf32> to vector<1x1x128xf32>
    %337 = vector.shape_cast %336 : vector<1x1x128xf32> to vector<128xf32>
    %338 = vector.shape_cast %337 : vector<128xf32> to vector<1x128xf32>
    %339 = vector.broadcast %338 : vector<1x128xf32> to vector<16x128xf32>
    %340 = arith.mulf %335, %339 : vector<16x128xf32>
    %341 = arith.addf %334, %340 : vector<16x128xf32>
    %342 = vector.extract_strided_slice %327 {offsets = [2, 0], sizes = [16, 128], strides = [1, 1]} : vector<18x128xf32> to vector<16x128xf32>
    %343 = vector.extract_strided_slice %0 {offsets = [1, 2, 0], sizes = [1, 1, 128], strides = [1, 1, 1]} : vector<3x3x128xf32> to vector<1x1x128xf32>
    %344 = vector.shape_cast %343 : vector<1x1x128xf32> to vector<128xf32>
    %345 = vector.shape_cast %344 : vector<128xf32> to vector<1x128xf32>
    %346 = vector.broadcast %345 : vector<1x128xf32> to vector<16x128xf32>
    %347 = arith.mulf %342, %346 : vector<16x128xf32>
    %348 = arith.addf %341, %347 : vector<16x128xf32>
    %c0_68 = arith.constant 0 : index
    %c6 = arith.constant 6 : index
    %c0_69 = arith.constant 0 : index
    %c0_70 = arith.constant 0 : index
    %349 = vector.load %arg2[%c0_68, %c6, %c0_69, %c0_70] : memref<1x8x18x128xf32, #tpu.memory_space<vmem>>, vector<1x1x18x128xf32>
    %350 = vector.shape_cast %349 : vector<1x1x18x128xf32> to vector<18x128xf32>
    %351 = vector.extract_strided_slice %350 {offsets = [0, 0], sizes = [16, 128], strides = [1, 1]} : vector<18x128xf32> to vector<16x128xf32>
    %352 = vector.extract_strided_slice %0 {offsets = [2, 0, 0], sizes = [1, 1, 128], strides = [1, 1, 1]} : vector<3x3x128xf32> to vector<1x1x128xf32>
    %353 = vector.shape_cast %352 : vector<1x1x128xf32> to vector<128xf32>
    %354 = vector.shape_cast %353 : vector<128xf32> to vector<1x128xf32>
    %355 = vector.broadcast %354 : vector<1x128xf32> to vector<16x128xf32>
    %356 = arith.mulf %351, %355 : vector<16x128xf32>
    %357 = arith.addf %348, %356 : vector<16x128xf32>
    %358 = vector.extract_strided_slice %350 {offsets = [1, 0], sizes = [16, 128], strides = [1, 1]} : vector<18x128xf32> to vector<16x128xf32>
    %359 = vector.extract_strided_slice %0 {offsets = [2, 1, 0], sizes = [1, 1, 128], strides = [1, 1, 1]} : vector<3x3x128xf32> to vector<1x1x128xf32>
    %360 = vector.shape_cast %359 : vector<1x1x128xf32> to vector<128xf32>
    %361 = vector.shape_cast %360 : vector<128xf32> to vector<1x128xf32>
    %362 = vector.broadcast %361 : vector<1x128xf32> to vector<16x128xf32>
    %363 = arith.mulf %358, %362 : vector<16x128xf32>
    %364 = arith.addf %357, %363 : vector<16x128xf32>
    %365 = vector.extract_strided_slice %350 {offsets = [2, 0], sizes = [16, 128], strides = [1, 1]} : vector<18x128xf32> to vector<16x128xf32>
    %366 = vector.extract_strided_slice %0 {offsets = [2, 2, 0], sizes = [1, 1, 128], strides = [1, 1, 1]} : vector<3x3x128xf32> to vector<1x1x128xf32>
    %367 = vector.shape_cast %366 : vector<1x1x128xf32> to vector<128xf32>
    %368 = vector.shape_cast %367 : vector<128xf32> to vector<1x128xf32>
    %369 = vector.broadcast %368 : vector<1x128xf32> to vector<16x128xf32>
    %370 = arith.mulf %365, %369 : vector<16x128xf32>
    %371 = arith.addf %364, %370 : vector<16x128xf32>
    %372 = vector.broadcast %1 : vector<1x128xf32> to vector<16x128xf32>
    %373 = arith.addf %371, %372 : vector<16x128xf32>
    %cst_71 = arith.constant 0.000000e+00 : f32
    %374 = vector.broadcast %cst_71 : f32 to vector<16x128xf32>
    %375 = arith.maximumf %373, %374 : vector<16x128xf32>
    %c64 = arith.constant 64 : index
    %c0_72 = arith.constant 0 : index
    %376 = vector.load %arg9[%c64, %c0_72] : memref<128x128xf32, #tpu.memory_space<vmem>>, vector<16x128xf32>
    tpu.vector_store %arg9[%c64, %c0_72], %375 {strides = array<i32>} : memref<128x128xf32, #tpu.memory_space<vmem>>, vector<16x128xf32>,
    %cst_73 = arith.constant 0.000000e+00 : f32
    %377 = vector.broadcast %cst_73 : f32 to vector<16x128xf32>
    %c0_74 = arith.constant 0 : index
    %c5_75 = arith.constant 5 : index
    %c0_76 = arith.constant 0 : index
    %c0_77 = arith.constant 0 : index
    %378 = vector.load %arg2[%c0_74, %c5_75, %c0_76, %c0_77] : memref<1x8x18x128xf32, #tpu.memory_space<vmem>>, vector<1x1x18x128xf32>
    %379 = vector.shape_cast %378 : vector<1x1x18x128xf32> to vector<18x128xf32>
    %380 = vector.extract_strided_slice %379 {offsets = [0, 0], sizes = [16, 128], strides = [1, 1]} : vector<18x128xf32> to vector<16x128xf32>
    %381 = vector.extract_strided_slice %0 {offsets = [0, 0, 0], sizes = [1, 1, 128], strides = [1, 1, 1]} : vector<3x3x128xf32> to vector<1x1x128xf32>
    %382 = vector.shape_cast %381 : vector<1x1x128xf32> to vector<128xf32>
    %383 = vector.shape_cast %382 : vector<128xf32> to vector<1x128xf32>
    %384 = vector.broadcast %383 : vector<1x128xf32> to vector<16x128xf32>
    %385 = arith.mulf %380, %384 : vector<16x128xf32>
    %386 = arith.addf %377, %385 : vector<16x128xf32>
    %387 = vector.extract_strided_slice %379 {offsets = [1, 0], sizes = [16, 128], strides = [1, 1]} : vector<18x128xf32> to vector<16x128xf32>
    %388 = vector.extract_strided_slice %0 {offsets = [0, 1, 0], sizes = [1, 1, 128], strides = [1, 1, 1]} : vector<3x3x128xf32> to vector<1x1x128xf32>
    %389 = vector.shape_cast %388 : vector<1x1x128xf32> to vector<128xf32>
    %390 = vector.shape_cast %389 : vector<128xf32> to vector<1x128xf32>
    %391 = vector.broadcast %390 : vector<1x128xf32> to vector<16x128xf32>
    %392 = arith.mulf %387, %391 : vector<16x128xf32>
    %393 = arith.addf %386, %392 : vector<16x128xf32>
    %394 = vector.extract_strided_slice %379 {offsets = [2, 0], sizes = [16, 128], strides = [1, 1]} : vector<18x128xf32> to vector<16x128xf32>
    %395 = vector.extract_strided_slice %0 {offsets = [0, 2, 0], sizes = [1, 1, 128], strides = [1, 1, 1]} : vector<3x3x128xf32> to vector<1x1x128xf32>
    %396 = vector.shape_cast %395 : vector<1x1x128xf32> to vector<128xf32>
    %397 = vector.shape_cast %396 : vector<128xf32> to vector<1x128xf32>
    %398 = vector.broadcast %397 : vector<1x128xf32> to vector<16x128xf32>
    %399 = arith.mulf %394, %398 : vector<16x128xf32>
    %400 = arith.addf %393, %399 : vector<16x128xf32>
    %c0_78 = arith.constant 0 : index
    %c6_79 = arith.constant 6 : index
    %c0_80 = arith.constant 0 : index
    %c0_81 = arith.constant 0 : index
    %401 = vector.load %arg2[%c0_78, %c6_79, %c0_80, %c0_81] : memref<1x8x18x128xf32, #tpu.memory_space<vmem>>, vector<1x1x18x128xf32>
    %402 = vector.shape_cast %401 : vector<1x1x18x128xf32> to vector<18x128xf32>
    %403 = vector.extract_strided_slice %402 {offsets = [0, 0], sizes = [16, 128], strides = [1, 1]} : vector<18x128xf32> to vector<16x128xf32>
    %404 = vector.extract_strided_slice %0 {offsets = [1, 0, 0], sizes = [1, 1, 128], strides = [1, 1, 1]} : vector<3x3x128xf32> to vector<1x1x128xf32>
    %405 = vector.shape_cast %404 : vector<1x1x128xf32> to vector<128xf32>
    %406 = vector.shape_cast %405 : vector<128xf32> to vector<1x128xf32>
    %407 = vector.broadcast %406 : vector<1x128xf32> to vector<16x128xf32>
    %408 = arith.mulf %403, %407 : vector<16x128xf32>
    %409 = arith.addf %400, %408 : vector<16x128xf32>
    %410 = vector.extract_strided_slice %402 {offsets = [1, 0], sizes = [16, 128], strides = [1, 1]} : vector<18x128xf32> to vector<16x128xf32>
    %411 = vector.extract_strided_slice %0 {offsets = [1, 1, 0], sizes = [1, 1, 128], strides = [1, 1, 1]} : vector<3x3x128xf32> to vector<1x1x128xf32>
    %412 = vector.shape_cast %411 : vector<1x1x128xf32> to vector<128xf32>
    %413 = vector.shape_cast %412 : vector<128xf32> to vector<1x128xf32>
    %414 = vector.broadcast %413 : vector<1x128xf32> to vector<16x128xf32>
    %415 = arith.mulf %410, %414 : vector<16x128xf32>
    %416 = arith.addf %409, %415 : vector<16x128xf32>
    %417 = vector.extract_strided_slice %402 {offsets = [2, 0], sizes = [16, 128], strides = [1, 1]} : vector<18x128xf32> to vector<16x128xf32>
    %418 = vector.extract_strided_slice %0 {offsets = [1, 2, 0], sizes = [1, 1, 128], strides = [1, 1, 1]} : vector<3x3x128xf32> to vector<1x1x128xf32>
    %419 = vector.shape_cast %418 : vector<1x1x128xf32> to vector<128xf32>
    %420 = vector.shape_cast %419 : vector<128xf32> to vector<1x128xf32>
    %421 = vector.broadcast %420 : vector<1x128xf32> to vector<16x128xf32>
    %422 = arith.mulf %417, %421 : vector<16x128xf32>
    %423 = arith.addf %416, %422 : vector<16x128xf32>
    %c0_82 = arith.constant 0 : index
    %c7 = arith.constant 7 : index
    %c0_83 = arith.constant 0 : index
    %c0_84 = arith.constant 0 : index
    %424 = vector.load %arg2[%c0_82, %c7, %c0_83, %c0_84] : memref<1x8x18x128xf32, #tpu.memory_space<vmem>>, vector<1x1x18x128xf32>
    %425 = vector.shape_cast %424 : vector<1x1x18x128xf32> to vector<18x128xf32>
    %426 = vector.extract_strided_slice %425 {offsets = [0, 0], sizes = [16, 128], strides = [1, 1]} : vector<18x128xf32> to vector<16x128xf32>
    %427 = vector.extract_strided_slice %0 {offsets = [2, 0, 0], sizes = [1, 1, 128], strides = [1, 1, 1]} : vector<3x3x128xf32> to vector<1x1x128xf32>
    %428 = vector.shape_cast %427 : vector<1x1x128xf32> to vector<128xf32>
    %429 = vector.shape_cast %428 : vector<128xf32> to vector<1x128xf32>
    %430 = vector.broadcast %429 : vector<1x128xf32> to vector<16x128xf32>
    %431 = arith.mulf %426, %430 : vector<16x128xf32>
    %432 = arith.addf %423, %431 : vector<16x128xf32>
    %433 = vector.extract_strided_slice %425 {offsets = [1, 0], sizes = [16, 128], strides = [1, 1]} : vector<18x128xf32> to vector<16x128xf32>
    %434 = vector.extract_strided_slice %0 {offsets = [2, 1, 0], sizes = [1, 1, 128], strides = [1, 1, 1]} : vector<3x3x128xf32> to vector<1x1x128xf32>
    %435 = vector.shape_cast %434 : vector<1x1x128xf32> to vector<128xf32>
    %436 = vector.shape_cast %435 : vector<128xf32> to vector<1x128xf32>
    %437 = vector.broadcast %436 : vector<1x128xf32> to vector<16x128xf32>
    %438 = arith.mulf %433, %437 : vector<16x128xf32>
    %439 = arith.addf %432, %438 : vector<16x128xf32>
    %440 = vector.extract_strided_slice %425 {offsets = [2, 0], sizes = [16, 128], strides = [1, 1]} : vector<18x128xf32> to vector<16x128xf32>
    %441 = vector.extract_strided_slice %0 {offsets = [2, 2, 0], sizes = [1, 1, 128], strides = [1, 1, 1]} : vector<3x3x128xf32> to vector<1x1x128xf32>
    %442 = vector.shape_cast %441 : vector<1x1x128xf32> to vector<128xf32>
    %443 = vector.shape_cast %442 : vector<128xf32> to vector<1x128xf32>
    %444 = vector.broadcast %443 : vector<1x128xf32> to vector<16x128xf32>
    %445 = arith.mulf %440, %444 : vector<16x128xf32>
    %446 = arith.addf %439, %445 : vector<16x128xf32>
    %447 = vector.broadcast %1 : vector<1x128xf32> to vector<16x128xf32>
    %448 = arith.addf %446, %447 : vector<16x128xf32>
    %cst_85 = arith.constant 0.000000e+00 : f32
    %449 = vector.broadcast %cst_85 : f32 to vector<16x128xf32>
    %450 = arith.maximumf %448, %449 : vector<16x128xf32>
    %c80 = arith.constant 80 : index
    %c0_86 = arith.constant 0 : index
    %451 = vector.load %arg9[%c80, %c0_86] : memref<128x128xf32, #tpu.memory_space<vmem>>, vector<16x128xf32>
    tpu.vector_store %arg9[%c80, %c0_86], %450 {strides = array<i32>} : memref<128x128xf32, #tpu.memory_space<vmem>>, vector<16x128xf32>,
    %cst_87 = arith.constant 0.000000e+00 : f32
    %452 = vector.broadcast %cst_87 : f32 to vector<16x128xf32>
    %c0_88 = arith.constant 0 : index
    %c6_89 = arith.constant 6 : index
    %c0_90 = arith.constant 0 : index
    %c0_91 = arith.constant 0 : index
    %453 = vector.load %arg2[%c0_88, %c6_89, %c0_90, %c0_91] : memref<1x8x18x128xf32, #tpu.memory_space<vmem>>, vector<1x1x18x128xf32>
    %454 = vector.shape_cast %453 : vector<1x1x18x128xf32> to vector<18x128xf32>
    %455 = vector.extract_strided_slice %454 {offsets = [0, 0], sizes = [16, 128], strides = [1, 1]} : vector<18x128xf32> to vector<16x128xf32>
    %456 = vector.extract_strided_slice %0 {offsets = [0, 0, 0], sizes = [1, 1, 128], strides = [1, 1, 1]} : vector<3x3x128xf32> to vector<1x1x128xf32>
    %457 = vector.shape_cast %456 : vector<1x1x128xf32> to vector<128xf32>
    %458 = vector.shape_cast %457 : vector<128xf32> to vector<1x128xf32>
    %459 = vector.broadcast %458 : vector<1x128xf32> to vector<16x128xf32>
    %460 = arith.mulf %455, %459 : vector<16x128xf32>
    %461 = arith.addf %452, %460 : vector<16x128xf32>
    %462 = vector.extract_strided_slice %454 {offsets = [1, 0], sizes = [16, 128], strides = [1, 1]} : vector<18x128xf32> to vector<16x128xf32>
    %463 = vector.extract_strided_slice %0 {offsets = [0, 1, 0], sizes = [1, 1, 128], strides = [1, 1, 1]} : vector<3x3x128xf32> to vector<1x1x128xf32>
    %464 = vector.shape_cast %463 : vector<1x1x128xf32> to vector<128xf32>
    %465 = vector.shape_cast %464 : vector<128xf32> to vector<1x128xf32>
    %466 = vector.broadcast %465 : vector<1x128xf32> to vector<16x128xf32>
    %467 = arith.mulf %462, %466 : vector<16x128xf32>
    %468 = arith.addf %461, %467 : vector<16x128xf32>
    %469 = vector.extract_strided_slice %454 {offsets = [2, 0], sizes = [16, 128], strides = [1, 1]} : vector<18x128xf32> to vector<16x128xf32>
    %470 = vector.extract_strided_slice %0 {offsets = [0, 2, 0], sizes = [1, 1, 128], strides = [1, 1, 1]} : vector<3x3x128xf32> to vector<1x1x128xf32>
    %471 = vector.shape_cast %470 : vector<1x1x128xf32> to vector<128xf32>
    %472 = vector.shape_cast %471 : vector<128xf32> to vector<1x128xf32>
    %473 = vector.broadcast %472 : vector<1x128xf32> to vector<16x128xf32>
    %474 = arith.mulf %469, %473 : vector<16x128xf32>
    %475 = arith.addf %468, %474 : vector<16x128xf32>
    %c0_92 = arith.constant 0 : index
    %c7_93 = arith.constant 7 : index
    %c0_94 = arith.constant 0 : index
    %c0_95 = arith.constant 0 : index
    %476 = vector.load %arg2[%c0_92, %c7_93, %c0_94, %c0_95] : memref<1x8x18x128xf32, #tpu.memory_space<vmem>>, vector<1x1x18x128xf32>
    %477 = vector.shape_cast %476 : vector<1x1x18x128xf32> to vector<18x128xf32>
    %478 = vector.extract_strided_slice %477 {offsets = [0, 0], sizes = [16, 128], strides = [1, 1]} : vector<18x128xf32> to vector<16x128xf32>
    %479 = vector.extract_strided_slice %0 {offsets = [1, 0, 0], sizes = [1, 1, 128], strides = [1, 1, 1]} : vector<3x3x128xf32> to vector<1x1x128xf32>
    %480 = vector.shape_cast %479 : vector<1x1x128xf32> to vector<128xf32>
    %481 = vector.shape_cast %480 : vector<128xf32> to vector<1x128xf32>
    %482 = vector.broadcast %481 : vector<1x128xf32> to vector<16x128xf32>
    %483 = arith.mulf %478, %482 : vector<16x128xf32>
    %484 = arith.addf %475, %483 : vector<16x128xf32>
    %485 = vector.extract_strided_slice %477 {offsets = [1, 0], sizes = [16, 128], strides = [1, 1]} : vector<18x128xf32> to vector<16x128xf32>
    %486 = vector.extract_strided_slice %0 {offsets = [1, 1, 0], sizes = [1, 1, 128], strides = [1, 1, 1]} : vector<3x3x128xf32> to vector<1x1x128xf32>
    %487 = vector.shape_cast %486 : vector<1x1x128xf32> to vector<128xf32>
    %488 = vector.shape_cast %487 : vector<128xf32> to vector<1x128xf32>
    %489 = vector.broadcast %488 : vector<1x128xf32> to vector<16x128xf32>
    %490 = arith.mulf %485, %489 : vector<16x128xf32>
    %491 = arith.addf %484, %490 : vector<16x128xf32>
    %492 = vector.extract_strided_slice %477 {offsets = [2, 0], sizes = [16, 128], strides = [1, 1]} : vector<18x128xf32> to vector<16x128xf32>
    %493 = vector.extract_strided_slice %0 {offsets = [1, 2, 0], sizes = [1, 1, 128], strides = [1, 1, 1]} : vector<3x3x128xf32> to vector<1x1x128xf32>
    %494 = vector.shape_cast %493 : vector<1x1x128xf32> to vector<128xf32>
    %495 = vector.shape_cast %494 : vector<128xf32> to vector<1x128xf32>
    %496 = vector.broadcast %495 : vector<1x128xf32> to vector<16x128xf32>
    %497 = arith.mulf %492, %496 : vector<16x128xf32>
    %498 = arith.addf %491, %497 : vector<16x128xf32>
    %c0_96 = arith.constant 0 : index
    %c0_97 = arith.constant 0 : index
    %c0_98 = arith.constant 0 : index
    %c0_99 = arith.constant 0 : index
    %499 = vector.load %arg3[%c0_96, %c0_97, %c0_98, %c0_99] : memref<1x2x18x128xf32, #tpu.memory_space<vmem>>, vector<1x1x18x128xf32>
    %500 = vector.shape_cast %499 : vector<1x1x18x128xf32> to vector<18x128xf32>
    %501 = vector.extract_strided_slice %500 {offsets = [0, 0], sizes = [16, 128], strides = [1, 1]} : vector<18x128xf32> to vector<16x128xf32>
    %502 = vector.extract_strided_slice %0 {offsets = [2, 0, 0], sizes = [1, 1, 128], strides = [1, 1, 1]} : vector<3x3x128xf32> to vector<1x1x128xf32>
    %503 = vector.shape_cast %502 : vector<1x1x128xf32> to vector<128xf32>
    %504 = vector.shape_cast %503 : vector<128xf32> to vector<1x128xf32>
    %505 = vector.broadcast %504 : vector<1x128xf32> to vector<16x128xf32>
    %506 = arith.mulf %501, %505 : vector<16x128xf32>
    %507 = arith.addf %498, %506 : vector<16x128xf32>
    %508 = vector.extract_strided_slice %500 {offsets = [1, 0], sizes = [16, 128], strides = [1, 1]} : vector<18x128xf32> to vector<16x128xf32>
    %509 = vector.extract_strided_slice %0 {offsets = [2, 1, 0], sizes = [1, 1, 128], strides = [1, 1, 1]} : vector<3x3x128xf32> to vector<1x1x128xf32>
    %510 = vector.shape_cast %509 : vector<1x1x128xf32> to vector<128xf32>
    %511 = vector.shape_cast %510 : vector<128xf32> to vector<1x128xf32>
    %512 = vector.broadcast %511 : vector<1x128xf32> to vector<16x128xf32>
    %513 = arith.mulf %508, %512 : vector<16x128xf32>
    %514 = arith.addf %507, %513 : vector<16x128xf32>
    %515 = vector.extract_strided_slice %500 {offsets = [2, 0], sizes = [16, 128], strides = [1, 1]} : vector<18x128xf32> to vector<16x128xf32>
    %516 = vector.extract_strided_slice %0 {offsets = [2, 2, 0], sizes = [1, 1, 128], strides = [1, 1, 1]} : vector<3x3x128xf32> to vector<1x1x128xf32>
    %517 = vector.shape_cast %516 : vector<1x1x128xf32> to vector<128xf32>
    %518 = vector.shape_cast %517 : vector<128xf32> to vector<1x128xf32>
    %519 = vector.broadcast %518 : vector<1x128xf32> to vector<16x128xf32>
    %520 = arith.mulf %515, %519 : vector<16x128xf32>
    %521 = arith.addf %514, %520 : vector<16x128xf32>
    %522 = vector.broadcast %1 : vector<1x128xf32> to vector<16x128xf32>
    %523 = arith.addf %521, %522 : vector<16x128xf32>
    %cst_100 = arith.constant 0.000000e+00 : f32
    %524 = vector.broadcast %cst_100 : f32 to vector<16x128xf32>
    %525 = arith.maximumf %523, %524 : vector<16x128xf32>
    %c96 = arith.constant 96 : index
    %c0_101 = arith.constant 0 : index
    %526 = vector.load %arg9[%c96, %c0_101] : memref<128x128xf32, #tpu.memory_space<vmem>>, vector<16x128xf32>
    tpu.vector_store %arg9[%c96, %c0_101], %525 {strides = array<i32>} : memref<128x128xf32, #tpu.memory_space<vmem>>, vector<16x128xf32>,
    %cst_102 = arith.constant 0.000000e+00 : f32
    %527 = vector.broadcast %cst_102 : f32 to vector<16x128xf32>
    %c0_103 = arith.constant 0 : index
    %c7_104 = arith.constant 7 : index
    %c0_105 = arith.constant 0 : index
    %c0_106 = arith.constant 0 : index
    %528 = vector.load %arg2[%c0_103, %c7_104, %c0_105, %c0_106] : memref<1x8x18x128xf32, #tpu.memory_space<vmem>>, vector<1x1x18x128xf32>
    %529 = vector.shape_cast %528 : vector<1x1x18x128xf32> to vector<18x128xf32>
    %530 = vector.extract_strided_slice %529 {offsets = [0, 0], sizes = [16, 128], strides = [1, 1]} : vector<18x128xf32> to vector<16x128xf32>
    %531 = vector.extract_strided_slice %0 {offsets = [0, 0, 0], sizes = [1, 1, 128], strides = [1, 1, 1]} : vector<3x3x128xf32> to vector<1x1x128xf32>
    %532 = vector.shape_cast %531 : vector<1x1x128xf32> to vector<128xf32>
    %533 = vector.shape_cast %532 : vector<128xf32> to vector<1x128xf32>
    %534 = vector.broadcast %533 : vector<1x128xf32> to vector<16x128xf32>
    %535 = arith.mulf %530, %534 : vector<16x128xf32>
    %536 = arith.addf %527, %535 : vector<16x128xf32>
    %537 = vector.extract_strided_slice %529 {offsets = [1, 0], sizes = [16, 128], strides = [1, 1]} : vector<18x128xf32> to vector<16x128xf32>
    %538 = vector.extract_strided_slice %0 {offsets = [0, 1, 0], sizes = [1, 1, 128], strides = [1, 1, 1]} : vector<3x3x128xf32> to vector<1x1x128xf32>
    %539 = vector.shape_cast %538 : vector<1x1x128xf32> to vector<128xf32>
    %540 = vector.shape_cast %539 : vector<128xf32> to vector<1x128xf32>
    %541 = vector.broadcast %540 : vector<1x128xf32> to vector<16x128xf32>
    %542 = arith.mulf %537, %541 : vector<16x128xf32>
    %543 = arith.addf %536, %542 : vector<16x128xf32>
    %544 = vector.extract_strided_slice %529 {offsets = [2, 0], sizes = [16, 128], strides = [1, 1]} : vector<18x128xf32> to vector<16x128xf32>
    %545 = vector.extract_strided_slice %0 {offsets = [0, 2, 0], sizes = [1, 1, 128], strides = [1, 1, 1]} : vector<3x3x128xf32> to vector<1x1x128xf32>
    %546 = vector.shape_cast %545 : vector<1x1x128xf32> to vector<128xf32>
    %547 = vector.shape_cast %546 : vector<128xf32> to vector<1x128xf32>
    %548 = vector.broadcast %547 : vector<1x128xf32> to vector<16x128xf32>
    %549 = arith.mulf %544, %548 : vector<16x128xf32>
    %550 = arith.addf %543, %549 : vector<16x128xf32>
    %c0_107 = arith.constant 0 : index
    %c0_108 = arith.constant 0 : index
    %c0_109 = arith.constant 0 : index
    %c0_110 = arith.constant 0 : index
    %551 = vector.load %arg3[%c0_107, %c0_108, %c0_109, %c0_110] : memref<1x2x18x128xf32, #tpu.memory_space<vmem>>, vector<1x1x18x128xf32>
    %552 = vector.shape_cast %551 : vector<1x1x18x128xf32> to vector<18x128xf32>
    %553 = vector.extract_strided_slice %552 {offsets = [0, 0], sizes = [16, 128], strides = [1, 1]} : vector<18x128xf32> to vector<16x128xf32>
    %554 = vector.extract_strided_slice %0 {offsets = [1, 0, 0], sizes = [1, 1, 128], strides = [1, 1, 1]} : vector<3x3x128xf32> to vector<1x1x128xf32>
    %555 = vector.shape_cast %554 : vector<1x1x128xf32> to vector<128xf32>
    %556 = vector.shape_cast %555 : vector<128xf32> to vector<1x128xf32>
    %557 = vector.broadcast %556 : vector<1x128xf32> to vector<16x128xf32>
    %558 = arith.mulf %553, %557 : vector<16x128xf32>
    %559 = arith.addf %550, %558 : vector<16x128xf32>
    %560 = vector.extract_strided_slice %552 {offsets = [1, 0], sizes = [16, 128], strides = [1, 1]} : vector<18x128xf32> to vector<16x128xf32>
    %561 = vector.extract_strided_slice %0 {offsets = [1, 1, 0], sizes = [1, 1, 128], strides = [1, 1, 1]} : vector<3x3x128xf32> to vector<1x1x128xf32>
    %562 = vector.shape_cast %561 : vector<1x1x128xf32> to vector<128xf32>
    %563 = vector.shape_cast %562 : vector<128xf32> to vector<1x128xf32>
    %564 = vector.broadcast %563 : vector<1x128xf32> to vector<16x128xf32>
    %565 = arith.mulf %560, %564 : vector<16x128xf32>
    %566 = arith.addf %559, %565 : vector<16x128xf32>
    %567 = vector.extract_strided_slice %552 {offsets = [2, 0], sizes = [16, 128], strides = [1, 1]} : vector<18x128xf32> to vector<16x128xf32>
    %568 = vector.extract_strided_slice %0 {offsets = [1, 2, 0], sizes = [1, 1, 128], strides = [1, 1, 1]} : vector<3x3x128xf32> to vector<1x1x128xf32>
    %569 = vector.shape_cast %568 : vector<1x1x128xf32> to vector<128xf32>
    %570 = vector.shape_cast %569 : vector<128xf32> to vector<1x128xf32>
    %571 = vector.broadcast %570 : vector<1x128xf32> to vector<16x128xf32>
    %572 = arith.mulf %567, %571 : vector<16x128xf32>
    %573 = arith.addf %566, %572 : vector<16x128xf32>
    %c0_111 = arith.constant 0 : index
    %c1_112 = arith.constant 1 : index
    %c0_113 = arith.constant 0 : index
    %c0_114 = arith.constant 0 : index
    %574 = vector.load %arg3[%c0_111, %c1_112, %c0_113, %c0_114] : memref<1x2x18x128xf32, #tpu.memory_space<vmem>>, vector<1x1x18x128xf32>
    %575 = vector.shape_cast %574 : vector<1x1x18x128xf32> to vector<18x128xf32>
    %576 = vector.extract_strided_slice %575 {offsets = [0, 0], sizes = [16, 128], strides = [1, 1]} : vector<18x128xf32> to vector<16x128xf32>
    %577 = vector.extract_strided_slice %0 {offsets = [2, 0, 0], sizes = [1, 1, 128], strides = [1, 1, 1]} : vector<3x3x128xf32> to vector<1x1x128xf32>
    %578 = vector.shape_cast %577 : vector<1x1x128xf32> to vector<128xf32>
    %579 = vector.shape_cast %578 : vector<128xf32> to vector<1x128xf32>
    %580 = vector.broadcast %579 : vector<1x128xf32> to vector<16x128xf32>
    %581 = arith.mulf %576, %580 : vector<16x128xf32>
    %582 = arith.addf %573, %581 : vector<16x128xf32>
    %583 = vector.extract_strided_slice %575 {offsets = [1, 0], sizes = [16, 128], strides = [1, 1]} : vector<18x128xf32> to vector<16x128xf32>
    %584 = vector.extract_strided_slice %0 {offsets = [2, 1, 0], sizes = [1, 1, 128], strides = [1, 1, 1]} : vector<3x3x128xf32> to vector<1x1x128xf32>
    %585 = vector.shape_cast %584 : vector<1x1x128xf32> to vector<128xf32>
    %586 = vector.shape_cast %585 : vector<128xf32> to vector<1x128xf32>
    %587 = vector.broadcast %586 : vector<1x128xf32> to vector<16x128xf32>
    %588 = arith.mulf %583, %587 : vector<16x128xf32>
    %589 = arith.addf %582, %588 : vector<16x128xf32>
    %590 = vector.extract_strided_slice %575 {offsets = [2, 0], sizes = [16, 128], strides = [1, 1]} : vector<18x128xf32> to vector<16x128xf32>
    %591 = vector.extract_strided_slice %0 {offsets = [2, 2, 0], sizes = [1, 1, 128], strides = [1, 1, 1]} : vector<3x3x128xf32> to vector<1x1x128xf32>
    %592 = vector.shape_cast %591 : vector<1x1x128xf32> to vector<128xf32>
    %593 = vector.shape_cast %592 : vector<128xf32> to vector<1x128xf32>
    %594 = vector.broadcast %593 : vector<1x128xf32> to vector<16x128xf32>
    %595 = arith.mulf %590, %594 : vector<16x128xf32>
    %596 = arith.addf %589, %595 : vector<16x128xf32>
    %597 = vector.broadcast %1 : vector<1x128xf32> to vector<16x128xf32>
    %598 = arith.addf %596, %597 : vector<16x128xf32>
    %cst_115 = arith.constant 0.000000e+00 : f32
    %599 = vector.broadcast %cst_115 : f32 to vector<16x128xf32>
    %600 = arith.maximumf %598, %599 : vector<16x128xf32>
    %c112 = arith.constant 112 : index
    %c0_116 = arith.constant 0 : index
    %601 = vector.load %arg9[%c112, %c0_116] : memref<128x128xf32, #tpu.memory_space<vmem>>, vector<16x128xf32>
    tpu.vector_store %arg9[%c112, %c0_116], %600 {strides = array<i32>} : memref<128x128xf32, #tpu.memory_space<vmem>>, vector<16x128xf32>,
    %c0_117 = arith.constant 0 : index
    %c0_118 = arith.constant 0 : index
    %602 = vector.load %arg9[%c0_117, %c0_118] : memref<128x128xf32, #tpu.memory_space<vmem>>, vector<128x128xf32>
    %c0_119 = arith.constant 0 : index
    %c0_120 = arith.constant 0 : index
    %603 = vector.load %arg6[%c0_119, %c0_120] : memref<128x128xf32, #tpu.memory_space<vmem>>, vector<128x128xf32>
    %cst_121 = arith.constant dense<0.000000e+00> : vector<128x128xf32>
    %604 = tpu.matmul %602, %603, %cst_121 {dimension_numbers = #tpu.dot_dimension_numbers<[1], [0], [0], [1], [0, 0, 1, 1], [], []>} : vector<128x128xf32>, vector<128x128xf32>, vector<128x128xf32> -> vector<128x128xf32>
    %c0_122 = arith.constant 0 : index
    %c0_123 = arith.constant 0 : index
    %605 = vector.load %arg7[%c0_122, %c0_123] : memref<1x128xf32, #tpu.memory_space<vmem>>, vector<1x128xf32>
    %606 = vector.broadcast %605 : vector<1x128xf32> to vector<128x128xf32>
    %607 = arith.addf %604, %606 : vector<128x128xf32>
    %cst_124 = arith.constant 0.000000e+00 : f32
    %608 = vector.broadcast %cst_124 : f32 to vector<128x128xf32>
    %609 = arith.maximumf %607, %608 : vector<128x128xf32>
    %c0_125 = arith.constant 0 : index
    %c0_126 = arith.constant 0 : index
    %c0_127 = arith.constant 0 : index
    %610 = vector.load %arg8[%c0_125, %c0_126, %c0_127] : memref<1x128x128xf32, #tpu.memory_space<vmem>>, vector<1x128x128xf32>
    %611 = vector.shape_cast %610 : vector<1x128x128xf32> to vector<128x128xf32>
    %612 = vector.shape_cast %609 : vector<128x128xf32> to vector<1x128x128xf32>
    tpu.vector_store %arg8[%c0_125, %c0_126, %c0_127], %612 {strides = array<i32>} : memref<1x128x128xf32, #tpu.memory_space<vmem>>, vector<1x128x128xf32>,
    return
  }
  func.func @transform_0(%arg0: i32, %arg1: i32) -> (i32, i32, i32, i32) {
    %c0_i32 = arith.constant 0 : i32
    %c0_i32_0 = arith.constant 0 : i32
    %c0_i32_1 = arith.constant 0 : i32
    return %arg0, %arg1, %c0_i32, %c0_i32_0 : i32, i32, i32, i32
  }
  func.func @transform_1(%arg0: i32, %arg1: i32) -> (i32, i32, i32, i32) {
    %c1_i32 = arith.constant 1 : i32
    %0 = arith.addi %arg1, %c1_i32 : i32
    %c4_i32 = arith.constant 4 : i32
    %1 = arith.muli %0, %c4_i32 : i32
    %c0_i32 = arith.constant 0 : i32
    %c0_i32_0 = arith.constant 0 : i32
    %c0_i32_1 = arith.constant 0 : i32
    return %arg0, %1, %c0_i32, %c0_i32_0 : i32, i32, i32, i32
  }
  func.func @transform_2(%arg0: i32, %arg1: i32) -> (i32, i32, i32) {
    %c0_i32 = arith.constant 0 : i32
    %c0_i32_0 = arith.constant 0 : i32
    %c0_i32_1 = arith.constant 0 : i32
    %c0_i32_2 = arith.constant 0 : i32
    return %c0_i32, %c0_i32_0, %c0_i32_1 : i32, i32, i32
  }
  func.func @transform_3(%arg0: i32, %arg1: i32) -> (i32, i32) {
    %c0_i32 = arith.constant 0 : i32
    %c0_i32_0 = arith.constant 0 : i32
    %c0_i32_1 = arith.constant 0 : i32
    return %c0_i32, %c0_i32_0 : i32, i32
  }
  func.func @transform_4(%arg0: i32, %arg1: i32) -> (i32, i32) {
    %c0_i32 = arith.constant 0 : i32
    %c0_i32_0 = arith.constant 0 : i32
    %c0_i32_1 = arith.constant 0 : i32
    return %c0_i32, %c0_i32_0 : i32, i32
  }
  func.func @transform_5(%arg0: i32, %arg1: i32) -> (i32, i32) {
    %c0_i32 = arith.constant 0 : i32
    %c0_i32_0 = arith.constant 0 : i32
    %c0_i32_1 = arith.constant 0 : i32
    return %c0_i32, %c0_i32_0 : i32, i32
  }
  func.func @transform_6(%arg0: i32, %arg1: i32) -> (i32, i32, i32) {
    %c0_i32 = arith.constant 0 : i32
    %c0_i32_0 = arith.constant 0 : i32
    return %arg0, %arg1, %c0_i32 : i32, i32, i32
  }
}

module attributes {stable_mosaic.version = 11 : i64} {
  func.func @_fused_dsconv_kernel(%arg0: i32, %arg1: i32, %arg2: memref<1x8x18x128xf32, #tpu.memory_space<vmem>>, %arg3: memref<1x2x18x128xf32, #tpu.memory_space<vmem>>, %arg4: memref<3x3x128xf32, #tpu.memory_space<vmem>>, %arg5: memref<1x128xf32, #tpu.memory_space<vmem>>, %arg6: memref<128x128xf32, #tpu.memory_space<vmem>>, %arg7: memref<1x128xf32, #tpu.memory_space<vmem>>, %arg8: memref<1x128x128xf32, #tpu.memory_space<vmem>>, %arg9: memref<128x128xf32, #tpu.memory_space<vmem>>) attributes {dimension_semantics = [#tpu.dimension_semantics<parallel>, #tpu.dimension_semantics<parallel>], iteration_bounds = array<i64: 2, 2>, scalar_prefetch = 0 : i64, scratch_operands = 1 : i64, tpu.core_type = #tpu.core_type<tc>, window_params = [{transform_indices = @transform_0, window_bounds = array<i64: 1, 8, 18, 128>}, {transform_indices = @transform_1, window_bounds = array<i64: 1, 2, 18, 128>}, {pipeline_mode = #tpu.pipeline_mode<synchronous>, transform_indices = @transform_2, window_bounds = array<i64: 3, 3, 128>}, {pipeline_mode = #tpu.pipeline_mode<synchronous>, transform_indices = @transform_3, window_bounds = array<i64: 1, 128>}, {pipeline_mode = #tpu.pipeline_mode<synchronous>, transform_indices = @transform_4, window_bounds = array<i64: 128, 128>}, {pipeline_mode = #tpu.pipeline_mode<synchronous>, transform_indices = @transform_5, window_bounds = array<i64: 1, 128>}, {transform_indices = @transform_6, window_bounds = array<i64: 1, 128, 128>}]} {
    %c0 = arith.constant 0 : index
    %c0_0 = arith.constant 0 : index
    %c0_1 = arith.constant 0 : index
    %0 = vector.load %arg4[%c0, %c0_0, %c0_1] : memref<3x3x128xf32, #tpu.memory_space<vmem>>, vector<3x3x128xf32>
    %c0_2 = arith.constant 0 : index
    %c0_3 = arith.constant 0 : index
    %1 = vector.load %arg5[%c0_2, %c0_3] : memref<1x128xf32, #tpu.memory_space<vmem>>, vector<1x128xf32>
    %cst = arith.constant 0.000000e+00 : f32
    %2 = vector.broadcast %cst : f32 to vector<16x128xf32>
    %c0_4 = arith.constant 0 : index
    %c0_5 = arith.constant 0 : index
    %c0_6 = arith.constant 0 : index
    %c0_7 = arith.constant 0 : index
    %3 = vector.load %arg2[%c0_4, %c0_5, %c0_6, %c0_7] : memref<1x8x18x128xf32, #tpu.memory_space<vmem>>, vector<1x1x18x128xf32>
    %4 = vector.shape_cast %3 : vector<1x1x18x128xf32> to vector<18x128xf32>
    %5 = vector.extract_strided_slice %4 {offsets = [0, 0], sizes = [16, 128], strides = [1, 1]} : vector<18x128xf32> to vector<16x128xf32>
    %6 = vector.extract_strided_slice %0 {offsets = [0, 0, 0], sizes = [1, 1, 128], strides = [1, 1, 1]} : vector<3x3x128xf32> to vector<1x1x128xf32>
    %7 = vector.shape_cast %6 : vector<1x1x128xf32> to vector<128xf32>
    %8 = vector.shape_cast %7 : vector<128xf32> to vector<1x128xf32>
    %9 = vector.broadcast %8 : vector<1x128xf32> to vector<16x128xf32>
    %10 = arith.mulf %5, %9 : vector<16x128xf32>
    %11 = arith.addf %2, %10 : vector<16x128xf32>
    %12 = vector.extract_strided_slice %4 {offsets = [1, 0], sizes = [16, 128], strides = [1, 1]} : vector<18x128xf32> to vector<16x128xf32>
    %13 = vector.extract_strided_slice %0 {offsets = [0, 1, 0], sizes = [1, 1, 128], strides = [1, 1, 1]} : vector<3x3x128xf32> to vector<1x1x128xf32>
    %14 = vector.shape_cast %13 : vector<1x1x128xf32> to vector<128xf32>
    %15 = vector.shape_cast %14 : vector<128xf32> to vector<1x128xf32>
    %16 = vector.broadcast %15 : vector<1x128xf32> to vector<16x128xf32>
    %17 = arith.mulf %12, %16 : vector<16x128xf32>
    %18 = arith.addf %11, %17 : vector<16x128xf32>
    %19 = vector.extract_strided_slice %4 {offsets = [2, 0], sizes = [16, 128], strides = [1, 1]} : vector<18x128xf32> to vector<16x128xf32>
    %20 = vector.extract_strided_slice %0 {offsets = [0, 2, 0], sizes = [1, 1, 128], strides = [1, 1, 1]} : vector<3x3x128xf32> to vector<1x1x128xf32>
    %21 = vector.shape_cast %20 : vector<1x1x128xf32> to vector<128xf32>
    %22 = vector.shape_cast %21 : vector<128xf32> to vector<1x128xf32>
    %23 = vector.broadcast %22 : vector<1x128xf32> to vector<16x128xf32>
    %24 = arith.mulf %19, %23 : vector<16x128xf32>
    %25 = arith.addf %18, %24 : vector<16x128xf32>
    %c0_8 = arith.constant 0 : index
    %c1 = arith.constant 1 : index
    %c0_9 = arith.constant 0 : index
    %c0_10 = arith.constant 0 : index
    %26 = vector.load %arg2[%c0_8, %c1, %c0_9, %c0_10] : memref<1x8x18x128xf32, #tpu.memory_space<vmem>>, vector<1x1x18x128xf32>
    %27 = vector.shape_cast %26 : vector<1x1x18x128xf32> to vector<18x128xf32>
    %28 = vector.extract_strided_slice %27 {offsets = [0, 0], sizes = [16, 128], strides = [1, 1]} : vector<18x128xf32> to vector<16x128xf32>
    %29 = vector.extract_strided_slice %0 {offsets = [1, 0, 0], sizes = [1, 1, 128], strides = [1, 1, 1]} : vector<3x3x128xf32> to vector<1x1x128xf32>
    %30 = vector.shape_cast %29 : vector<1x1x128xf32> to vector<128xf32>
    %31 = vector.shape_cast %30 : vector<128xf32> to vector<1x128xf32>
    %32 = vector.broadcast %31 : vector<1x128xf32> to vector<16x128xf32>
    %33 = arith.mulf %28, %32 : vector<16x128xf32>
    %34 = arith.addf %25, %33 : vector<16x128xf32>
    %35 = vector.extract_strided_slice %27 {offsets = [1, 0], sizes = [16, 128], strides = [1, 1]} : vector<18x128xf32> to vector<16x128xf32>
    %36 = vector.extract_strided_slice %0 {offsets = [1, 1, 0], sizes = [1, 1, 128], strides = [1, 1, 1]} : vector<3x3x128xf32> to vector<1x1x128xf32>
    %37 = vector.shape_cast %36 : vector<1x1x128xf32> to vector<128xf32>
    %38 = vector.shape_cast %37 : vector<128xf32> to vector<1x128xf32>
    %39 = vector.broadcast %38 : vector<1x128xf32> to vector<16x128xf32>
    %40 = arith.mulf %35, %39 : vector<16x128xf32>
    %41 = arith.addf %34, %40 : vector<16x128xf32>
    %42 = vector.extract_strided_slice %27 {offsets = [2, 0], sizes = [16, 128], strides = [1, 1]} : vector<18x128xf32> to vector<16x128xf32>
    %43 = vector.extract_strided_slice %0 {offsets = [1, 2, 0], sizes = [1, 1, 128], strides = [1, 1, 1]} : vector<3x3x128xf32> to vector<1x1x128xf32>
    %44 = vector.shape_cast %43 : vector<1x1x128xf32> to vector<128xf32>
    %45 = vector.shape_cast %44 : vector<128xf32> to vector<1x128xf32>
    %46 = vector.broadcast %45 : vector<1x128xf32> to vector<16x128xf32>
    %47 = arith.mulf %42, %46 : vector<16x128xf32>
    %48 = arith.addf %41, %47 : vector<16x128xf32>
    %c0_11 = arith.constant 0 : index
    %c2 = arith.constant 2 : index
    %c0_12 = arith.constant 0 : index
    %c0_13 = arith.constant 0 : index
    %49 = vector.load %arg2[%c0_11, %c2, %c0_12, %c0_13] : memref<1x8x18x128xf32, #tpu.memory_space<vmem>>, vector<1x1x18x128xf32>
    %50 = vector.shape_cast %49 : vector<1x1x18x128xf32> to vector<18x128xf32>
    %51 = vector.extract_strided_slice %50 {offsets = [0, 0], sizes = [16, 128], strides = [1, 1]} : vector<18x128xf32> to vector<16x128xf32>
    %52 = vector.extract_strided_slice %0 {offsets = [2, 0, 0], sizes = [1, 1, 128], strides = [1, 1, 1]} : vector<3x3x128xf32> to vector<1x1x128xf32>
    %53 = vector.shape_cast %52 : vector<1x1x128xf32> to vector<128xf32>
    %54 = vector.shape_cast %53 : vector<128xf32> to vector<1x128xf32>
    %55 = vector.broadcast %54 : vector<1x128xf32> to vector<16x128xf32>
    %56 = arith.mulf %51, %55 : vector<16x128xf32>
    %57 = arith.addf %48, %56 : vector<16x128xf32>
    %58 = vector.extract_strided_slice %50 {offsets = [1, 0], sizes = [16, 128], strides = [1, 1]} : vector<18x128xf32> to vector<16x128xf32>
    %59 = vector.extract_strided_slice %0 {offsets = [2, 1, 0], sizes = [1, 1, 128], strides = [1, 1, 1]} : vector<3x3x128xf32> to vector<1x1x128xf32>
    %60 = vector.shape_cast %59 : vector<1x1x128xf32> to vector<128xf32>
    %61 = vector.shape_cast %60 : vector<128xf32> to vector<1x128xf32>
    %62 = vector.broadcast %61 : vector<1x128xf32> to vector<16x128xf32>
    %63 = arith.mulf %58, %62 : vector<16x128xf32>
    %64 = arith.addf %57, %63 : vector<16x128xf32>
    %65 = vector.extract_strided_slice %50 {offsets = [2, 0], sizes = [16, 128], strides = [1, 1]} : vector<18x128xf32> to vector<16x128xf32>
    %66 = vector.extract_strided_slice %0 {offsets = [2, 2, 0], sizes = [1, 1, 128], strides = [1, 1, 1]} : vector<3x3x128xf32> to vector<1x1x128xf32>
    %67 = vector.shape_cast %66 : vector<1x1x128xf32> to vector<128xf32>
    %68 = vector.shape_cast %67 : vector<128xf32> to vector<1x128xf32>
    %69 = vector.broadcast %68 : vector<1x128xf32> to vector<16x128xf32>
    %70 = arith.mulf %65, %69 : vector<16x128xf32>
    %71 = arith.addf %64, %70 : vector<16x128xf32>
    %72 = vector.broadcast %1 : vector<1x128xf32> to vector<16x128xf32>
    %73 = arith.addf %71, %72 : vector<16x128xf32>
    %cst_14 = arith.constant 0.000000e+00 : f32
    %74 = vector.broadcast %cst_14 : f32 to vector<16x128xf32>
    %75 = arith.maximumf %73, %74 : vector<16x128xf32>
    %c0_15 = arith.constant 0 : index
    %c0_16 = arith.constant 0 : index
    %76 = vector.load %arg9[%c0_15, %c0_16] : memref<128x128xf32, #tpu.memory_space<vmem>>, vector<16x128xf32>
    tpu.vector_store %arg9[%c0_15, %c0_16], %75 {strides = array<i32>} : memref<128x128xf32, #tpu.memory_space<vmem>>, vector<16x128xf32>,
    %cst_17 = arith.constant 0.000000e+00 : f32
    %77 = vector.broadcast %cst_17 : f32 to vector<16x128xf32>
    %c0_18 = arith.constant 0 : index
    %c1_19 = arith.constant 1 : index
    %c0_20 = arith.constant 0 : index
    %c0_21 = arith.constant 0 : index
    %78 = vector.load %arg2[%c0_18, %c1_19, %c0_20, %c0_21] : memref<1x8x18x128xf32, #tpu.memory_space<vmem>>, vector<1x1x18x128xf32>
    %79 = vector.shape_cast %78 : vector<1x1x18x128xf32> to vector<18x128xf32>
    %80 = vector.extract_strided_slice %79 {offsets = [0, 0], sizes = [16, 128], strides = [1, 1]} : vector<18x128xf32> to vector<16x128xf32>
    %81 = vector.extract_strided_slice %0 {offsets = [0, 0, 0], sizes = [1, 1, 128], strides = [1, 1, 1]} : vector<3x3x128xf32> to vector<1x1x128xf32>
    %82 = vector.shape_cast %81 : vector<1x1x128xf32> to vector<128xf32>
    %83 = vector.shape_cast %82 : vector<128xf32> to vector<1x128xf32>
    %84 = vector.broadcast %83 : vector<1x128xf32> to vector<16x128xf32>
    %85 = arith.mulf %80, %84 : vector<16x128xf32>
    %86 = arith.addf %77, %85 : vector<16x128xf32>
    %87 = vector.extract_strided_slice %79 {offsets = [1, 0], sizes = [16, 128], strides = [1, 1]} : vector<18x128xf32> to vector<16x128xf32>
    %88 = vector.extract_strided_slice %0 {offsets = [0, 1, 0], sizes = [1, 1, 128], strides = [1, 1, 1]} : vector<3x3x128xf32> to vector<1x1x128xf32>
    %89 = vector.shape_cast %88 : vector<1x1x128xf32> to vector<128xf32>
    %90 = vector.shape_cast %89 : vector<128xf32> to vector<1x128xf32>
    %91 = vector.broadcast %90 : vector<1x128xf32> to vector<16x128xf32>
    %92 = arith.mulf %87, %91 : vector<16x128xf32>
    %93 = arith.addf %86, %92 : vector<16x128xf32>
    %94 = vector.extract_strided_slice %79 {offsets = [2, 0], sizes = [16, 128], strides = [1, 1]} : vector<18x128xf32> to vector<16x128xf32>
    %95 = vector.extract_strided_slice %0 {offsets = [0, 2, 0], sizes = [1, 1, 128], strides = [1, 1, 1]} : vector<3x3x128xf32> to vector<1x1x128xf32>
    %96 = vector.shape_cast %95 : vector<1x1x128xf32> to vector<128xf32>
    %97 = vector.shape_cast %96 : vector<128xf32> to vector<1x128xf32>
    %98 = vector.broadcast %97 : vector<1x128xf32> to vector<16x128xf32>
    %99 = arith.mulf %94, %98 : vector<16x128xf32>
    %100 = arith.addf %93, %99 : vector<16x128xf32>
    %c0_22 = arith.constant 0 : index
    %c2_23 = arith.constant 2 : index
    %c0_24 = arith.constant 0 : index
    %c0_25 = arith.constant 0 : index
    %101 = vector.load %arg2[%c0_22, %c2_23, %c0_24, %c0_25] : memref<1x8x18x128xf32, #tpu.memory_space<vmem>>, vector<1x1x18x128xf32>
    %102 = vector.shape_cast %101 : vector<1x1x18x128xf32> to vector<18x128xf32>
    %103 = vector.extract_strided_slice %102 {offsets = [0, 0], sizes = [16, 128], strides = [1, 1]} : vector<18x128xf32> to vector<16x128xf32>
    %104 = vector.extract_strided_slice %0 {offsets = [1, 0, 0], sizes = [1, 1, 128], strides = [1, 1, 1]} : vector<3x3x128xf32> to vector<1x1x128xf32>
    %105 = vector.shape_cast %104 : vector<1x1x128xf32> to vector<128xf32>
    %106 = vector.shape_cast %105 : vector<128xf32> to vector<1x128xf32>
    %107 = vector.broadcast %106 : vector<1x128xf32> to vector<16x128xf32>
    %108 = arith.mulf %103, %107 : vector<16x128xf32>
    %109 = arith.addf %100, %108 : vector<16x128xf32>
    %110 = vector.extract_strided_slice %102 {offsets = [1, 0], sizes = [16, 128], strides = [1, 1]} : vector<18x128xf32> to vector<16x128xf32>
    %111 = vector.extract_strided_slice %0 {offsets = [1, 1, 0], sizes = [1, 1, 128], strides = [1, 1, 1]} : vector<3x3x128xf32> to vector<1x1x128xf32>
    %112 = vector.shape_cast %111 : vector<1x1x128xf32> to vector<128xf32>
    %113 = vector.shape_cast %112 : vector<128xf32> to vector<1x128xf32>
    %114 = vector.broadcast %113 : vector<1x128xf32> to vector<16x128xf32>
    %115 = arith.mulf %110, %114 : vector<16x128xf32>
    %116 = arith.addf %109, %115 : vector<16x128xf32>
    %117 = vector.extract_strided_slice %102 {offsets = [2, 0], sizes = [16, 128], strides = [1, 1]} : vector<18x128xf32> to vector<16x128xf32>
    %118 = vector.extract_strided_slice %0 {offsets = [1, 2, 0], sizes = [1, 1, 128], strides = [1, 1, 1]} : vector<3x3x128xf32> to vector<1x1x128xf32>
    %119 = vector.shape_cast %118 : vector<1x1x128xf32> to vector<128xf32>
    %120 = vector.shape_cast %119 : vector<128xf32> to vector<1x128xf32>
    %121 = vector.broadcast %120 : vector<1x128xf32> to vector<16x128xf32>
    %122 = arith.mulf %117, %121 : vector<16x128xf32>
    %123 = arith.addf %116, %122 : vector<16x128xf32>
    %c0_26 = arith.constant 0 : index
    %c3 = arith.constant 3 : index
    %c0_27 = arith.constant 0 : index
    %c0_28 = arith.constant 0 : index
    %124 = vector.load %arg2[%c0_26, %c3, %c0_27, %c0_28] : memref<1x8x18x128xf32, #tpu.memory_space<vmem>>, vector<1x1x18x128xf32>
    %125 = vector.shape_cast %124 : vector<1x1x18x128xf32> to vector<18x128xf32>
    %126 = vector.extract_strided_slice %125 {offsets = [0, 0], sizes = [16, 128], strides = [1, 1]} : vector<18x128xf32> to vector<16x128xf32>
    %127 = vector.extract_strided_slice %0 {offsets = [2, 0, 0], sizes = [1, 1, 128], strides = [1, 1, 1]} : vector<3x3x128xf32> to vector<1x1x128xf32>
    %128 = vector.shape_cast %127 : vector<1x1x128xf32> to vector<128xf32>
    %129 = vector.shape_cast %128 : vector<128xf32> to vector<1x128xf32>
    %130 = vector.broadcast %129 : vector<1x128xf32> to vector<16x128xf32>
    %131 = arith.mulf %126, %130 : vector<16x128xf32>
    %132 = arith.addf %123, %131 : vector<16x128xf32>
    %133 = vector.extract_strided_slice %125 {offsets = [1, 0], sizes = [16, 128], strides = [1, 1]} : vector<18x128xf32> to vector<16x128xf32>
    %134 = vector.extract_strided_slice %0 {offsets = [2, 1, 0], sizes = [1, 1, 128], strides = [1, 1, 1]} : vector<3x3x128xf32> to vector<1x1x128xf32>
    %135 = vector.shape_cast %134 : vector<1x1x128xf32> to vector<128xf32>
    %136 = vector.shape_cast %135 : vector<128xf32> to vector<1x128xf32>
    %137 = vector.broadcast %136 : vector<1x128xf32> to vector<16x128xf32>
    %138 = arith.mulf %133, %137 : vector<16x128xf32>
    %139 = arith.addf %132, %138 : vector<16x128xf32>
    %140 = vector.extract_strided_slice %125 {offsets = [2, 0], sizes = [16, 128], strides = [1, 1]} : vector<18x128xf32> to vector<16x128xf32>
    %141 = vector.extract_strided_slice %0 {offsets = [2, 2, 0], sizes = [1, 1, 128], strides = [1, 1, 1]} : vector<3x3x128xf32> to vector<1x1x128xf32>
    %142 = vector.shape_cast %141 : vector<1x1x128xf32> to vector<128xf32>
    %143 = vector.shape_cast %142 : vector<128xf32> to vector<1x128xf32>
    %144 = vector.broadcast %143 : vector<1x128xf32> to vector<16x128xf32>
    %145 = arith.mulf %140, %144 : vector<16x128xf32>
    %146 = arith.addf %139, %145 : vector<16x128xf32>
    %147 = vector.broadcast %1 : vector<1x128xf32> to vector<16x128xf32>
    %148 = arith.addf %146, %147 : vector<16x128xf32>
    %cst_29 = arith.constant 0.000000e+00 : f32
    %149 = vector.broadcast %cst_29 : f32 to vector<16x128xf32>
    %150 = arith.maximumf %148, %149 : vector<16x128xf32>
    %c16 = arith.constant 16 : index
    %c0_30 = arith.constant 0 : index
    %151 = vector.load %arg9[%c16, %c0_30] : memref<128x128xf32, #tpu.memory_space<vmem>>, vector<16x128xf32>
    tpu.vector_store %arg9[%c16, %c0_30], %150 {strides = array<i32>} : memref<128x128xf32, #tpu.memory_space<vmem>>, vector<16x128xf32>,
    %cst_31 = arith.constant 0.000000e+00 : f32
    %152 = vector.broadcast %cst_31 : f32 to vector<16x128xf32>
    %c0_32 = arith.constant 0 : index
    %c2_33 = arith.constant 2 : index
    %c0_34 = arith.constant 0 : index
    %c0_35 = arith.constant 0 : index
    %153 = vector.load %arg2[%c0_32, %c2_33, %c0_34, %c0_35] : memref<1x8x18x128xf32, #tpu.memory_space<vmem>>, vector<1x1x18x128xf32>
    %154 = vector.shape_cast %153 : vector<1x1x18x128xf32> to vector<18x128xf32>
    %155 = vector.extract_strided_slice %154 {offsets = [0, 0], sizes = [16, 128], strides = [1, 1]} : vector<18x128xf32> to vector<16x128xf32>
    %156 = vector.extract_strided_slice %0 {offsets = [0, 0, 0], sizes = [1, 1, 128], strides = [1, 1, 1]} : vector<3x3x128xf32> to vector<1x1x128xf32>
    %157 = vector.shape_cast %156 : vector<1x1x128xf32> to vector<128xf32>
    %158 = vector.shape_cast %157 : vector<128xf32> to vector<1x128xf32>
    %159 = vector.broadcast %158 : vector<1x128xf32> to vector<16x128xf32>
    %160 = arith.mulf %155, %159 : vector<16x128xf32>
    %161 = arith.addf %152, %160 : vector<16x128xf32>
    %162 = vector.extract_strided_slice %154 {offsets = [1, 0], sizes = [16, 128], strides = [1, 1]} : vector<18x128xf32> to vector<16x128xf32>
    %163 = vector.extract_strided_slice %0 {offsets = [0, 1, 0], sizes = [1, 1, 128], strides = [1, 1, 1]} : vector<3x3x128xf32> to vector<1x1x128xf32>
    %164 = vector.shape_cast %163 : vector<1x1x128xf32> to vector<128xf32>
    %165 = vector.shape_cast %164 : vector<128xf32> to vector<1x128xf32>
    %166 = vector.broadcast %165 : vector<1x128xf32> to vector<16x128xf32>
    %167 = arith.mulf %162, %166 : vector<16x128xf32>
    %168 = arith.addf %161, %167 : vector<16x128xf32>
    %169 = vector.extract_strided_slice %154 {offsets = [2, 0], sizes = [16, 128], strides = [1, 1]} : vector<18x128xf32> to vector<16x128xf32>
    %170 = vector.extract_strided_slice %0 {offsets = [0, 2, 0], sizes = [1, 1, 128], strides = [1, 1, 1]} : vector<3x3x128xf32> to vector<1x1x128xf32>
    %171 = vector.shape_cast %170 : vector<1x1x128xf32> to vector<128xf32>
    %172 = vector.shape_cast %171 : vector<128xf32> to vector<1x128xf32>
    %173 = vector.broadcast %172 : vector<1x128xf32> to vector<16x128xf32>
    %174 = arith.mulf %169, %173 : vector<16x128xf32>
    %175 = arith.addf %168, %174 : vector<16x128xf32>
    %c0_36 = arith.constant 0 : index
    %c3_37 = arith.constant 3 : index
    %c0_38 = arith.constant 0 : index
    %c0_39 = arith.constant 0 : index
    %176 = vector.load %arg2[%c0_36, %c3_37, %c0_38, %c0_39] : memref<1x8x18x128xf32, #tpu.memory_space<vmem>>, vector<1x1x18x128xf32>
    %177 = vector.shape_cast %176 : vector<1x1x18x128xf32> to vector<18x128xf32>
    %178 = vector.extract_strided_slice %177 {offsets = [0, 0], sizes = [16, 128], strides = [1, 1]} : vector<18x128xf32> to vector<16x128xf32>
    %179 = vector.extract_strided_slice %0 {offsets = [1, 0, 0], sizes = [1, 1, 128], strides = [1, 1, 1]} : vector<3x3x128xf32> to vector<1x1x128xf32>
    %180 = vector.shape_cast %179 : vector<1x1x128xf32> to vector<128xf32>
    %181 = vector.shape_cast %180 : vector<128xf32> to vector<1x128xf32>
    %182 = vector.broadcast %181 : vector<1x128xf32> to vector<16x128xf32>
    %183 = arith.mulf %178, %182 : vector<16x128xf32>
    %184 = arith.addf %175, %183 : vector<16x128xf32>
    %185 = vector.extract_strided_slice %177 {offsets = [1, 0], sizes = [16, 128], strides = [1, 1]} : vector<18x128xf32> to vector<16x128xf32>
    %186 = vector.extract_strided_slice %0 {offsets = [1, 1, 0], sizes = [1, 1, 128], strides = [1, 1, 1]} : vector<3x3x128xf32> to vector<1x1x128xf32>
    %187 = vector.shape_cast %186 : vector<1x1x128xf32> to vector<128xf32>
    %188 = vector.shape_cast %187 : vector<128xf32> to vector<1x128xf32>
    %189 = vector.broadcast %188 : vector<1x128xf32> to vector<16x128xf32>
    %190 = arith.mulf %185, %189 : vector<16x128xf32>
    %191 = arith.addf %184, %190 : vector<16x128xf32>
    %192 = vector.extract_strided_slice %177 {offsets = [2, 0], sizes = [16, 128], strides = [1, 1]} : vector<18x128xf32> to vector<16x128xf32>
    %193 = vector.extract_strided_slice %0 {offsets = [1, 2, 0], sizes = [1, 1, 128], strides = [1, 1, 1]} : vector<3x3x128xf32> to vector<1x1x128xf32>
    %194 = vector.shape_cast %193 : vector<1x1x128xf32> to vector<128xf32>
    %195 = vector.shape_cast %194 : vector<128xf32> to vector<1x128xf32>
    %196 = vector.broadcast %195 : vector<1x128xf32> to vector<16x128xf32>
    %197 = arith.mulf %192, %196 : vector<16x128xf32>
    %198 = arith.addf %191, %197 : vector<16x128xf32>
    %c0_40 = arith.constant 0 : index
    %c4 = arith.constant 4 : index
    %c0_41 = arith.constant 0 : index
    %c0_42 = arith.constant 0 : index
    %199 = vector.load %arg2[%c0_40, %c4, %c0_41, %c0_42] : memref<1x8x18x128xf32, #tpu.memory_space<vmem>>, vector<1x1x18x128xf32>
    %200 = vector.shape_cast %199 : vector<1x1x18x128xf32> to vector<18x128xf32>
    %201 = vector.extract_strided_slice %200 {offsets = [0, 0], sizes = [16, 128], strides = [1, 1]} : vector<18x128xf32> to vector<16x128xf32>
    %202 = vector.extract_strided_slice %0 {offsets = [2, 0, 0], sizes = [1, 1, 128], strides = [1, 1, 1]} : vector<3x3x128xf32> to vector<1x1x128xf32>
    %203 = vector.shape_cast %202 : vector<1x1x128xf32> to vector<128xf32>
    %204 = vector.shape_cast %203 : vector<128xf32> to vector<1x128xf32>
    %205 = vector.broadcast %204 : vector<1x128xf32> to vector<16x128xf32>
    %206 = arith.mulf %201, %205 : vector<16x128xf32>
    %207 = arith.addf %198, %206 : vector<16x128xf32>
    %208 = vector.extract_strided_slice %200 {offsets = [1, 0], sizes = [16, 128], strides = [1, 1]} : vector<18x128xf32> to vector<16x128xf32>
    %209 = vector.extract_strided_slice %0 {offsets = [2, 1, 0], sizes = [1, 1, 128], strides = [1, 1, 1]} : vector<3x3x128xf32> to vector<1x1x128xf32>
    %210 = vector.shape_cast %209 : vector<1x1x128xf32> to vector<128xf32>
    %211 = vector.shape_cast %210 : vector<128xf32> to vector<1x128xf32>
    %212 = vector.broadcast %211 : vector<1x128xf32> to vector<16x128xf32>
    %213 = arith.mulf %208, %212 : vector<16x128xf32>
    %214 = arith.addf %207, %213 : vector<16x128xf32>
    %215 = vector.extract_strided_slice %200 {offsets = [2, 0], sizes = [16, 128], strides = [1, 1]} : vector<18x128xf32> to vector<16x128xf32>
    %216 = vector.extract_strided_slice %0 {offsets = [2, 2, 0], sizes = [1, 1, 128], strides = [1, 1, 1]} : vector<3x3x128xf32> to vector<1x1x128xf32>
    %217 = vector.shape_cast %216 : vector<1x1x128xf32> to vector<128xf32>
    %218 = vector.shape_cast %217 : vector<128xf32> to vector<1x128xf32>
    %219 = vector.broadcast %218 : vector<1x128xf32> to vector<16x128xf32>
    %220 = arith.mulf %215, %219 : vector<16x128xf32>
    %221 = arith.addf %214, %220 : vector<16x128xf32>
    %222 = vector.broadcast %1 : vector<1x128xf32> to vector<16x128xf32>
    %223 = arith.addf %221, %222 : vector<16x128xf32>
    %cst_43 = arith.constant 0.000000e+00 : f32
    %224 = vector.broadcast %cst_43 : f32 to vector<16x128xf32>
    %225 = arith.maximumf %223, %224 : vector<16x128xf32>
    %c32 = arith.constant 32 : index
    %c0_44 = arith.constant 0 : index
    %226 = vector.load %arg9[%c32, %c0_44] : memref<128x128xf32, #tpu.memory_space<vmem>>, vector<16x128xf32>
    tpu.vector_store %arg9[%c32, %c0_44], %225 {strides = array<i32>} : memref<128x128xf32, #tpu.memory_space<vmem>>, vector<16x128xf32>,
    %cst_45 = arith.constant 0.000000e+00 : f32
    %227 = vector.broadcast %cst_45 : f32 to vector<16x128xf32>
    %c0_46 = arith.constant 0 : index
    %c3_47 = arith.constant 3 : index
    %c0_48 = arith.constant 0 : index
    %c0_49 = arith.constant 0 : index
    %228 = vector.load %arg2[%c0_46, %c3_47, %c0_48, %c0_49] : memref<1x8x18x128xf32, #tpu.memory_space<vmem>>, vector<1x1x18x128xf32>
    %229 = vector.shape_cast %228 : vector<1x1x18x128xf32> to vector<18x128xf32>
    %230 = vector.extract_strided_slice %229 {offsets = [0, 0], sizes = [16, 128], strides = [1, 1]} : vector<18x128xf32> to vector<16x128xf32>
    %231 = vector.extract_strided_slice %0 {offsets = [0, 0, 0], sizes = [1, 1, 128], strides = [1, 1, 1]} : vector<3x3x128xf32> to vector<1x1x128xf32>
    %232 = vector.shape_cast %231 : vector<1x1x128xf32> to vector<128xf32>
    %233 = vector.shape_cast %232 : vector<128xf32> to vector<1x128xf32>
    %234 = vector.broadcast %233 : vector<1x128xf32> to vector<16x128xf32>
    %235 = arith.mulf %230, %234 : vector<16x128xf32>
    %236 = arith.addf %227, %235 : vector<16x128xf32>
    %237 = vector.extract_strided_slice %229 {offsets = [1, 0], sizes = [16, 128], strides = [1, 1]} : vector<18x128xf32> to vector<16x128xf32>
    %238 = vector.extract_strided_slice %0 {offsets = [0, 1, 0], sizes = [1, 1, 128], strides = [1, 1, 1]} : vector<3x3x128xf32> to vector<1x1x128xf32>
    %239 = vector.shape_cast %238 : vector<1x1x128xf32> to vector<128xf32>
    %240 = vector.shape_cast %239 : vector<128xf32> to vector<1x128xf32>
    %241 = vector.broadcast %240 : vector<1x128xf32> to vector<16x128xf32>
    %242 = arith.mulf %237, %241 : vector<16x128xf32>
    %243 = arith.addf %236, %242 : vector<16x128xf32>
    %244 = vector.extract_strided_slice %229 {offsets = [2, 0], sizes = [16, 128], strides = [1, 1]} : vector<18x128xf32> to vector<16x128xf32>
    %245 = vector.extract_strided_slice %0 {offsets = [0, 2, 0], sizes = [1, 1, 128], strides = [1, 1, 1]} : vector<3x3x128xf32> to vector<1x1x128xf32>
    %246 = vector.shape_cast %245 : vector<1x1x128xf32> to vector<128xf32>
    %247 = vector.shape_cast %246 : vector<128xf32> to vector<1x128xf32>
    %248 = vector.broadcast %247 : vector<1x128xf32> to vector<16x128xf32>
    %249 = arith.mulf %244, %248 : vector<16x128xf32>
    %250 = arith.addf %243, %249 : vector<16x128xf32>
    %c0_50 = arith.constant 0 : index
    %c4_51 = arith.constant 4 : index
    %c0_52 = arith.constant 0 : index
    %c0_53 = arith.constant 0 : index
    %251 = vector.load %arg2[%c0_50, %c4_51, %c0_52, %c0_53] : memref<1x8x18x128xf32, #tpu.memory_space<vmem>>, vector<1x1x18x128xf32>
    %252 = vector.shape_cast %251 : vector<1x1x18x128xf32> to vector<18x128xf32>
    %253 = vector.extract_strided_slice %252 {offsets = [0, 0], sizes = [16, 128], strides = [1, 1]} : vector<18x128xf32> to vector<16x128xf32>
    %254 = vector.extract_strided_slice %0 {offsets = [1, 0, 0], sizes = [1, 1, 128], strides = [1, 1, 1]} : vector<3x3x128xf32> to vector<1x1x128xf32>
    %255 = vector.shape_cast %254 : vector<1x1x128xf32> to vector<128xf32>
    %256 = vector.shape_cast %255 : vector<128xf32> to vector<1x128xf32>
    %257 = vector.broadcast %256 : vector<1x128xf32> to vector<16x128xf32>
    %258 = arith.mulf %253, %257 : vector<16x128xf32>
    %259 = arith.addf %250, %258 : vector<16x128xf32>
    %260 = vector.extract_strided_slice %252 {offsets = [1, 0], sizes = [16, 128], strides = [1, 1]} : vector<18x128xf32> to vector<16x128xf32>
    %261 = vector.extract_strided_slice %0 {offsets = [1, 1, 0], sizes = [1, 1, 128], strides = [1, 1, 1]} : vector<3x3x128xf32> to vector<1x1x128xf32>
    %262 = vector.shape_cast %261 : vector<1x1x128xf32> to vector<128xf32>
    %263 = vector.shape_cast %262 : vector<128xf32> to vector<1x128xf32>
    %264 = vector.broadcast %263 : vector<1x128xf32> to vector<16x128xf32>
    %265 = arith.mulf %260, %264 : vector<16x128xf32>
    %266 = arith.addf %259, %265 : vector<16x128xf32>
    %267 = vector.extract_strided_slice %252 {offsets = [2, 0], sizes = [16, 128], strides = [1, 1]} : vector<18x128xf32> to vector<16x128xf32>
    %268 = vector.extract_strided_slice %0 {offsets = [1, 2, 0], sizes = [1, 1, 128], strides = [1, 1, 1]} : vector<3x3x128xf32> to vector<1x1x128xf32>
    %269 = vector.shape_cast %268 : vector<1x1x128xf32> to vector<128xf32>
    %270 = vector.shape_cast %269 : vector<128xf32> to vector<1x128xf32>
    %271 = vector.broadcast %270 : vector<1x128xf32> to vector<16x128xf32>
    %272 = arith.mulf %267, %271 : vector<16x128xf32>
    %273 = arith.addf %266, %272 : vector<16x128xf32>
    %c0_54 = arith.constant 0 : index
    %c5 = arith.constant 5 : index
    %c0_55 = arith.constant 0 : index
    %c0_56 = arith.constant 0 : index
    %274 = vector.load %arg2[%c0_54, %c5, %c0_55, %c0_56] : memref<1x8x18x128xf32, #tpu.memory_space<vmem>>, vector<1x1x18x128xf32>
    %275 = vector.shape_cast %274 : vector<1x1x18x128xf32> to vector<18x128xf32>
    %276 = vector.extract_strided_slice %275 {offsets = [0, 0], sizes = [16, 128], strides = [1, 1]} : vector<18x128xf32> to vector<16x128xf32>
    %277 = vector.extract_strided_slice %0 {offsets = [2, 0, 0], sizes = [1, 1, 128], strides = [1, 1, 1]} : vector<3x3x128xf32> to vector<1x1x128xf32>
    %278 = vector.shape_cast %277 : vector<1x1x128xf32> to vector<128xf32>
    %279 = vector.shape_cast %278 : vector<128xf32> to vector<1x128xf32>
    %280 = vector.broadcast %279 : vector<1x128xf32> to vector<16x128xf32>
    %281 = arith.mulf %276, %280 : vector<16x128xf32>
    %282 = arith.addf %273, %281 : vector<16x128xf32>
    %283 = vector.extract_strided_slice %275 {offsets = [1, 0], sizes = [16, 128], strides = [1, 1]} : vector<18x128xf32> to vector<16x128xf32>
    %284 = vector.extract_strided_slice %0 {offsets = [2, 1, 0], sizes = [1, 1, 128], strides = [1, 1, 1]} : vector<3x3x128xf32> to vector<1x1x128xf32>
    %285 = vector.shape_cast %284 : vector<1x1x128xf32> to vector<128xf32>
    %286 = vector.shape_cast %285 : vector<128xf32> to vector<1x128xf32>
    %287 = vector.broadcast %286 : vector<1x128xf32> to vector<16x128xf32>
    %288 = arith.mulf %283, %287 : vector<16x128xf32>
    %289 = arith.addf %282, %288 : vector<16x128xf32>
    %290 = vector.extract_strided_slice %275 {offsets = [2, 0], sizes = [16, 128], strides = [1, 1]} : vector<18x128xf32> to vector<16x128xf32>
    %291 = vector.extract_strided_slice %0 {offsets = [2, 2, 0], sizes = [1, 1, 128], strides = [1, 1, 1]} : vector<3x3x128xf32> to vector<1x1x128xf32>
    %292 = vector.shape_cast %291 : vector<1x1x128xf32> to vector<128xf32>
    %293 = vector.shape_cast %292 : vector<128xf32> to vector<1x128xf32>
    %294 = vector.broadcast %293 : vector<1x128xf32> to vector<16x128xf32>
    %295 = arith.mulf %290, %294 : vector<16x128xf32>
    %296 = arith.addf %289, %295 : vector<16x128xf32>
    %297 = vector.broadcast %1 : vector<1x128xf32> to vector<16x128xf32>
    %298 = arith.addf %296, %297 : vector<16x128xf32>
    %cst_57 = arith.constant 0.000000e+00 : f32
    %299 = vector.broadcast %cst_57 : f32 to vector<16x128xf32>
    %300 = arith.maximumf %298, %299 : vector<16x128xf32>
    %c48 = arith.constant 48 : index
    %c0_58 = arith.constant 0 : index
    %301 = vector.load %arg9[%c48, %c0_58] : memref<128x128xf32, #tpu.memory_space<vmem>>, vector<16x128xf32>
    tpu.vector_store %arg9[%c48, %c0_58], %300 {strides = array<i32>} : memref<128x128xf32, #tpu.memory_space<vmem>>, vector<16x128xf32>,
    %cst_59 = arith.constant 0.000000e+00 : f32
    %302 = vector.broadcast %cst_59 : f32 to vector<16x128xf32>
    %c0_60 = arith.constant 0 : index
    %c4_61 = arith.constant 4 : index
    %c0_62 = arith.constant 0 : index
    %c0_63 = arith.constant 0 : index
    %303 = vector.load %arg2[%c0_60, %c4_61, %c0_62, %c0_63] : memref<1x8x18x128xf32, #tpu.memory_space<vmem>>, vector<1x1x18x128xf32>
    %304 = vector.shape_cast %303 : vector<1x1x18x128xf32> to vector<18x128xf32>
    %305 = vector.extract_strided_slice %304 {offsets = [0, 0], sizes = [16, 128], strides = [1, 1]} : vector<18x128xf32> to vector<16x128xf32>
    %306 = vector.extract_strided_slice %0 {offsets = [0, 0, 0], sizes = [1, 1, 128], strides = [1, 1, 1]} : vector<3x3x128xf32> to vector<1x1x128xf32>
    %307 = vector.shape_cast %306 : vector<1x1x128xf32> to vector<128xf32>
    %308 = vector.shape_cast %307 : vector<128xf32> to vector<1x128xf32>
    %309 = vector.broadcast %308 : vector<1x128xf32> to vector<16x128xf32>
    %310 = arith.mulf %305, %309 : vector<16x128xf32>
    %311 = arith.addf %302, %310 : vector<16x128xf32>
    %312 = vector.extract_strided_slice %304 {offsets = [1, 0], sizes = [16, 128], strides = [1, 1]} : vector<18x128xf32> to vector<16x128xf32>
    %313 = vector.extract_strided_slice %0 {offsets = [0, 1, 0], sizes = [1, 1, 128], strides = [1, 1, 1]} : vector<3x3x128xf32> to vector<1x1x128xf32>
    %314 = vector.shape_cast %313 : vector<1x1x128xf32> to vector<128xf32>
    %315 = vector.shape_cast %314 : vector<128xf32> to vector<1x128xf32>
    %316 = vector.broadcast %315 : vector<1x128xf32> to vector<16x128xf32>
    %317 = arith.mulf %312, %316 : vector<16x128xf32>
    %318 = arith.addf %311, %317 : vector<16x128xf32>
    %319 = vector.extract_strided_slice %304 {offsets = [2, 0], sizes = [16, 128], strides = [1, 1]} : vector<18x128xf32> to vector<16x128xf32>
    %320 = vector.extract_strided_slice %0 {offsets = [0, 2, 0], sizes = [1, 1, 128], strides = [1, 1, 1]} : vector<3x3x128xf32> to vector<1x1x128xf32>
    %321 = vector.shape_cast %320 : vector<1x1x128xf32> to vector<128xf32>
    %322 = vector.shape_cast %321 : vector<128xf32> to vector<1x128xf32>
    %323 = vector.broadcast %322 : vector<1x128xf32> to vector<16x128xf32>
    %324 = arith.mulf %319, %323 : vector<16x128xf32>
    %325 = arith.addf %318, %324 : vector<16x128xf32>
    %c0_64 = arith.constant 0 : index
    %c5_65 = arith.constant 5 : index
    %c0_66 = arith.constant 0 : index
    %c0_67 = arith.constant 0 : index
    %326 = vector.load %arg2[%c0_64, %c5_65, %c0_66, %c0_67] : memref<1x8x18x128xf32, #tpu.memory_space<vmem>>, vector<1x1x18x128xf32>
    %327 = vector.shape_cast %326 : vector<1x1x18x128xf32> to vector<18x128xf32>
    %328 = vector.extract_strided_slice %327 {offsets = [0, 0], sizes = [16, 128], strides = [1, 1]} : vector<18x128xf32> to vector<16x128xf32>
    %329 = vector.extract_strided_slice %0 {offsets = [1, 0, 0], sizes = [1, 1, 128], strides = [1, 1, 1]} : vector<3x3x128xf32> to vector<1x1x128xf32>
    %330 = vector.shape_cast %329 : vector<1x1x128xf32> to vector<128xf32>
    %331 = vector.shape_cast %330 : vector<128xf32> to vector<1x128xf32>
    %332 = vector.broadcast %331 : vector<1x128xf32> to vector<16x128xf32>
    %333 = arith.mulf %328, %332 : vector<16x128xf32>
    %334 = arith.addf %325, %333 : vector<16x128xf32>
    %335 = vector.extract_strided_slice %327 {offsets = [1, 0], sizes = [16, 128], strides = [1, 1]} : vector<18x128xf32> to vector<16x128xf32>
    %336 = vector.extract_strided_slice %0 {offsets = [1, 1, 0], sizes = [1, 1, 128], strides = [1, 1, 1]} : vector<3x3x128xf32> to vector<1x1x128xf32>
    %337 = vector.shape_cast %336 : vector<1x1x128xf32> to vector<128xf32>
    %338 = vector.shape_cast %337 : vector<128xf32> to vector<1x128xf32>
    %339 = vector.broadcast %338 : vector<1x128xf32> to vector<16x128xf32>
    %340 = arith.mulf %335, %339 : vector<16x128xf32>
    %341 = arith.addf %334, %340 : vector<16x128xf32>
    %342 = vector.extract_strided_slice %327 {offsets = [2, 0], sizes = [16, 128], strides = [1, 1]} : vector<18x128xf32> to vector<16x128xf32>
    %343 = vector.extract_strided_slice %0 {offsets = [1, 2, 0], sizes = [1, 1, 128], strides = [1, 1, 1]} : vector<3x3x128xf32> to vector<1x1x128xf32>
    %344 = vector.shape_cast %343 : vector<1x1x128xf32> to vector<128xf32>
    %345 = vector.shape_cast %344 : vector<128xf32> to vector<1x128xf32>
    %346 = vector.broadcast %345 : vector<1x128xf32> to vector<16x128xf32>
    %347 = arith.mulf %342, %346 : vector<16x128xf32>
    %348 = arith.addf %341, %347 : vector<16x128xf32>
    %c0_68 = arith.constant 0 : index
    %c6 = arith.constant 6 : index
    %c0_69 = arith.constant 0 : index
    %c0_70 = arith.constant 0 : index
    %349 = vector.load %arg2[%c0_68, %c6, %c0_69, %c0_70] : memref<1x8x18x128xf32, #tpu.memory_space<vmem>>, vector<1x1x18x128xf32>
    %350 = vector.shape_cast %349 : vector<1x1x18x128xf32> to vector<18x128xf32>
    %351 = vector.extract_strided_slice %350 {offsets = [0, 0], sizes = [16, 128], strides = [1, 1]} : vector<18x128xf32> to vector<16x128xf32>
    %352 = vector.extract_strided_slice %0 {offsets = [2, 0, 0], sizes = [1, 1, 128], strides = [1, 1, 1]} : vector<3x3x128xf32> to vector<1x1x128xf32>
    %353 = vector.shape_cast %352 : vector<1x1x128xf32> to vector<128xf32>
    %354 = vector.shape_cast %353 : vector<128xf32> to vector<1x128xf32>
    %355 = vector.broadcast %354 : vector<1x128xf32> to vector<16x128xf32>
    %356 = arith.mulf %351, %355 : vector<16x128xf32>
    %357 = arith.addf %348, %356 : vector<16x128xf32>
    %358 = vector.extract_strided_slice %350 {offsets = [1, 0], sizes = [16, 128], strides = [1, 1]} : vector<18x128xf32> to vector<16x128xf32>
    %359 = vector.extract_strided_slice %0 {offsets = [2, 1, 0], sizes = [1, 1, 128], strides = [1, 1, 1]} : vector<3x3x128xf32> to vector<1x1x128xf32>
    %360 = vector.shape_cast %359 : vector<1x1x128xf32> to vector<128xf32>
    %361 = vector.shape_cast %360 : vector<128xf32> to vector<1x128xf32>
    %362 = vector.broadcast %361 : vector<1x128xf32> to vector<16x128xf32>
    %363 = arith.mulf %358, %362 : vector<16x128xf32>
    %364 = arith.addf %357, %363 : vector<16x128xf32>
    %365 = vector.extract_strided_slice %350 {offsets = [2, 0], sizes = [16, 128], strides = [1, 1]} : vector<18x128xf32> to vector<16x128xf32>
    %366 = vector.extract_strided_slice %0 {offsets = [2, 2, 0], sizes = [1, 1, 128], strides = [1, 1, 1]} : vector<3x3x128xf32> to vector<1x1x128xf32>
    %367 = vector.shape_cast %366 : vector<1x1x128xf32> to vector<128xf32>
    %368 = vector.shape_cast %367 : vector<128xf32> to vector<1x128xf32>
    %369 = vector.broadcast %368 : vector<1x128xf32> to vector<16x128xf32>
    %370 = arith.mulf %365, %369 : vector<16x128xf32>
    %371 = arith.addf %364, %370 : vector<16x128xf32>
    %372 = vector.broadcast %1 : vector<1x128xf32> to vector<16x128xf32>
    %373 = arith.addf %371, %372 : vector<16x128xf32>
    %cst_71 = arith.constant 0.000000e+00 : f32
    %374 = vector.broadcast %cst_71 : f32 to vector<16x128xf32>
    %375 = arith.maximumf %373, %374 : vector<16x128xf32>
    %c64 = arith.constant 64 : index
    %c0_72 = arith.constant 0 : index
    %376 = vector.load %arg9[%c64, %c0_72] : memref<128x128xf32, #tpu.memory_space<vmem>>, vector<16x128xf32>
    tpu.vector_store %arg9[%c64, %c0_72], %375 {strides = array<i32>} : memref<128x128xf32, #tpu.memory_space<vmem>>, vector<16x128xf32>,
    %cst_73 = arith.constant 0.000000e+00 : f32
    %377 = vector.broadcast %cst_73 : f32 to vector<16x128xf32>
    %c0_74 = arith.constant 0 : index
    %c5_75 = arith.constant 5 : index
    %c0_76 = arith.constant 0 : index
    %c0_77 = arith.constant 0 : index
    %378 = vector.load %arg2[%c0_74, %c5_75, %c0_76, %c0_77] : memref<1x8x18x128xf32, #tpu.memory_space<vmem>>, vector<1x1x18x128xf32>
    %379 = vector.shape_cast %378 : vector<1x1x18x128xf32> to vector<18x128xf32>
    %380 = vector.extract_strided_slice %379 {offsets = [0, 0], sizes = [16, 128], strides = [1, 1]} : vector<18x128xf32> to vector<16x128xf32>
    %381 = vector.extract_strided_slice %0 {offsets = [0, 0, 0], sizes = [1, 1, 128], strides = [1, 1, 1]} : vector<3x3x128xf32> to vector<1x1x128xf32>
    %382 = vector.shape_cast %381 : vector<1x1x128xf32> to vector<128xf32>
    %383 = vector.shape_cast %382 : vector<128xf32> to vector<1x128xf32>
    %384 = vector.broadcast %383 : vector<1x128xf32> to vector<16x128xf32>
    %385 = arith.mulf %380, %384 : vector<16x128xf32>
    %386 = arith.addf %377, %385 : vector<16x128xf32>
    %387 = vector.extract_strided_slice %379 {offsets = [1, 0], sizes = [16, 128], strides = [1, 1]} : vector<18x128xf32> to vector<16x128xf32>
    %388 = vector.extract_strided_slice %0 {offsets = [0, 1, 0], sizes = [1, 1, 128], strides = [1, 1, 1]} : vector<3x3x128xf32> to vector<1x1x128xf32>
    %389 = vector.shape_cast %388 : vector<1x1x128xf32> to vector<128xf32>
    %390 = vector.shape_cast %389 : vector<128xf32> to vector<1x128xf32>
    %391 = vector.broadcast %390 : vector<1x128xf32> to vector<16x128xf32>
    %392 = arith.mulf %387, %391 : vector<16x128xf32>
    %393 = arith.addf %386, %392 : vector<16x128xf32>
    %394 = vector.extract_strided_slice %379 {offsets = [2, 0], sizes = [16, 128], strides = [1, 1]} : vector<18x128xf32> to vector<16x128xf32>
    %395 = vector.extract_strided_slice %0 {offsets = [0, 2, 0], sizes = [1, 1, 128], strides = [1, 1, 1]} : vector<3x3x128xf32> to vector<1x1x128xf32>
    %396 = vector.shape_cast %395 : vector<1x1x128xf32> to vector<128xf32>
    %397 = vector.shape_cast %396 : vector<128xf32> to vector<1x128xf32>
    %398 = vector.broadcast %397 : vector<1x128xf32> to vector<16x128xf32>
    %399 = arith.mulf %394, %398 : vector<16x128xf32>
    %400 = arith.addf %393, %399 : vector<16x128xf32>
    %c0_78 = arith.constant 0 : index
    %c6_79 = arith.constant 6 : index
    %c0_80 = arith.constant 0 : index
    %c0_81 = arith.constant 0 : index
    %401 = vector.load %arg2[%c0_78, %c6_79, %c0_80, %c0_81] : memref<1x8x18x128xf32, #tpu.memory_space<vmem>>, vector<1x1x18x128xf32>
    %402 = vector.shape_cast %401 : vector<1x1x18x128xf32> to vector<18x128xf32>
    %403 = vector.extract_strided_slice %402 {offsets = [0, 0], sizes = [16, 128], strides = [1, 1]} : vector<18x128xf32> to vector<16x128xf32>
    %404 = vector.extract_strided_slice %0 {offsets = [1, 0, 0], sizes = [1, 1, 128], strides = [1, 1, 1]} : vector<3x3x128xf32> to vector<1x1x128xf32>
    %405 = vector.shape_cast %404 : vector<1x1x128xf32> to vector<128xf32>
    %406 = vector.shape_cast %405 : vector<128xf32> to vector<1x128xf32>
    %407 = vector.broadcast %406 : vector<1x128xf32> to vector<16x128xf32>
    %408 = arith.mulf %403, %407 : vector<16x128xf32>
    %409 = arith.addf %400, %408 : vector<16x128xf32>
    %410 = vector.extract_strided_slice %402 {offsets = [1, 0], sizes = [16, 128], strides = [1, 1]} : vector<18x128xf32> to vector<16x128xf32>
    %411 = vector.extract_strided_slice %0 {offsets = [1, 1, 0], sizes = [1, 1, 128], strides = [1, 1, 1]} : vector<3x3x128xf32> to vector<1x1x128xf32>
    %412 = vector.shape_cast %411 : vector<1x1x128xf32> to vector<128xf32>
    %413 = vector.shape_cast %412 : vector<128xf32> to vector<1x128xf32>
    %414 = vector.broadcast %413 : vector<1x128xf32> to vector<16x128xf32>
    %415 = arith.mulf %410, %414 : vector<16x128xf32>
    %416 = arith.addf %409, %415 : vector<16x128xf32>
    %417 = vector.extract_strided_slice %402 {offsets = [2, 0], sizes = [16, 128], strides = [1, 1]} : vector<18x128xf32> to vector<16x128xf32>
    %418 = vector.extract_strided_slice %0 {offsets = [1, 2, 0], sizes = [1, 1, 128], strides = [1, 1, 1]} : vector<3x3x128xf32> to vector<1x1x128xf32>
    %419 = vector.shape_cast %418 : vector<1x1x128xf32> to vector<128xf32>
    %420 = vector.shape_cast %419 : vector<128xf32> to vector<1x128xf32>
    %421 = vector.broadcast %420 : vector<1x128xf32> to vector<16x128xf32>
    %422 = arith.mulf %417, %421 : vector<16x128xf32>
    %423 = arith.addf %416, %422 : vector<16x128xf32>
    %c0_82 = arith.constant 0 : index
    %c7 = arith.constant 7 : index
    %c0_83 = arith.constant 0 : index
    %c0_84 = arith.constant 0 : index
    %424 = vector.load %arg2[%c0_82, %c7, %c0_83, %c0_84] : memref<1x8x18x128xf32, #tpu.memory_space<vmem>>, vector<1x1x18x128xf32>
    %425 = vector.shape_cast %424 : vector<1x1x18x128xf32> to vector<18x128xf32>
    %426 = vector.extract_strided_slice %425 {offsets = [0, 0], sizes = [16, 128], strides = [1, 1]} : vector<18x128xf32> to vector<16x128xf32>
    %427 = vector.extract_strided_slice %0 {offsets = [2, 0, 0], sizes = [1, 1, 128], strides = [1, 1, 1]} : vector<3x3x128xf32> to vector<1x1x128xf32>
    %428 = vector.shape_cast %427 : vector<1x1x128xf32> to vector<128xf32>
    %429 = vector.shape_cast %428 : vector<128xf32> to vector<1x128xf32>
    %430 = vector.broadcast %429 : vector<1x128xf32> to vector<16x128xf32>
    %431 = arith.mulf %426, %430 : vector<16x128xf32>
    %432 = arith.addf %423, %431 : vector<16x128xf32>
    %433 = vector.extract_strided_slice %425 {offsets = [1, 0], sizes = [16, 128], strides = [1, 1]} : vector<18x128xf32> to vector<16x128xf32>
    %434 = vector.extract_strided_slice %0 {offsets = [2, 1, 0], sizes = [1, 1, 128], strides = [1, 1, 1]} : vector<3x3x128xf32> to vector<1x1x128xf32>
    %435 = vector.shape_cast %434 : vector<1x1x128xf32> to vector<128xf32>
    %436 = vector.shape_cast %435 : vector<128xf32> to vector<1x128xf32>
    %437 = vector.broadcast %436 : vector<1x128xf32> to vector<16x128xf32>
    %438 = arith.mulf %433, %437 : vector<16x128xf32>
    %439 = arith.addf %432, %438 : vector<16x128xf32>
    %440 = vector.extract_strided_slice %425 {offsets = [2, 0], sizes = [16, 128], strides = [1, 1]} : vector<18x128xf32> to vector<16x128xf32>
    %441 = vector.extract_strided_slice %0 {offsets = [2, 2, 0], sizes = [1, 1, 128], strides = [1, 1, 1]} : vector<3x3x128xf32> to vector<1x1x128xf32>
    %442 = vector.shape_cast %441 : vector<1x1x128xf32> to vector<128xf32>
    %443 = vector.shape_cast %442 : vector<128xf32> to vector<1x128xf32>
    %444 = vector.broadcast %443 : vector<1x128xf32> to vector<16x128xf32>
    %445 = arith.mulf %440, %444 : vector<16x128xf32>
    %446 = arith.addf %439, %445 : vector<16x128xf32>
    %447 = vector.broadcast %1 : vector<1x128xf32> to vector<16x128xf32>
    %448 = arith.addf %446, %447 : vector<16x128xf32>
    %cst_85 = arith.constant 0.000000e+00 : f32
    %449 = vector.broadcast %cst_85 : f32 to vector<16x128xf32>
    %450 = arith.maximumf %448, %449 : vector<16x128xf32>
    %c80 = arith.constant 80 : index
    %c0_86 = arith.constant 0 : index
    %451 = vector.load %arg9[%c80, %c0_86] : memref<128x128xf32, #tpu.memory_space<vmem>>, vector<16x128xf32>
    tpu.vector_store %arg9[%c80, %c0_86], %450 {strides = array<i32>} : memref<128x128xf32, #tpu.memory_space<vmem>>, vector<16x128xf32>,
    %cst_87 = arith.constant 0.000000e+00 : f32
    %452 = vector.broadcast %cst_87 : f32 to vector<16x128xf32>
    %c0_88 = arith.constant 0 : index
    %c6_89 = arith.constant 6 : index
    %c0_90 = arith.constant 0 : index
    %c0_91 = arith.constant 0 : index
    %453 = vector.load %arg2[%c0_88, %c6_89, %c0_90, %c0_91] : memref<1x8x18x128xf32, #tpu.memory_space<vmem>>, vector<1x1x18x128xf32>
    %454 = vector.shape_cast %453 : vector<1x1x18x128xf32> to vector<18x128xf32>
    %455 = vector.extract_strided_slice %454 {offsets = [0, 0], sizes = [16, 128], strides = [1, 1]} : vector<18x128xf32> to vector<16x128xf32>
    %456 = vector.extract_strided_slice %0 {offsets = [0, 0, 0], sizes = [1, 1, 128], strides = [1, 1, 1]} : vector<3x3x128xf32> to vector<1x1x128xf32>
    %457 = vector.shape_cast %456 : vector<1x1x128xf32> to vector<128xf32>
    %458 = vector.shape_cast %457 : vector<128xf32> to vector<1x128xf32>
    %459 = vector.broadcast %458 : vector<1x128xf32> to vector<16x128xf32>
    %460 = arith.mulf %455, %459 : vector<16x128xf32>
    %461 = arith.addf %452, %460 : vector<16x128xf32>
    %462 = vector.extract_strided_slice %454 {offsets = [1, 0], sizes = [16, 128], strides = [1, 1]} : vector<18x128xf32> to vector<16x128xf32>
    %463 = vector.extract_strided_slice %0 {offsets = [0, 1, 0], sizes = [1, 1, 128], strides = [1, 1, 1]} : vector<3x3x128xf32> to vector<1x1x128xf32>
    %464 = vector.shape_cast %463 : vector<1x1x128xf32> to vector<128xf32>
    %465 = vector.shape_cast %464 : vector<128xf32> to vector<1x128xf32>
    %466 = vector.broadcast %465 : vector<1x128xf32> to vector<16x128xf32>
    %467 = arith.mulf %462, %466 : vector<16x128xf32>
    %468 = arith.addf %461, %467 : vector<16x128xf32>
    %469 = vector.extract_strided_slice %454 {offsets = [2, 0], sizes = [16, 128], strides = [1, 1]} : vector<18x128xf32> to vector<16x128xf32>
    %470 = vector.extract_strided_slice %0 {offsets = [0, 2, 0], sizes = [1, 1, 128], strides = [1, 1, 1]} : vector<3x3x128xf32> to vector<1x1x128xf32>
    %471 = vector.shape_cast %470 : vector<1x1x128xf32> to vector<128xf32>
    %472 = vector.shape_cast %471 : vector<128xf32> to vector<1x128xf32>
    %473 = vector.broadcast %472 : vector<1x128xf32> to vector<16x128xf32>
    %474 = arith.mulf %469, %473 : vector<16x128xf32>
    %475 = arith.addf %468, %474 : vector<16x128xf32>
    %c0_92 = arith.constant 0 : index
    %c7_93 = arith.constant 7 : index
    %c0_94 = arith.constant 0 : index
    %c0_95 = arith.constant 0 : index
    %476 = vector.load %arg2[%c0_92, %c7_93, %c0_94, %c0_95] : memref<1x8x18x128xf32, #tpu.memory_space<vmem>>, vector<1x1x18x128xf32>
    %477 = vector.shape_cast %476 : vector<1x1x18x128xf32> to vector<18x128xf32>
    %478 = vector.extract_strided_slice %477 {offsets = [0, 0], sizes = [16, 128], strides = [1, 1]} : vector<18x128xf32> to vector<16x128xf32>
    %479 = vector.extract_strided_slice %0 {offsets = [1, 0, 0], sizes = [1, 1, 128], strides = [1, 1, 1]} : vector<3x3x128xf32> to vector<1x1x128xf32>
    %480 = vector.shape_cast %479 : vector<1x1x128xf32> to vector<128xf32>
    %481 = vector.shape_cast %480 : vector<128xf32> to vector<1x128xf32>
    %482 = vector.broadcast %481 : vector<1x128xf32> to vector<16x128xf32>
    %483 = arith.mulf %478, %482 : vector<16x128xf32>
    %484 = arith.addf %475, %483 : vector<16x128xf32>
    %485 = vector.extract_strided_slice %477 {offsets = [1, 0], sizes = [16, 128], strides = [1, 1]} : vector<18x128xf32> to vector<16x128xf32>
    %486 = vector.extract_strided_slice %0 {offsets = [1, 1, 0], sizes = [1, 1, 128], strides = [1, 1, 1]} : vector<3x3x128xf32> to vector<1x1x128xf32>
    %487 = vector.shape_cast %486 : vector<1x1x128xf32> to vector<128xf32>
    %488 = vector.shape_cast %487 : vector<128xf32> to vector<1x128xf32>
    %489 = vector.broadcast %488 : vector<1x128xf32> to vector<16x128xf32>
    %490 = arith.mulf %485, %489 : vector<16x128xf32>
    %491 = arith.addf %484, %490 : vector<16x128xf32>
    %492 = vector.extract_strided_slice %477 {offsets = [2, 0], sizes = [16, 128], strides = [1, 1]} : vector<18x128xf32> to vector<16x128xf32>
    %493 = vector.extract_strided_slice %0 {offsets = [1, 2, 0], sizes = [1, 1, 128], strides = [1, 1, 1]} : vector<3x3x128xf32> to vector<1x1x128xf32>
    %494 = vector.shape_cast %493 : vector<1x1x128xf32> to vector<128xf32>
    %495 = vector.shape_cast %494 : vector<128xf32> to vector<1x128xf32>
    %496 = vector.broadcast %495 : vector<1x128xf32> to vector<16x128xf32>
    %497 = arith.mulf %492, %496 : vector<16x128xf32>
    %498 = arith.addf %491, %497 : vector<16x128xf32>
    %c0_96 = arith.constant 0 : index
    %c0_97 = arith.constant 0 : index
    %c0_98 = arith.constant 0 : index
    %c0_99 = arith.constant 0 : index
    %499 = vector.load %arg3[%c0_96, %c0_97, %c0_98, %c0_99] : memref<1x2x18x128xf32, #tpu.memory_space<vmem>>, vector<1x1x18x128xf32>
    %500 = vector.shape_cast %499 : vector<1x1x18x128xf32> to vector<18x128xf32>
    %501 = vector.extract_strided_slice %500 {offsets = [0, 0], sizes = [16, 128], strides = [1, 1]} : vector<18x128xf32> to vector<16x128xf32>
    %502 = vector.extract_strided_slice %0 {offsets = [2, 0, 0], sizes = [1, 1, 128], strides = [1, 1, 1]} : vector<3x3x128xf32> to vector<1x1x128xf32>
    %503 = vector.shape_cast %502 : vector<1x1x128xf32> to vector<128xf32>
    %504 = vector.shape_cast %503 : vector<128xf32> to vector<1x128xf32>
    %505 = vector.broadcast %504 : vector<1x128xf32> to vector<16x128xf32>
    %506 = arith.mulf %501, %505 : vector<16x128xf32>
    %507 = arith.addf %498, %506 : vector<16x128xf32>
    %508 = vector.extract_strided_slice %500 {offsets = [1, 0], sizes = [16, 128], strides = [1, 1]} : vector<18x128xf32> to vector<16x128xf32>
    %509 = vector.extract_strided_slice %0 {offsets = [2, 1, 0], sizes = [1, 1, 128], strides = [1, 1, 1]} : vector<3x3x128xf32> to vector<1x1x128xf32>
    %510 = vector.shape_cast %509 : vector<1x1x128xf32> to vector<128xf32>
    %511 = vector.shape_cast %510 : vector<128xf32> to vector<1x128xf32>
    %512 = vector.broadcast %511 : vector<1x128xf32> to vector<16x128xf32>
    %513 = arith.mulf %508, %512 : vector<16x128xf32>
    %514 = arith.addf %507, %513 : vector<16x128xf32>
    %515 = vector.extract_strided_slice %500 {offsets = [2, 0], sizes = [16, 128], strides = [1, 1]} : vector<18x128xf32> to vector<16x128xf32>
    %516 = vector.extract_strided_slice %0 {offsets = [2, 2, 0], sizes = [1, 1, 128], strides = [1, 1, 1]} : vector<3x3x128xf32> to vector<1x1x128xf32>
    %517 = vector.shape_cast %516 : vector<1x1x128xf32> to vector<128xf32>
    %518 = vector.shape_cast %517 : vector<128xf32> to vector<1x128xf32>
    %519 = vector.broadcast %518 : vector<1x128xf32> to vector<16x128xf32>
    %520 = arith.mulf %515, %519 : vector<16x128xf32>
    %521 = arith.addf %514, %520 : vector<16x128xf32>
    %522 = vector.broadcast %1 : vector<1x128xf32> to vector<16x128xf32>
    %523 = arith.addf %521, %522 : vector<16x128xf32>
    %cst_100 = arith.constant 0.000000e+00 : f32
    %524 = vector.broadcast %cst_100 : f32 to vector<16x128xf32>
    %525 = arith.maximumf %523, %524 : vector<16x128xf32>
    %c96 = arith.constant 96 : index
    %c0_101 = arith.constant 0 : index
    %526 = vector.load %arg9[%c96, %c0_101] : memref<128x128xf32, #tpu.memory_space<vmem>>, vector<16x128xf32>
    tpu.vector_store %arg9[%c96, %c0_101], %525 {strides = array<i32>} : memref<128x128xf32, #tpu.memory_space<vmem>>, vector<16x128xf32>,
    %cst_102 = arith.constant 0.000000e+00 : f32
    %527 = vector.broadcast %cst_102 : f32 to vector<16x128xf32>
    %c0_103 = arith.constant 0 : index
    %c7_104 = arith.constant 7 : index
    %c0_105 = arith.constant 0 : index
    %c0_106 = arith.constant 0 : index
    %528 = vector.load %arg2[%c0_103, %c7_104, %c0_105, %c0_106] : memref<1x8x18x128xf32, #tpu.memory_space<vmem>>, vector<1x1x18x128xf32>
    %529 = vector.shape_cast %528 : vector<1x1x18x128xf32> to vector<18x128xf32>
    %530 = vector.extract_strided_slice %529 {offsets = [0, 0], sizes = [16, 128], strides = [1, 1]} : vector<18x128xf32> to vector<16x128xf32>
    %531 = vector.extract_strided_slice %0 {offsets = [0, 0, 0], sizes = [1, 1, 128], strides = [1, 1, 1]} : vector<3x3x128xf32> to vector<1x1x128xf32>
    %532 = vector.shape_cast %531 : vector<1x1x128xf32> to vector<128xf32>
    %533 = vector.shape_cast %532 : vector<128xf32> to vector<1x128xf32>
    %534 = vector.broadcast %533 : vector<1x128xf32> to vector<16x128xf32>
    %535 = arith.mulf %530, %534 : vector<16x128xf32>
    %536 = arith.addf %527, %535 : vector<16x128xf32>
    %537 = vector.extract_strided_slice %529 {offsets = [1, 0], sizes = [16, 128], strides = [1, 1]} : vector<18x128xf32> to vector<16x128xf32>
    %538 = vector.extract_strided_slice %0 {offsets = [0, 1, 0], sizes = [1, 1, 128], strides = [1, 1, 1]} : vector<3x3x128xf32> to vector<1x1x128xf32>
    %539 = vector.shape_cast %538 : vector<1x1x128xf32> to vector<128xf32>
    %540 = vector.shape_cast %539 : vector<128xf32> to vector<1x128xf32>
    %541 = vector.broadcast %540 : vector<1x128xf32> to vector<16x128xf32>
    %542 = arith.mulf %537, %541 : vector<16x128xf32>
    %543 = arith.addf %536, %542 : vector<16x128xf32>
    %544 = vector.extract_strided_slice %529 {offsets = [2, 0], sizes = [16, 128], strides = [1, 1]} : vector<18x128xf32> to vector<16x128xf32>
    %545 = vector.extract_strided_slice %0 {offsets = [0, 2, 0], sizes = [1, 1, 128], strides = [1, 1, 1]} : vector<3x3x128xf32> to vector<1x1x128xf32>
    %546 = vector.shape_cast %545 : vector<1x1x128xf32> to vector<128xf32>
    %547 = vector.shape_cast %546 : vector<128xf32> to vector<1x128xf32>
    %548 = vector.broadcast %547 : vector<1x128xf32> to vector<16x128xf32>
    %549 = arith.mulf %544, %548 : vector<16x128xf32>
    %550 = arith.addf %543, %549 : vector<16x128xf32>
    %c0_107 = arith.constant 0 : index
    %c0_108 = arith.constant 0 : index
    %c0_109 = arith.constant 0 : index
    %c0_110 = arith.constant 0 : index
    %551 = vector.load %arg3[%c0_107, %c0_108, %c0_109, %c0_110] : memref<1x2x18x128xf32, #tpu.memory_space<vmem>>, vector<1x1x18x128xf32>
    %552 = vector.shape_cast %551 : vector<1x1x18x128xf32> to vector<18x128xf32>
    %553 = vector.extract_strided_slice %552 {offsets = [0, 0], sizes = [16, 128], strides = [1, 1]} : vector<18x128xf32> to vector<16x128xf32>
    %554 = vector.extract_strided_slice %0 {offsets = [1, 0, 0], sizes = [1, 1, 128], strides = [1, 1, 1]} : vector<3x3x128xf32> to vector<1x1x128xf32>
    %555 = vector.shape_cast %554 : vector<1x1x128xf32> to vector<128xf32>
    %556 = vector.shape_cast %555 : vector<128xf32> to vector<1x128xf32>
    %557 = vector.broadcast %556 : vector<1x128xf32> to vector<16x128xf32>
    %558 = arith.mulf %553, %557 : vector<16x128xf32>
    %559 = arith.addf %550, %558 : vector<16x128xf32>
    %560 = vector.extract_strided_slice %552 {offsets = [1, 0], sizes = [16, 128], strides = [1, 1]} : vector<18x128xf32> to vector<16x128xf32>
    %561 = vector.extract_strided_slice %0 {offsets = [1, 1, 0], sizes = [1, 1, 128], strides = [1, 1, 1]} : vector<3x3x128xf32> to vector<1x1x128xf32>
    %562 = vector.shape_cast %561 : vector<1x1x128xf32> to vector<128xf32>
    %563 = vector.shape_cast %562 : vector<128xf32> to vector<1x128xf32>
    %564 = vector.broadcast %563 : vector<1x128xf32> to vector<16x128xf32>
    %565 = arith.mulf %560, %564 : vector<16x128xf32>
    %566 = arith.addf %559, %565 : vector<16x128xf32>
    %567 = vector.extract_strided_slice %552 {offsets = [2, 0], sizes = [16, 128], strides = [1, 1]} : vector<18x128xf32> to vector<16x128xf32>
    %568 = vector.extract_strided_slice %0 {offsets = [1, 2, 0], sizes = [1, 1, 128], strides = [1, 1, 1]} : vector<3x3x128xf32> to vector<1x1x128xf32>
    %569 = vector.shape_cast %568 : vector<1x1x128xf32> to vector<128xf32>
    %570 = vector.shape_cast %569 : vector<128xf32> to vector<1x128xf32>
    %571 = vector.broadcast %570 : vector<1x128xf32> to vector<16x128xf32>
    %572 = arith.mulf %567, %571 : vector<16x128xf32>
    %573 = arith.addf %566, %572 : vector<16x128xf32>
    %c0_111 = arith.constant 0 : index
    %c1_112 = arith.constant 1 : index
    %c0_113 = arith.constant 0 : index
    %c0_114 = arith.constant 0 : index
    %574 = vector.load %arg3[%c0_111, %c1_112, %c0_113, %c0_114] : memref<1x2x18x128xf32, #tpu.memory_space<vmem>>, vector<1x1x18x128xf32>
    %575 = vector.shape_cast %574 : vector<1x1x18x128xf32> to vector<18x128xf32>
    %576 = vector.extract_strided_slice %575 {offsets = [0, 0], sizes = [16, 128], strides = [1, 1]} : vector<18x128xf32> to vector<16x128xf32>
    %577 = vector.extract_strided_slice %0 {offsets = [2, 0, 0], sizes = [1, 1, 128], strides = [1, 1, 1]} : vector<3x3x128xf32> to vector<1x1x128xf32>
    %578 = vector.shape_cast %577 : vector<1x1x128xf32> to vector<128xf32>
    %579 = vector.shape_cast %578 : vector<128xf32> to vector<1x128xf32>
    %580 = vector.broadcast %579 : vector<1x128xf32> to vector<16x128xf32>
    %581 = arith.mulf %576, %580 : vector<16x128xf32>
    %582 = arith.addf %573, %581 : vector<16x128xf32>
    %583 = vector.extract_strided_slice %575 {offsets = [1, 0], sizes = [16, 128], strides = [1, 1]} : vector<18x128xf32> to vector<16x128xf32>
    %584 = vector.extract_strided_slice %0 {offsets = [2, 1, 0], sizes = [1, 1, 128], strides = [1, 1, 1]} : vector<3x3x128xf32> to vector<1x1x128xf32>
    %585 = vector.shape_cast %584 : vector<1x1x128xf32> to vector<128xf32>
    %586 = vector.shape_cast %585 : vector<128xf32> to vector<1x128xf32>
    %587 = vector.broadcast %586 : vector<1x128xf32> to vector<16x128xf32>
    %588 = arith.mulf %583, %587 : vector<16x128xf32>
    %589 = arith.addf %582, %588 : vector<16x128xf32>
    %590 = vector.extract_strided_slice %575 {offsets = [2, 0], sizes = [16, 128], strides = [1, 1]} : vector<18x128xf32> to vector<16x128xf32>
    %591 = vector.extract_strided_slice %0 {offsets = [2, 2, 0], sizes = [1, 1, 128], strides = [1, 1, 1]} : vector<3x3x128xf32> to vector<1x1x128xf32>
    %592 = vector.shape_cast %591 : vector<1x1x128xf32> to vector<128xf32>
    %593 = vector.shape_cast %592 : vector<128xf32> to vector<1x128xf32>
    %594 = vector.broadcast %593 : vector<1x128xf32> to vector<16x128xf32>
    %595 = arith.mulf %590, %594 : vector<16x128xf32>
    %596 = arith.addf %589, %595 : vector<16x128xf32>
    %597 = vector.broadcast %1 : vector<1x128xf32> to vector<16x128xf32>
    %598 = arith.addf %596, %597 : vector<16x128xf32>
    %cst_115 = arith.constant 0.000000e+00 : f32
    %599 = vector.broadcast %cst_115 : f32 to vector<16x128xf32>
    %600 = arith.maximumf %598, %599 : vector<16x128xf32>
    %c112 = arith.constant 112 : index
    %c0_116 = arith.constant 0 : index
    %601 = vector.load %arg9[%c112, %c0_116] : memref<128x128xf32, #tpu.memory_space<vmem>>, vector<16x128xf32>
    tpu.vector_store %arg9[%c112, %c0_116], %600 {strides = array<i32>} : memref<128x128xf32, #tpu.memory_space<vmem>>, vector<16x128xf32>,
    %c0_117 = arith.constant 0 : index
    %c0_118 = arith.constant 0 : index
    %602 = vector.load %arg9[%c0_117, %c0_118] : memref<128x128xf32, #tpu.memory_space<vmem>>, vector<128x128xf32>
    %c0_119 = arith.constant 0 : index
    %c0_120 = arith.constant 0 : index
    %603 = vector.load %arg6[%c0_119, %c0_120] : memref<128x128xf32, #tpu.memory_space<vmem>>, vector<128x128xf32>
    %cst_121 = arith.constant dense<0.000000e+00> : vector<128x128xf32>
    %604 = tpu.matmul %602, %603, %cst_121 {dimension_numbers = #tpu.dot_dimension_numbers<[1], [0], [0], [1], [0, 0, 1, 1], [], []>} : vector<128x128xf32>, vector<128x128xf32>, vector<128x128xf32> -> vector<128x128xf32>
    %c0_122 = arith.constant 0 : index
    %c0_123 = arith.constant 0 : index
    %605 = vector.load %arg7[%c0_122, %c0_123] : memref<1x128xf32, #tpu.memory_space<vmem>>, vector<1x128xf32>
    %606 = vector.broadcast %605 : vector<1x128xf32> to vector<128x128xf32>
    %607 = arith.addf %604, %606 : vector<128x128xf32>
    %cst_124 = arith.constant 0.000000e+00 : f32
    %608 = vector.broadcast %cst_124 : f32 to vector<128x128xf32>
    %609 = arith.maximumf %607, %608 : vector<128x128xf32>
    %c0_125 = arith.constant 0 : index
    %c0_126 = arith.constant 0 : index
    %c0_127 = arith.constant 0 : index
    %610 = vector.load %arg8[%c0_125, %c0_126, %c0_127] : memref<1x128x128xf32, #tpu.memory_space<vmem>>, vector<1x128x128xf32>
    %611 = vector.shape_cast %610 : vector<1x128x128xf32> to vector<128x128xf32>
    %612 = vector.shape_cast %609 : vector<128x128xf32> to vector<1x128x128xf32>
    tpu.vector_store %arg8[%c0_125, %c0_126, %c0_127], %612 {strides = array<i32>} : memref<1x128x128xf32, #tpu.memory_space<vmem>>, vector<1x128x128xf32>,
    return
  }
  func.func @transform_0(%arg0: i32, %arg1: i32) -> (i32, i32, i32, i32) {
    %c0_i32 = arith.constant 0 : i32
    %c0_i32_0 = arith.constant 0 : i32
    %c0_i32_1 = arith.constant 0 : i32
    return %arg0, %arg1, %c0_i32, %c0_i32_0 : i32, i32, i32, i32
  }
  func.func @transform_1(%arg0: i32, %arg1: i32) -> (i32, i32, i32, i32) {
    %c1_i32 = arith.constant 1 : i32
    %0 = arith.addi %arg1, %c1_i32 : i32
    %c4_i32 = arith.constant 4 : i32
    %1 = arith.muli %0, %c4_i32 : i32
    %c0_i32 = arith.constant 0 : i32
    %c0_i32_0 = arith.constant 0 : i32
    %c0_i32_1 = arith.constant 0 : i32
    return %arg0, %1, %c0_i32, %c0_i32_0 : i32, i32, i32, i32
  }
  func.func @transform_2(%arg0: i32, %arg1: i32) -> (i32, i32, i32) {
    %c0_i32 = arith.constant 0 : i32
    %c0_i32_0 = arith.constant 0 : i32
    %c0_i32_1 = arith.constant 0 : i32
    %c0_i32_2 = arith.constant 0 : i32
    return %c0_i32, %c0_i32_0, %c0_i32_1 : i32, i32, i32
  }
  func.func @transform_3(%arg0: i32, %arg1: i32) -> (i32, i32) {
    %c0_i32 = arith.constant 0 : i32
    %c0_i32_0 = arith.constant 0 : i32
    %c0_i32_1 = arith.constant 0 : i32
    return %c0_i32, %c0_i32_0 : i32, i32
  }
  func.func @transform_4(%arg0: i32, %arg1: i32) -> (i32, i32) {
    %c0_i32 = arith.constant 0 : i32
    %c0_i32_0 = arith.constant 0 : i32
    %c0_i32_1 = arith.constant 0 : i32
    return %c0_i32, %c0_i32_0 : i32, i32
  }
  func.func @transform_5(%arg0: i32, %arg1: i32) -> (i32, i32) {
    %c0_i32 = arith.constant 0 : i32
    %c0_i32_0 = arith.constant 0 : i32
    %c0_i32_1 = arith.constant 0 : i32
    return %c0_i32, %c0_i32_0 : i32, i32
  }
  func.func @transform_6(%arg0: i32, %arg1: i32) -> (i32, i32, i32) {
    %c0_i32 = arith.constant 0 : i32
    %c0_i32_0 = arith.constant 0 : i32
    return %arg0, %arg1, %c0_i32 : i32, i32, i32
  }
}

</mosaic_0001>

<llo_original>
// kernel: tpu_custom_call.1
$region0: #{tpu_custom_call.1}
  #allocation0 [shape = 'u32[]', space=smem, size = 0x4, offset = 0x4, fixed_abs, tag = 'smem constant byte address 0x4 - core index']
  #allocation1 [shape = 'u32[144,128]{1,0:T(1,128)}', space=vmem, size = 0x12000, scoped, tag = 'internal scratch']
  #allocation2 [shape = 'f32[128,128]{1,0:T(8,128)}', space=vmem, size = 0x10000, scoped, tag = 'scratch operand']
  %s0 = inlined_call_operand.vmem [shape: f32[2,18,18,128], index: 0, kind: input, shape index: {}]
  %s1 = inlined_call_operand.vmem [shape: f32[2,18,18,128], index: 1, kind: input, shape index: {}]
  %s2 = inlined_call_operand.vmem [shape: f32[3,3,128], index: 2, kind: input, shape index: {}]
  %s3 = inlined_call_operand.vmem [shape: f32[1,128], index: 3, kind: input, shape index: {}]
  %s4 = inlined_call_operand.vmem [shape: f32[128,128], index: 4, kind: input, shape index: {}]
  %s5 = inlined_call_operand.vmem [shape: f32[1,128], index: 5, kind: input, shape index: {}]
  %s6 = inlined_call_operand.hbm [shape: f32[2,256,128], index: 6, kind: output, shape index: {}]
  %s7 = sld [smem:[#allocation0]]
  $region57: #{tpu_custom_call.1} parent=0
    _
  %s9 = ssub.s32 1, %s7
  %s10 = scalar_select 0, %s9, %s7
  $region1: #{tpu_custom_call.1} parent=0
    #allocation3 [shape = 'u8[131072]{0}', space=vmem, size = 0x20000, scoped, tag = 'output window, operand 0']
    #allocation4 [shape = 's32[2]{0}', space=sflag, size = 0x8, scoped, tag = 'scoped memory for tpu_custom_call.1']
    %11 = vsyncpa [#allocation4], 0
    %s12 = scalar_lea.sflag [#allocation4], 1
    %13 = vsyncpa %s12, 0
    loop: start=0, step=1, limit=6
    $region2: #{tpu_custom_call.1} parent=1 // loop_pre_header
      _
    $region3: #{tpu_custom_call.1} parent=1 // loop_header
      %s15 = sphi 0, %s19
      %p16 = scmp.ge.s32.totalorder %s15, 6
      %s22 = sphi 0, %s34
      %s23 = sphi 0, %s30
      %s24 = sphi 0, %s22
      %s25 = sphi 0, %s23
      %s26 = sphi 0, %s24
      %s27 = sphi 0, %s25
      %s39 = sphi 0, %s41
      %s42 = sphi 0, %s39
      %s43 = sphi 0, %s42
      %s59 = sphi 0, %s43
      %s71 = sphi 0, %s73
      %s74 = sphi 0, %s71
      %s75 = sphi 0, %s74
      %s91 = sphi 0, %s75
      %s95 = sphi 0, %s95
      %s97 = sphi 0, %s95
      %s98 = sphi 0, %s97
      %s112 = sphi 0, %s98
      %s116 = sphi 0, %s116
      %s118 = sphi 0, %s116
      %s119 = sphi 0, %s118
      %s133 = sphi 0, %s119
      %s137 = sphi 0, %s137
      %s139 = sphi 0, %s137
      %s140 = sphi 0, %s139
      %s154 = sphi 0, %s140
      %s158 = sphi 0, %s158
      %s160 = sphi 0, %s158
      %s161 = sphi 0, %s160
      %s175 = sphi 0, %s161
      %s183 = sphi 0, %s185
      %s186 = sphi 0, %s183
      %s187 = sphi 0, %s186
      %s203 = sphi 0, %s187
    $region4: #{tpu_custom_call.1} parent=1 // loop_header_branch
      %18 = sbr.rel (%p16) target = $region8
    $region5: #{tpu_custom_call.1} parent=1 // loop_body
      %s20 = ssub.s32 %s15, 1
      %s21 = ssub.s32 %s15, 2
      %s28 = sadd.s32 1, %s23
      %p29 = scmp.ge.s32.totalorder %s28, 2
      %s30 = scalar_select %p29, 0, %s28
      %s31 = sadd.s32 1, %s22
      %s32 = scalar_select %p29, %s31, %s22
      %p33 = scmp.ge.s32.totalorder %s32, 2
      %s34 = scalar_select %p33, 0, %s32
      %s35 = ssub.s32 %s22, %s34
      %s36 = ssub.s32 %s23, %s30
      %s37 = sor.u32 %s35, %s36
      %p38 = scmp.eq.s32.totalorder %s37, 0
      %s40 = sadd.s32 %s39, 1
      %s41 = scalar_select %p38, %s39, %s40
      %p44 = pneg %p38
      %p45 = scmp.eq.s32.totalorder %s15, 3
      %p46 = por %p44, %p45
      %p47 = scmp.ne.s32.totalorder %s39, %s42
      %p48 = scmp.eq.s32.totalorder %s15, 0
      %p49 = por %p47, %p48
      %p50 = scmp.ne.s32.totalorder %s39, %s42
      %p51 = scmp.eq.s32.totalorder %s20, 3
      %p52 = por %p50, %p51
      %p53 = scmp.ne.s32.totalorder %s42, %s43
      %p54 = scmp.eq.s32.totalorder %s20, 0
      %p55 = por %p53, %p54
      %p56 = scmp.ne.s32.totalorder %s42, %s43
      %p57 = scmp.eq.s32.totalorder %s21, 3
      %p58 = por %p56, %p57
      %p60 = scmp.ne.s32.totalorder %s43, %s59
      %p61 = scmp.eq.s32.totalorder %s21, 0
      %p62 = por %p60, %p61
      %s63 = sadd.s32 %s23, 1
      %s64 = smul.u32 %s63, 4
      %s65 = sadd.s32 %s30, 1
      %s66 = smul.u32 %s65, 4
      %s67 = ssub.s32 %s22, %s34
      %s68 = ssub.s32 %s64, %s66
      %s69 = sor.u32 %s67, %s68
      %p70 = scmp.eq.s32.totalorder %s69, 0
      %s72 = sadd.s32 %s71, 1
      %s73 = scalar_select %p70, %s71, %s72
      %p76 = pneg %p70
      %p77 = scmp.eq.s32.totalorder %s15, 3
      %p78 = por %p76, %p77
      %p79 = scmp.ne.s32.totalorder %s71, %s74
      %p80 = scmp.eq.s32.totalorder %s15, 0
      %p81 = por %p79, %p80
      %p82 = scmp.ne.s32.totalorder %s71, %s74
      %p83 = scmp.eq.s32.totalorder %s20, 3
      %p84 = por %p82, %p83
      %p85 = scmp.ne.s32.totalorder %s74, %s75
      %p86 = scmp.eq.s32.totalorder %s20, 0
      %p87 = por %p85, %p86
      %p88 = scmp.ne.s32.totalorder %s74, %s75
      %p89 = scmp.eq.s32.totalorder %s21, 3
      %p90 = por %p88, %p89
      %p92 = scmp.ne.s32.totalorder %s75, %s91
      %p93 = scmp.eq.s32.totalorder %s21, 0
      %p94 = por %p92, %p93
      %s96 = sadd.s32 %s95, 1
      %p99 = scmp.eq.s32.totalorder %s15, 3
      %p100 = scmp.ne.s32.totalorder %s95, %s97
      %p101 = scmp.eq.s32.totalorder %s15, 0
      %p102 = por %p100, %p101
      %p103 = scmp.ne.s32.totalorder %s95, %s97
      %p104 = scmp.eq.s32.totalorder %s20, 3
      %p105 = por %p103, %p104
      %p106 = scmp.ne.s32.totalorder %s97, %s98
      %p107 = scmp.eq.s32.totalorder %s20, 0
      %p108 = por %p106, %p107
      %p109 = scmp.ne.s32.totalorder %s97, %s98
      %p110 = scmp.eq.s32.totalorder %s21, 3
      %p111 = por %p109, %p110
      %p113 = scmp.ne.s32.totalorder %s98, %s112
      %p114 = scmp.eq.s32.totalorder %s21, 0
      %p115 = por %p113, %p114
      %s117 = sadd.s32 %s116, 1
      %p120 = scmp.eq.s32.totalorder %s15, 3
      %p121 = scmp.ne.s32.totalorder %s116, %s118
      %p122 = scmp.eq.s32.totalorder %s15, 0
      %p123 = por %p121, %p122
      %p124 = scmp.ne.s32.totalorder %s116, %s118
      %p125 = scmp.eq.s32.totalorder %s20, 3
      %p126 = por %p124, %p125
      %p127 = scmp.ne.s32.totalorder %s118, %s119
      %p128 = scmp.eq.s32.totalorder %s20, 0
      %p129 = por %p127, %p128
      %p130 = scmp.ne.s32.totalorder %s118, %s119
      %p131 = scmp.eq.s32.totalorder %s21, 3
      %p132 = por %p130, %p131
      %p134 = scmp.ne.s32.totalorder %s119, %s133
      %p135 = scmp.eq.s32.totalorder %s21, 0
      %p136 = por %p134, %p135
      %s138 = sadd.s32 %s137, 1
      %p141 = scmp.eq.s32.totalorder %s15, 3
      %p142 = scmp.ne.s32.totalorder %s137, %s139
      %p143 = scmp.eq.s32.totalorder %s15, 0
      %p144 = por %p142, %p143
      %p145 = scmp.ne.s32.totalorder %s137, %s139
      %p146 = scmp.eq.s32.totalorder %s20, 3
      %p147 = por %p145, %p146
      %p148 = scmp.ne.s32.totalorder %s139, %s140
      %p149 = scmp.eq.s32.totalorder %s20, 0
      %p150 = por %p148, %p149
      %p151 = scmp.ne.s32.totalorder %s139, %s140
      %p152 = scmp.eq.s32.totalorder %s21, 3
      %p153 = por %p151, %p152
      %p155 = scmp.ne.s32.totalorder %s140, %s154
      %p156 = scmp.eq.s32.totalorder %s21, 0
      %p157 = por %p155, %p156
      %s159 = sadd.s32 %s158, 1
      %p162 = scmp.eq.s32.totalorder %s15, 3
      %p163 = scmp.ne.s32.totalorder %s158, %s160
      %p164 = scmp.eq.s32.totalorder %s15, 0
      %p165 = por %p163, %p164
      %p166 = scmp.ne.s32.totalorder %s158, %s160
      %p167 = scmp.eq.s32.totalorder %s20, 3
      %p168 = por %p166, %p167
      %p169 = scmp.ne.s32.totalorder %s160, %s161
      %p170 = scmp.eq.s32.totalorder %s20, 0
      %p171 = por %p169, %p170
      %p172 = scmp.ne.s32.totalorder %s160, %s161
      %p173 = scmp.eq.s32.totalorder %s21, 3
      %p174 = por %p172, %p173
      %p176 = scmp.ne.s32.totalorder %s161, %s175
      %p177 = scmp.eq.s32.totalorder %s21, 0
      %p178 = por %p176, %p177
      %s179 = ssub.s32 %s22, %s34
      %s180 = ssub.s32 %s23, %s30
      %s181 = sor.u32 %s179, %s180
      %p182 = scmp.eq.s32.totalorder %s181, 0
      %s184 = sadd.s32 %s183, 1
      %s185 = scalar_select %p182, %s183, %s184
      %p188 = pneg %p182
      %p189 = scmp.eq.s32.totalorder %s15, 3
      %p190 = por %p188, %p189
      %p191 = scmp.ne.s32.totalorder %s183, %s186
      %p192 = scmp.eq.s32.totalorder %s15, 0
      %p193 = por %p191, %p192
      %p194 = scmp.ne.s32.totalorder %s183, %s186
      %p195 = scmp.eq.s32.totalorder %s20, 3
      %p196 = por %p194, %p195
      %p197 = scmp.ne.s32.totalorder %s186, %s187
      %p198 = scmp.eq.s32.totalorder %s20, 0
      %p199 = por %p197, %p198
      %p200 = scmp.ne.s32.totalorder %s186, %s187
      %p201 = scmp.eq.s32.totalorder %s21, 3
      %p202 = por %p200, %p201
      %p204 = scmp.ne.s32.totalorder %s187, %s203
      %p205 = scmp.eq.s32.totalorder %s21, 0
      %p206 = por %p204, %p205
      %p207 = scmp.le.s32.totalorder 1, %s15
      %p208 = scmp.lt.s32.totalorder %s15, 5
      %p209 = pnand %p207, %p208
      %p210 = pneg %p209
      // Predicated region
      $region9: #{tpu_custom_call.1} parent=5 // pred_check
        _
      $region10: #{tpu_custom_call.1} parent=5 // pred_check_branch
        %212 = sbr.rel (%p209) target = $region12
      $region11: #{tpu_custom_call.1} parent=5 // pred_region
        %s213 = ssub.s32 %s15, 1
        // Predicated region
        $region13: #{tpu_custom_call.1} parent=11 // pred_check
          %p214 = pneg %p108
        $region14: #{tpu_custom_call.1} parent=11 // pred_check_branch
          %216 = sbr.rel (%p214) target = $region16
        $region15: #{tpu_custom_call.1} parent=11 // pred_region
          _
        $region16: #{tpu_custom_call.1} parent=11 // pred_fallthru
          _
        // Predicated region
        $region17: #{tpu_custom_call.1} parent=11 // pred_check
          %p217 = pneg %p129
        $region18: #{tpu_custom_call.1} parent=11 // pred_check_branch
          %219 = sbr.rel (%p217) target = $region20
        $region19: #{tpu_custom_call.1} parent=11 // pred_region
          _
        $region20: #{tpu_custom_call.1} parent=11 // pred_fallthru
          _
        // Predicated region
        $region21: #{tpu_custom_call.1} parent=11 // pred_check
          %p220 = pneg %p150
        $region22: #{tpu_custom_call.1} parent=11 // pred_check_branch
          %222 = sbr.rel (%p220) target = $region24
        $region23: #{tpu_custom_call.1} parent=11 // pred_region
          _
        $region24: #{tpu_custom_call.1} parent=11 // pred_fallthru
          _
        // Predicated region
        $region25: #{tpu_custom_call.1} parent=11 // pred_check
          %p223 = pneg %p171
        $region26: #{tpu_custom_call.1} parent=11 // pred_check_branch
          %225 = sbr.rel (%p223) target = $region28
        $region27: #{tpu_custom_call.1} parent=11 // pred_region
          _
        $region28: #{tpu_custom_call.1} parent=11 // pred_fallthru
          _
      $region12: #{tpu_custom_call.1} parent=5 // pred_fallthru
        _
      %p226 = scmp.lt.s32.totalorder %s15, 4
      // Predicated region
      $region29: #{tpu_custom_call.1} parent=5 // pred_check
        %p227 = pneg %p226
      $region30: #{tpu_custom_call.1} parent=5 // pred_check_branch
        %229 = sbr.rel (%p227) target = $region32
      $region31: #{tpu_custom_call.1} parent=5 // pred_region
        // Predicated region
        $region33: #{tpu_custom_call.1} parent=31 // pred_check
          %p230 = pneg %p49
        $region34: #{tpu_custom_call.1} parent=31 // pred_check_branch
          %232 = sbr.rel (%p230) target = $region36
        $region35: #{tpu_custom_call.1} parent=31 // pred_region
          %s233 = smul.u32 8, %s23
          %s234 = ssub.s32 18, %s233
          %p235 = scmp.lt.s32.totalorder %s234, 8
          %s236 = scalar_select %p235, %s234, 8
          %s237 = smul.u32 128, %s236
          %s238 = smul.u32 %s237, 3
          %p239 = scmp.lt.s32.totalorder %s22, 1
          %s240 = scalar_select %p239, %s22, 1
          %p241 = scmp.lt.s32.totalorder %s233, 17
          %s242 = scalar_select %p241, %s233, 17
          %s243 = smul.addr %s242, 3
          %s244 = smul.addr %s240, 54
          %s245 = sadd.s32 %s243, %s244
          %s246 = smul.addr %s245, 8
          %s247 = scalar_lea.vmem %s0, %s246
          %s248 = smul.u32 8, %s23
          %s249 = ssub.s32 18, %s248
          %p250 = scmp.lt.s32.totalorder %s249, 8
          %s251 = scalar_select %p250, %s249, 8
          %s252 = smul.u32 128, %s251
          %s253 = smul.u32 %s252, 3
        $region36: #{tpu_custom_call.1} parent=31 // pred_fallthru
          _
        // Predicated region
        $region37: #{tpu_custom_call.1} parent=31 // pred_check
          %p254 = pneg %p81
        $region38: #{tpu_custom_call.1} parent=31 // pred_check_branch
          %256 = sbr.rel (%p254) target = $region40
        $region39: #{tpu_custom_call.1} parent=31 // pred_region
          %s257 = sadd.s32 %s23, 1
          %s258 = smul.u32 %s257, 4
          %s259 = smul.u32 2, %s258
          %p260 = scmp.lt.s32.totalorder %s22, 1
          %s261 = scalar_select %p260, %s22, 1
          %p262 = scmp.lt.s32.totalorder %s259, 17
          %s263 = scalar_select %p262, %s259, 17
          %s264 = smul.addr %s263, 3
          %s265 = smul.addr %s261, 54
          %s266 = sadd.s32 %s264, %s265
          %s267 = smul.addr %s266, 8
          %s268 = scalar_lea.vmem %s1, %s267
          %s269 = sadd.s32 %s23, 1
          %s270 = smul.u32 %s269, 4
          %s271 = smul.u32 2, %s270
        $region40: #{tpu_custom_call.1} parent=31 // pred_fallthru
          _
      $region32: #{tpu_custom_call.1} parent=5 // pred_fallthru
        _
      %p272 = scmp.le.s32.totalorder 1, %s15
      %p273 = scmp.lt.s32.totalorder %s15, 5
      %p274 = pnand %p272, %p273
      %p275 = pneg %p274
      // Predicated region
      $region41: #{tpu_custom_call.1} parent=5 // pred_check
        _
      $region42: #{tpu_custom_call.1} parent=5 // pred_check_branch
        %277 = sbr.rel (%p274) target = $region44
      $region43: #{tpu_custom_call.1} parent=5 // pred_region
        %s278 = ssub.s32 %s15, 1
        %s279 = smul.u32 8, %s25
        %s280 = ssub.s32 18, %s279
        %p281 = scmp.lt.s32.totalorder %s280, 8
        %s282 = scalar_select %p281, %s280, 8
        %s283 = smul.u32 128, %s282
        %s284 = smul.u32 %s283, 3
        %p285 = scmp.lt.s32.totalorder %s24, 1
        %s286 = scalar_select %p285, %s24, 1
        %p287 = scmp.lt.s32.totalorder %s279, 17
        %s288 = scalar_select %p287, %s279, 17
        %s289 = smul.addr %s288, 3
        %s290 = smul.addr %s286, 54
        %s291 = sadd.s32 %s289, %s290
        %s292 = smul.addr %s291, 8
        %s293 = scalar_lea.vmem %s0, %s292
        %p294 = pneg %p55
        %p295 = pneg %p52
        %s296 = sadd.s32 %s25, 1
        %s297 = smul.u32 %s296, 4
        %s298 = smul.u32 2, %s297
        %p299 = scmp.lt.s32.totalorder %s24, 1
        %s300 = scalar_select %p299, %s24, 1
        %p301 = scmp.lt.s32.totalorder %s298, 17
        %s302 = scalar_select %p301, %s298, 17
        %s303 = smul.addr %s302, 3
        %s304 = smul.addr %s300, 54
        %s305 = sadd.s32 %s303, %s304
        %s306 = smul.addr %s305, 8
        %s307 = scalar_lea.vmem %s1, %s306
        %p308 = pneg %p87
        %p309 = pneg %p84
        %p310 = pneg %p108
        %p311 = pneg %p105
        %p312 = pneg %p129
        %p313 = pneg %p126
        %p314 = pneg %p150
        %p315 = pneg %p147
        %p316 = pneg %p171
        %p317 = pneg %p168
        %p318 = pneg %p199
        %p319 = pneg %p196
        %s320 = sand.u32 %s186, 1
        %s321 = scalar_lea.sflag [#allocation4], %s320
        %s322 = sand.u32 %s186, 1
        %s323 = smul.addr %s322, 128
        %s324 = scalar_lea.vmem [#allocation3], %s323
        %s325 = smul.u32 8, %s25
        %s326 = ssub.s32 18, %s325
        %p327 = scmp.lt.s32.totalorder %s326, 8
        %s328 = scalar_select %p327, %s326, 8
        %s329 = smul.u32 128, %s328
        %s330 = smul.u32 %s329, 3
        %p331 = scmp.lt.s32.totalorder %s24, 1
        %s332 = scalar_select %p331, %s24, 1
        %p333 = scmp.lt.s32.totalorder %s325, 17
        %s334 = scalar_select %p333, %s325, 17
        %s335 = smul.addr %s334, 3
        %s336 = smul.addr %s332, 54
        %s337 = sadd.s32 %s335, %s336
        %s338 = smul.addr %s337, 8
        %s339 = scalar_lea.vmem %s0, %s338
        %s340 = smul.u32 8, %s25
        %s341 = ssub.s32 18, %s340
        %p342 = scmp.lt.s32.totalorder %s341, 8
        %s343 = scalar_select %p342, %s341, 8
        %s344 = smul.u32 128, %s343
        %s345 = smul.u32 %s344, 3
        %s346 = sadd.s32 %s25, 1
        %s347 = smul.u32 %s346, 4
        %s348 = smul.u32 2, %s347
        %p349 = scmp.lt.s32.totalorder %s24, 1
        %s350 = scalar_select %p349, %s24, 1
        %p351 = scmp.lt.s32.totalorder %s348, 17
        %s352 = scalar_select %p351, %s348, 17
        %s353 = smul.addr %s352, 3
        %s354 = smul.addr %s350, 54
        %s355 = sadd.s32 %s353, %s354
        %s356 = smul.addr %s355, 8
        %s357 = scalar_lea.vmem %s1, %s356
        %s358 = sadd.s32 %s25, 1
        %s359 = smul.u32 %s358, 4
        %s360 = smul.u32 2, %s359
        %s361 = smul.u32 16, %s25
        %v362 = vld [vmem:[%s2] sm:$0x7]
        %v363 = vld [vmem:[%s2 + $0x4] sm:$0x7]
        %v364 = vld [vmem:[%s2 + $0x8] sm:$0x7]
        %v365 = vld [vmem:[%s3] sm:$0x1]
        %v366 = vld [vmem:[%s339] sm:$0xff]
        %v367 = vld [vmem:[%s339 + $0x8] sm:$0xff]
        %v368 = vld [vmem:[%s339 + $0x10] sm:$0x3]
        %v369 = vlaneseq
        %v370 = vshrl.u32 %v369, 7
        %v371 = vsub.s32 0, %v370
        %v372 = vrot.slane %v362, %v371
        %v373 = vmul.f32 %v366, %v372
        %v374 = vmul.f32 %v367, %v372
        %v375 = vadd.f32 %v373, 0.0
        %v376 = vadd.f32 %v374, 0.0
        %v377 = vlaneseq
        %v378 = vshrl.u32 %v377, 7
        %v379 = vsub.s32 1, %v378
        %v380 = vrot.slane %v362, %v379
        %v381 = vmul.f32 %v366, %v380
        %v382 = vmul.f32 %v367, %v380
        %v383 = vmul.f32 %v368, %v380
        %vm387 = vcmask 1046528
        %v388 = vrot.slane %v381, 1
        %v389 = vrot.slane %v382, 1
        %v390 = vsel %vm387, %v388, %v389
        %v391 = vrot.slane %v383, 1
        %v392 = vsel %vm387, %v389, %v391
        %v395 = vadd.f32 %v375, %v390
        %v396 = vadd.f32 %v376, %v392
        %v397 = vlaneseq
        %v398 = vshrl.u32 %v397, 7
        %v399 = vsub.s32 2, %v398
        %v400 = vrot.slane %v362, %v399
        %v401 = vmul.f32 %v366, %v400
        %v402 = vmul.f32 %v367, %v400
        %v403 = vmul.f32 %v368, %v400
        %vm407 = vcmask 1045504
        %v408 = vrot.slane %v401, 2
        %v409 = vrot.slane %v402, 2
        %v410 = vsel %vm407, %v408, %v409
        %v411 = vrot.slane %v403, 2
        %v412 = vsel %vm407, %v409, %v411
        %v415 = vadd.f32 %v395, %v410
        %v416 = vadd.f32 %v396, %v412
        %s417 = scalar_lea.vmem %s339, 24
        %v418 = vld [vmem:[%s417] sm:$0xff]
        %v419 = vld [vmem:[%s417 + $0x8] sm:$0xff]
        %v420 = vld [vmem:[%s417 + $0x10] sm:$0x3]
        %v421 = vlaneseq
        %v422 = vshrl.u32 %v421, 7
        %v423 = vsub.s32 0, %v422
        %v424 = vrot.slane %v363, %v423
        %v425 = vmul.f32 %v418, %v424
        %v426 = vmul.f32 %v419, %v424
        %v427 = vadd.f32 %v415, %v425
        %v428 = vadd.f32 %v416, %v426
        %v429 = vlaneseq
        %v430 = vshrl.u32 %v429, 7
        %v431 = vsub.s32 1, %v430
        %v432 = vrot.slane %v363, %v431
        %v433 = vmul.f32 %v418, %v432
        %v434 = vmul.f32 %v419, %v432
        %v435 = vmul.f32 %v420, %v432
        %v439 = vrot.slane %v433, 1
        %v440 = vrot.slane %v434, 1
        %v441 = vsel %vm387, %v439, %v440
        %v442 = vrot.slane %v435, 1
        %v443 = vsel %vm387, %v440, %v442
        %v446 = vadd.f32 %v427, %v441
        %v447 = vadd.f32 %v428, %v443
        %v448 = vlaneseq
        %v449 = vshrl.u32 %v448, 7
        %v450 = vsub.s32 2, %v449
        %v451 = vrot.slane %v363, %v450
        %v452 = vmul.f32 %v418, %v451
        %v453 = vmul.f32 %v419, %v451
        %v454 = vmul.f32 %v420, %v451
        %v458 = vrot.slane %v452, 2
        %v459 = vrot.slane %v453, 2
        %v460 = vsel %vm407, %v458, %v459
        %v461 = vrot.slane %v454, 2
        %v462 = vsel %vm407, %v459, %v461
        %v465 = vadd.f32 %v446, %v460
        %v466 = vadd.f32 %v447, %v462
        %s467 = scalar_lea.vmem %s339, 48
        %v468 = vld [vmem:[%s467] sm:$0xff]
        %v469 = vld [vmem:[%s467 + $0x8] sm:$0xff]
        %v470 = vld [vmem:[%s467 + $0x10] sm:$0x3]
        %v471 = vlaneseq
        %v472 = vshrl.u32 %v471, 7
        %v473 = vsub.s32 0, %v472
        %v474 = vrot.slane %v364, %v473
        %v475 = vmul.f32 %v468, %v474
        %v476 = vmul.f32 %v469, %v474
        %v477 = vadd.f32 %v465, %v475
        %v478 = vadd.f32 %v466, %v476
        %v479 = vlaneseq
        %v480 = vshrl.u32 %v479, 7
        %v481 = vsub.s32 1, %v480
        %v482 = vrot.slane %v364, %v481
        %v483 = vmul.f32 %v468, %v482
        %v484 = vmul.f32 %v469, %v482
        %v485 = vmul.f32 %v470, %v482
        %v489 = vrot.slane %v483, 1
        %v490 = vrot.slane %v484, 1
        %v491 = vsel %vm387, %v489, %v490
        %v492 = vrot.slane %v485, 1
        %v493 = vsel %vm387, %v490, %v492
        %v496 = vadd.f32 %v477, %v491
        %v497 = vadd.f32 %v478, %v493
        %v498 = vlaneseq
        %v499 = vshrl.u32 %v498, 7
        %v500 = vsub.s32 2, %v499
        %v501 = vrot.slane %v364, %v500
        %v502 = vmul.f32 %v468, %v501
        %v503 = vmul.f32 %v469, %v501
        %v504 = vmul.f32 %v470, %v501
        %v508 = vrot.slane %v502, 2
        %v509 = vrot.slane %v503, 2
        %v510 = vsel %vm407, %v508, %v509
        %v511 = vrot.slane %v504, 2
        %v512 = vsel %vm407, %v509, %v511
        %v515 = vadd.f32 %v496, %v510
        %v516 = vadd.f32 %v497, %v512
        %v518 = vlaneseq
        %v519 = vshrl.u32 %v518, 7
        %v520 = vsub.s32 0, %v519
        %v521 = vrot.slane %v365, %v520
        %v523 = vadd.f32 %v515, %v521
        %v524 = vadd.f32 %v516, %v521
        %v525 = vmax.f32 %v523, 0.0
        %v526 = vmax.f32 %v524, 0.0
        %527 = vst [vmem:[#allocation2] sm:$0xff] %v525
        %528 = vst [vmem:[#allocation2 + $0x8] sm:$0xff] %v526
        %v529 = vld [vmem:[%s417] sm:$0xff]
        %v530 = vld [vmem:[%s417 + $0x8] sm:$0xff]
        %v531 = vld [vmem:[%s417 + $0x10] sm:$0x3]
        %v532 = vmul.f32 %v529, %v372
        %v533 = vmul.f32 %v530, %v372
        %v534 = vadd.f32 %v532, 0.0
        %v535 = vadd.f32 %v533, 0.0
        %v536 = vmul.f32 %v529, %v380
        %v537 = vmul.f32 %v530, %v380
        %v538 = vmul.f32 %v531, %v380
        %v542 = vrot.slane %v536, 1
        %v543 = vrot.slane %v537, 1
        %v544 = vsel %vm387, %v542, %v543
        %v545 = vrot.slane %v538, 1
        %v546 = vsel %vm387, %v543, %v545
        %v549 = vadd.f32 %v534, %v544
        %v550 = vadd.f32 %v535, %v546
        %v551 = vmul.f32 %v529, %v400
        %v552 = vmul.f32 %v530, %v400
        %v553 = vmul.f32 %v531, %v400
        %v557 = vrot.slane %v551, 2
        %v558 = vrot.slane %v552, 2
        %v559 = vsel %vm407, %v557, %v558
        %v560 = vrot.slane %v553, 2
        %v561 = vsel %vm407, %v558, %v560
        %v564 = vadd.f32 %v549, %v559
        %v565 = vadd.f32 %v550, %v561
        %v566 = vld [vmem:[%s467] sm:$0xff]
        %v567 = vld [vmem:[%s467 + $0x8] sm:$0xff]
        %v568 = vld [vmem:[%s467 + $0x10] sm:$0x3]
        %v569 = vmul.f32 %v566, %v424
        %v570 = vmul.f32 %v567, %v424
        %v571 = vadd.f32 %v564, %v569
        %v572 = vadd.f32 %v565, %v570
        %v573 = vmul.f32 %v566, %v432
        %v574 = vmul.f32 %v567, %v432
        %v575 = vmul.f32 %v568, %v432
        %v579 = vrot.slane %v573, 1
        %v580 = vrot.slane %v574, 1
        %v581 = vsel %vm387, %v579, %v580
        %v582 = vrot.slane %v575, 1
        %v583 = vsel %vm387, %v580, %v582
        %v586 = vadd.f32 %v571, %v581
        %v587 = vadd.f32 %v572, %v583
        %v588 = vmul.f32 %v566, %v451
        %v589 = vmul.f32 %v567, %v451
        %v590 = vmul.f32 %v568, %v451
        %v594 = vrot.slane %v588, 2
        %v595 = vrot.slane %v589, 2
        %v596 = vsel %vm407, %v594, %v595
        %v597 = vrot.slane %v590, 2
        %v598 = vsel %vm407, %v595, %v597
        %v601 = vadd.f32 %v586, %v596
        %v602 = vadd.f32 %v587, %v598
        %s603 = scalar_lea.vmem %s339, 72
        %v604 = vld [vmem:[%s603] sm:$0xff]
        %v605 = vld [vmem:[%s603 + $0x8] sm:$0xff]
        %v606 = vld [vmem:[%s603 + $0x10] sm:$0x3]
        %v607 = vmul.f32 %v604, %v474
        %v608 = vmul.f32 %v605, %v474
        %v609 = vadd.f32 %v601, %v607
        %v610 = vadd.f32 %v602, %v608
        %v611 = vmul.f32 %v604, %v482
        %v612 = vmul.f32 %v605, %v482
        %v613 = vmul.f32 %v606, %v482
        %v617 = vrot.slane %v611, 1
        %v618 = vrot.slane %v612, 1
        %v619 = vsel %vm387, %v617, %v618
        %v620 = vrot.slane %v613, 1
        %v621 = vsel %vm387, %v618, %v620
        %v624 = vadd.f32 %v609, %v619
        %v625 = vadd.f32 %v610, %v621
        %v626 = vmul.f32 %v604, %v501
        %v627 = vmul.f32 %v605, %v501
        %v628 = vmul.f32 %v606, %v501
        %v632 = vrot.slane %v626, 2
        %v633 = vrot.slane %v627, 2
        %v634 = vsel %vm407, %v632, %v633
        %v635 = vrot.slane %v628, 2
        %v636 = vsel %vm407, %v633, %v635
        %v639 = vadd.f32 %v624, %v634
        %v640 = vadd.f32 %v625, %v636
        %v641 = vadd.f32 %v639, %v521
        %v642 = vadd.f32 %v640, %v521
        %v643 = vmax.f32 %v641, 0.0
        %v644 = vmax.f32 %v642, 0.0
        %645 = vst [vmem:[#allocation2 + $0x10] sm:$0xff] %v643
        %646 = vst [vmem:[#allocation2 + $0x18] sm:$0xff] %v644
        %v647 = vld [vmem:[%s467] sm:$0xff]
        %v648 = vld [vmem:[%s467 + $0x8] sm:$0xff]
        %v649 = vld [vmem:[%s467 + $0x10] sm:$0x3]
        %v650 = vmul.f32 %v647, %v372
        %v651 = vmul.f32 %v648, %v372
        %v652 = vadd.f32 %v650, 0.0
        %v653 = vadd.f32 %v651, 0.0
        %v654 = vmul.f32 %v647, %v380
        %v655 = vmul.f32 %v648, %v380
        %v656 = vmul.f32 %v649, %v380
        %v660 = vrot.slane %v654, 1
        %v661 = vrot.slane %v655, 1
        %v662 = vsel %vm387, %v660, %v661
        %v663 = vrot.slane %v656, 1
        %v664 = vsel %vm387, %v661, %v663
        %v667 = vadd.f32 %v652, %v662
        %v668 = vadd.f32 %v653, %v664
        %v669 = vmul.f32 %v647, %v400
        %v670 = vmul.f32 %v648, %v400
        %v671 = vmul.f32 %v649, %v400
        %v675 = vrot.slane %v669, 2
        %v676 = vrot.slane %v670, 2
        %v677 = vsel %vm407, %v675, %v676
        %v678 = vrot.slane %v671, 2
        %v679 = vsel %vm407, %v676, %v678
        %v682 = vadd.f32 %v667, %v677
        %v683 = vadd.f32 %v668, %v679
        %v684 = vld [vmem:[%s603] sm:$0xff]
        %v685 = vld [vmem:[%s603 + $0x8] sm:$0xff]
        %v686 = vld [vmem:[%s603 + $0x10] sm:$0x3]
        %v687 = vmul.f32 %v684, %v424
        %v688 = vmul.f32 %v685, %v424
        %v689 = vadd.f32 %v682, %v687
        %v690 = vadd.f32 %v683, %v688
        %v691 = vmul.f32 %v684, %v432
        %v692 = vmul.f32 %v685, %v432
        %v693 = vmul.f32 %v686, %v432
        %v697 = vrot.slane %v691, 1
        %v698 = vrot.slane %v692, 1
        %v699 = vsel %vm387, %v697, %v698
        %v700 = vrot.slane %v693, 1
        %v701 = vsel %vm387, %v698, %v700
        %v704 = vadd.f32 %v689, %v699
        %v705 = vadd.f32 %v690, %v701
        %v706 = vmul.f32 %v684, %v451
        %v707 = vmul.f32 %v685, %v451
        %v708 = vmul.f32 %v686, %v451
        %v712 = vrot.slane %v706, 2
        %v713 = vrot.slane %v707, 2
        %v714 = vsel %vm407, %v712, %v713
        %v715 = vrot.slane %v708, 2
        %v716 = vsel %vm407, %v713, %v715
        %v719 = vadd.f32 %v704, %v714
        %v720 = vadd.f32 %v705, %v716
        %s721 = scalar_lea.vmem %s339, 96
        %v722 = vld [vmem:[%s721] sm:$0xff]
        %v723 = vld [vmem:[%s721 + $0x8] sm:$0xff]
        %v724 = vld [vmem:[%s721 + $0x10] sm:$0x3]
        %v725 = vmul.f32 %v722, %v474
        %v726 = vmul.f32 %v723, %v474
        %v727 = vadd.f32 %v719, %v725
        %v728 = vadd.f32 %v720, %v726
        %v729 = vmul.f32 %v722, %v482
        %v730 = vmul.f32 %v723, %v482
        %v731 = vmul.f32 %v724, %v482
        %v735 = vrot.slane %v729, 1
        %v736 = vrot.slane %v730, 1
        %v737 = vsel %vm387, %v735, %v736
        %v738 = vrot.slane %v731, 1
        %v739 = vsel %vm387, %v736, %v738
        %v742 = vadd.f32 %v727, %v737
        %v743 = vadd.f32 %v728, %v739
        %v744 = vmul.f32 %v722, %v501
        %v745 = vmul.f32 %v723, %v501
        %v746 = vmul.f32 %v724, %v501
        %v750 = vrot.slane %v744, 2
        %v751 = vrot.slane %v745, 2
        %v752 = vsel %vm407, %v750, %v751
        %v753 = vrot.slane %v746, 2
        %v754 = vsel %vm407, %v751, %v753
        %v757 = vadd.f32 %v742, %v752
        %v758 = vadd.f32 %v743, %v754
        %v759 = vadd.f32 %v757, %v521
        %v760 = vadd.f32 %v758, %v521
        %v761 = vmax.f32 %v759, 0.0
        %v762 = vmax.f32 %v760, 0.0
        %763 = vst [vmem:[#allocation2 + $0x20] sm:$0xff] %v761
        %764 = vst [vmem:[#allocation2 + $0x28] sm:$0xff] %v762
        %v765 = vld [vmem:[%s603] sm:$0xff]
        %v766 = vld [vmem:[%s603 + $0x8] sm:$0xff]
        %v767 = vld [vmem:[%s603 + $0x10] sm:$0x3]
        %v768 = vmul.f32 %v765, %v372
        %v769 = vmul.f32 %v766, %v372
        %v770 = vadd.f32 %v768, 0.0
        %v771 = vadd.f32 %v769, 0.0
        %v772 = vmul.f32 %v765, %v380
        %v773 = vmul.f32 %v766, %v380
        %v774 = vmul.f32 %v767, %v380
        %v778 = vrot.slane %v772, 1
        %v779 = vrot.slane %v773, 1
        %v780 = vsel %vm387, %v778, %v779
        %v781 = vrot.slane %v774, 1
        %v782 = vsel %vm387, %v779, %v781
        %v785 = vadd.f32 %v770, %v780
        %v786 = vadd.f32 %v771, %v782
        %v787 = vmul.f32 %v765, %v400
        %v788 = vmul.f32 %v766, %v400
        %v789 = vmul.f32 %v767, %v400
        %v793 = vrot.slane %v787, 2
        %v794 = vrot.slane %v788, 2
        %v795 = vsel %vm407, %v793, %v794
        %v796 = vrot.slane %v789, 2
        %v797 = vsel %vm407, %v794, %v796
        %v800 = vadd.f32 %v785, %v795
        %v801 = vadd.f32 %v786, %v797
        %v802 = vld [vmem:[%s721] sm:$0xff]
        %v803 = vld [vmem:[%s721 + $0x8] sm:$0xff]
        %v804 = vld [vmem:[%s721 + $0x10] sm:$0x3]
        %v805 = vmul.f32 %v802, %v424
        %v806 = vmul.f32 %v803, %v424
        %v807 = vadd.f32 %v800, %v805
        %v808 = vadd.f32 %v801, %v806
        %v809 = vmul.f32 %v802, %v432
        %v810 = vmul.f32 %v803, %v432
        %v811 = vmul.f32 %v804, %v432
        %v815 = vrot.slane %v809, 1
        %v816 = vrot.slane %v810, 1
        %v817 = vsel %vm387, %v815, %v816
        %v818 = vrot.slane %v811, 1
        %v819 = vsel %vm387, %v816, %v818
        %v822 = vadd.f32 %v807, %v817
        %v823 = vadd.f32 %v808, %v819
        %v824 = vmul.f32 %v802, %v451
        %v825 = vmul.f32 %v803, %v451
        %v826 = vmul.f32 %v804, %v451
        %v830 = vrot.slane %v824, 2
        %v831 = vrot.slane %v825, 2
        %v832 = vsel %vm407, %v830, %v831
        %v833 = vrot.slane %v826, 2
        %v834 = vsel %vm407, %v831, %v833
        %v837 = vadd.f32 %v822, %v832
        %v838 = vadd.f32 %v823, %v834
        %s839 = scalar_lea.vmem %s339, 120
        %v840 = vld [vmem:[%s839] sm:$0xff]
        %v841 = vld [vmem:[%s839 + $0x8] sm:$0xff]
        %v842 = vld [vmem:[%s839 + $0x10] sm:$0x3]
        %v843 = vmul.f32 %v840, %v474
        %v844 = vmul.f32 %v841, %v474
        %v845 = vadd.f32 %v837, %v843
        %v846 = vadd.f32 %v838, %v844
        %v847 = vmul.f32 %v840, %v482
        %v848 = vmul.f32 %v841, %v482
        %v849 = vmul.f32 %v842, %v482
        %v853 = vrot.slane %v847, 1
        %v854 = vrot.slane %v848, 1
        %v855 = vsel %vm387, %v853, %v854
        %v856 = vrot.slane %v849, 1
        %v857 = vsel %vm387, %v854, %v856
        %v860 = vadd.f32 %v845, %v855
        %v861 = vadd.f32 %v846, %v857
        %v862 = vmul.f32 %v840, %v501
        %v863 = vmul.f32 %v841, %v501
        %v864 = vmul.f32 %v842, %v501
        %v868 = vrot.slane %v862, 2
        %v869 = vrot.slane %v863, 2
        %v870 = vsel %vm407, %v868, %v869
        %v871 = vrot.slane %v864, 2
        %v872 = vsel %vm407, %v869, %v871
        %v875 = vadd.f32 %v860, %v870
        %v876 = vadd.f32 %v861, %v872
        %v877 = vadd.f32 %v875, %v521
        %v878 = vadd.f32 %v876, %v521
        %v879 = vmax.f32 %v877, 0.0
        %v880 = vmax.f32 %v878, 0.0
        %881 = vst [vmem:[#allocation2 + $0x30] sm:$0xff] %v879
        %882 = vst [vmem:[#allocation2 + $0x38] sm:$0xff] %v880
        %v883 = vld [vmem:[%s721] sm:$0xff]
        %v884 = vld [vmem:[%s721 + $0x8] sm:$0xff]
        %v885 = vld [vmem:[%s721 + $0x10] sm:$0x3]
        %v886 = vmul.f32 %v883, %v372
        %v887 = vmul.f32 %v884, %v372
        %v888 = vadd.f32 %v886, 0.0
        %v889 = vadd.f32 %v887, 0.0
        %v890 = vmul.f32 %v883, %v380
        %v891 = vmul.f32 %v884, %v380
        %v892 = vmul.f32 %v885, %v380
        %v896 = vrot.slane %v890, 1
        %v897 = vrot.slane %v891, 1
        %v898 = vsel %vm387, %v896, %v897
        %v899 = vrot.slane %v892, 1
        %v900 = vsel %vm387, %v897, %v899
        %v903 = vadd.f32 %v888, %v898
        %v904 = vadd.f32 %v889, %v900
        %v905 = vmul.f32 %v883, %v400
        %v906 = vmul.f32 %v884, %v400
        %v907 = vmul.f32 %v885, %v400
        %v911 = vrot.slane %v905, 2
        %v912 = vrot.slane %v906, 2
        %v913 = vsel %vm407, %v911, %v912
        %v914 = vrot.slane %v907, 2
        %v915 = vsel %vm407, %v912, %v914
        %v918 = vadd.f32 %v903, %v913
        %v919 = vadd.f32 %v904, %v915
        %v920 = vld [vmem:[%s839] sm:$0xff]
        %v921 = vld [vmem:[%s839 + $0x8] sm:$0xff]
        %v922 = vld [vmem:[%s839 + $0x10] sm:$0x3]
        %v923 = vmul.f32 %v920, %v424
        %v924 = vmul.f32 %v921, %v424
        %v925 = vadd.f32 %v918, %v923
        %v926 = vadd.f32 %v919, %v924
        %v927 = vmul.f32 %v920, %v432
        %v928 = vmul.f32 %v921, %v432
        %v929 = vmul.f32 %v922, %v432
        %v933 = vrot.slane %v927, 1
        %v934 = vrot.slane %v928, 1
        %v935 = vsel %vm387, %v933, %v934
        %v936 = vrot.slane %v929, 1
        %v937 = vsel %vm387, %v934, %v936
        %v940 = vadd.f32 %v925, %v935
        %v941 = vadd.f32 %v926, %v937
        %v942 = vmul.f32 %v920, %v451
        %v943 = vmul.f32 %v921, %v451
        %v944 = vmul.f32 %v922, %v451
        %v948 = vrot.slane %v942, 2
        %v949 = vrot.slane %v943, 2
        %v950 = vsel %vm407, %v948, %v949
        %v951 = vrot.slane %v944, 2
        %v952 = vsel %vm407, %v949, %v951
        %v955 = vadd.f32 %v940, %v950
        %v956 = vadd.f32 %v941, %v952
        %s957 = scalar_lea.vmem %s339, 144
        %v958 = vld [vmem:[%s957] sm:$0xff]
        %v959 = vld [vmem:[%s957 + $0x8] sm:$0xff]
        %v960 = vld [vmem:[%s957 + $0x10] sm:$0x3]
        %v961 = vmul.f32 %v958, %v474
        %v962 = vmul.f32 %v959, %v474
        %v963 = vadd.f32 %v955, %v961
        %v964 = vadd.f32 %v956, %v962
        %v965 = vmul.f32 %v958, %v482
        %v966 = vmul.f32 %v959, %v482
        %v967 = vmul.f32 %v960, %v482
        %v971 = vrot.slane %v965, 1
        %v972 = vrot.slane %v966, 1
        %v973 = vsel %vm387, %v971, %v972
        %v974 = vrot.slane %v967, 1
        %v975 = vsel %vm387, %v972, %v974
        %v978 = vadd.f32 %v963, %v973
        %v979 = vadd.f32 %v964, %v975
        %v980 = vmul.f32 %v958, %v501
        %v981 = vmul.f32 %v959, %v501
        %v982 = vmul.f32 %v960, %v501
        %v986 = vrot.slane %v980, 2
        %v987 = vrot.slane %v981, 2
        %v988 = vsel %vm407, %v986, %v987
        %v989 = vrot.slane %v982, 2
        %v990 = vsel %vm407, %v987, %v989
        %v993 = vadd.f32 %v978, %v988
        %v994 = vadd.f32 %v979, %v990
        %v995 = vadd.f32 %v993, %v521
        %v996 = vadd.f32 %v994, %v521
        %v997 = vmax.f32 %v995, 0.0
        %v998 = vmax.f32 %v996, 0.0
        %999 = vst [vmem:[#allocation2 + $0x40] sm:$0xff] %v997
        %1000 = vst [vmem:[#allocation2 + $0x48] sm:$0xff] %v998
        %v1001 = vld [vmem:[%s839] sm:$0xff]
        %v1002 = vld [vmem:[%s839 + $0x8] sm:$0xff]
        %v1003 = vld [vmem:[%s839 + $0x10] sm:$0x3]
        %v1004 = vmul.f32 %v1001, %v372
        %v1005 = vmul.f32 %v1002, %v372
        %v1006 = vadd.f32 %v1004, 0.0
        %v1007 = vadd.f32 %v1005, 0.0
        %v1008 = vmul.f32 %v1001, %v380
        %v1009 = vmul.f32 %v1002, %v380
        %v1010 = vmul.f32 %v1003, %v380
        %v1014 = vrot.slane %v1008, 1
        %v1015 = vrot.slane %v1009, 1
        %v1016 = vsel %vm387, %v1014, %v1015
        %v1017 = vrot.slane %v1010, 1
        %v1018 = vsel %vm387, %v1015, %v1017
        %v1021 = vadd.f32 %v1006, %v1016
        %v1022 = vadd.f32 %v1007, %v1018
        %v1023 = vmul.f32 %v1001, %v400
        %v1024 = vmul.f32 %v1002, %v400
        %v1025 = vmul.f32 %v1003, %v400
        %v1029 = vrot.slane %v1023, 2
        %v1030 = vrot.slane %v1024, 2
        %v1031 = vsel %vm407, %v1029, %v1030
        %v1032 = vrot.slane %v1025, 2
        %v1033 = vsel %vm407, %v1030, %v1032
        %v1036 = vadd.f32 %v1021, %v1031
        %v1037 = vadd.f32 %v1022, %v1033
        %v1038 = vld [vmem:[%s957] sm:$0xff]
        %v1039 = vld [vmem:[%s957 + $0x8] sm:$0xff]
        %v1040 = vld [vmem:[%s957 + $0x10] sm:$0x3]
        %v1041 = vmul.f32 %v1038, %v424
        %v1042 = vmul.f32 %v1039, %v424
        %v1043 = vadd.f32 %v1036, %v1041
        %v1044 = vadd.f32 %v1037, %v1042
        %v1045 = vmul.f32 %v1038, %v432
        %v1046 = vmul.f32 %v1039, %v432
        %v1047 = vmul.f32 %v1040, %v432
        %v1051 = vrot.slane %v1045, 1
        %v1052 = vrot.slane %v1046, 1
        %v1053 = vsel %vm387, %v1051, %v1052
        %v1054 = vrot.slane %v1047, 1
        %v1055 = vsel %vm387, %v1052, %v1054
        %v1058 = vadd.f32 %v1043, %v1053
        %v1059 = vadd.f32 %v1044, %v1055
        %v1060 = vmul.f32 %v1038, %v451
        %v1061 = vmul.f32 %v1039, %v451
        %v1062 = vmul.f32 %v1040, %v451
        %v1066 = vrot.slane %v1060, 2
        %v1067 = vrot.slane %v1061, 2
        %v1068 = vsel %vm407, %v1066, %v1067
        %v1069 = vrot.slane %v1062, 2
        %v1070 = vsel %vm407, %v1067, %v1069
        %v1073 = vadd.f32 %v1058, %v1068
        %v1074 = vadd.f32 %v1059, %v1070
        %s1075 = scalar_lea.vmem %s339, 168
        %v1076 = vld [vmem:[%s1075] sm:$0xff]
        %v1077 = vld [vmem:[%s1075 + $0x8] sm:$0xff]
        %v1078 = vld [vmem:[%s1075 + $0x10] sm:$0x3]
        %v1079 = vmul.f32 %v1076, %v474
        %v1080 = vmul.f32 %v1077, %v474
        %v1081 = vadd.f32 %v1073, %v1079
        %v1082 = vadd.f32 %v1074, %v1080
        %v1083 = vmul.f32 %v1076, %v482
        %v1084 = vmul.f32 %v1077, %v482
        %v1085 = vmul.f32 %v1078, %v482
        %v1089 = vrot.slane %v1083, 1
        %v1090 = vrot.slane %v1084, 1
        %v1091 = vsel %vm387, %v1089, %v1090
        %v1092 = vrot.slane %v1085, 1
        %v1093 = vsel %vm387, %v1090, %v1092
        %v1096 = vadd.f32 %v1081, %v1091
        %v1097 = vadd.f32 %v1082, %v1093
        %v1098 = vmul.f32 %v1076, %v501
        %v1099 = vmul.f32 %v1077, %v501
        %v1100 = vmul.f32 %v1078, %v501
        %v1104 = vrot.slane %v1098, 2
        %v1105 = vrot.slane %v1099, 2
        %v1106 = vsel %vm407, %v1104, %v1105
        %v1107 = vrot.slane %v1100, 2
        %v1108 = vsel %vm407, %v1105, %v1107
        %v1111 = vadd.f32 %v1096, %v1106
        %v1112 = vadd.f32 %v1097, %v1108
        %v1113 = vadd.f32 %v1111, %v521
        %v1114 = vadd.f32 %v1112, %v521
        %v1115 = vmax.f32 %v1113, 0.0
        %v1116 = vmax.f32 %v1114, 0.0
        %1117 = vst [vmem:[#allocation2 + $0x50] sm:$0xff] %v1115
        %1118 = vst [vmem:[#allocation2 + $0x58] sm:$0xff] %v1116
        %v1119 = vld [vmem:[%s957] sm:$0xff]
        %v1120 = vld [vmem:[%s957 + $0x8] sm:$0xff]
        %v1121 = vld [vmem:[%s957 + $0x10] sm:$0x3]
        %v1122 = vmul.f32 %v1119, %v372
        %v1123 = vmul.f32 %v1120, %v372
        %v1124 = vadd.f32 %v1122, 0.0
        %v1125 = vadd.f32 %v1123, 0.0
        %v1126 = vmul.f32 %v1119, %v380
        %v1127 = vmul.f32 %v1120, %v380
        %v1128 = vmul.f32 %v1121, %v380
        %v1132 = vrot.slane %v1126, 1
        %v1133 = vrot.slane %v1127, 1
        %v1134 = vsel %vm387, %v1132, %v1133
        %v1135 = vrot.slane %v1128, 1
        %v1136 = vsel %vm387, %v1133, %v1135
        %v1139 = vadd.f32 %v1124, %v1134
        %v1140 = vadd.f32 %v1125, %v1136
        %v1141 = vmul.f32 %v1119, %v400
        %v1142 = vmul.f32 %v1120, %v400
        %v1143 = vmul.f32 %v1121, %v400
        %v1147 = vrot.slane %v1141, 2
        %v1148 = vrot.slane %v1142, 2
        %v1149 = vsel %vm407, %v1147, %v1148
        %v1150 = vrot.slane %v1143, 2
        %v1151 = vsel %vm407, %v1148, %v1150
        %v1154 = vadd.f32 %v1139, %v1149
        %v1155 = vadd.f32 %v1140, %v1151
        %v1156 = vld [vmem:[%s1075] sm:$0xff]
        %v1157 = vld [vmem:[%s1075 + $0x8] sm:$0xff]
        %v1158 = vld [vmem:[%s1075 + $0x10] sm:$0x3]
        %v1159 = vmul.f32 %v1156, %v424
        %v1160 = vmul.f32 %v1157, %v424
        %v1161 = vadd.f32 %v1154, %v1159
        %v1162 = vadd.f32 %v1155, %v1160
        %v1163 = vmul.f32 %v1156, %v432
        %v1164 = vmul.f32 %v1157, %v432
        %v1165 = vmul.f32 %v1158, %v432
        %v1169 = vrot.slane %v1163, 1
        %v1170 = vrot.slane %v1164, 1
        %v1171 = vsel %vm387, %v1169, %v1170
        %v1172 = vrot.slane %v1165, 1
        %v1173 = vsel %vm387, %v1170, %v1172
        %v1176 = vadd.f32 %v1161, %v1171
        %v1177 = vadd.f32 %v1162, %v1173
        %v1178 = vmul.f32 %v1156, %v451
        %v1179 = vmul.f32 %v1157, %v451
        %v1180 = vmul.f32 %v1158, %v451
        %v1184 = vrot.slane %v1178, 2
        %v1185 = vrot.slane %v1179, 2
        %v1186 = vsel %vm407, %v1184, %v1185
        %v1187 = vrot.slane %v1180, 2
        %v1188 = vsel %vm407, %v1185, %v1187
        %v1191 = vadd.f32 %v1176, %v1186
        %v1192 = vadd.f32 %v1177, %v1188
        %v1193 = vld [vmem:[%s357] sm:$0xff]
        %v1194 = vld [vmem:[%s357 + $0x8] sm:$0xff]
        %v1195 = vld [vmem:[%s357 + $0x10] sm:$0x3]
        %v1196 = vmul.f32 %v1193, %v474
        %v1197 = vmul.f32 %v1194, %v474
        %v1198 = vadd.f32 %v1191, %v1196
        %v1199 = vadd.f32 %v1192, %v1197
        %v1200 = vmul.f32 %v1193, %v482
        %v1201 = vmul.f32 %v1194, %v482
        %v1202 = vmul.f32 %v1195, %v482
        %v1206 = vrot.slane %v1200, 1
        %v1207 = vrot.slane %v1201, 1
        %v1208 = vsel %vm387, %v1206, %v1207
        %v1209 = vrot.slane %v1202, 1
        %v1210 = vsel %vm387, %v1207, %v1209
        %v1213 = vadd.f32 %v1198, %v1208
        %v1214 = vadd.f32 %v1199, %v1210
        %v1215 = vmul.f32 %v1193, %v501
        %v1216 = vmul.f32 %v1194, %v501
        %v1217 = vmul.f32 %v1195, %v501
        %v1221 = vrot.slane %v1215, 2
        %v1222 = vrot.slane %v1216, 2
        %v1223 = vsel %vm407, %v1221, %v1222
        %v1224 = vrot.slane %v1217, 2
        %v1225 = vsel %vm407, %v1222, %v1224
        %v1228 = vadd.f32 %v1213, %v1223
        %v1229 = vadd.f32 %v1214, %v1225
        %v1230 = vadd.f32 %v1228, %v521
        %v1231 = vadd.f32 %v1229, %v521
        %v1232 = vmax.f32 %v1230, 0.0
        %v1233 = vmax.f32 %v1231, 0.0
        %1234 = vst [vmem:[#allocation2 + $0x60] sm:$0xff] %v1232
        %1235 = vst [vmem:[#allocation2 + $0x68] sm:$0xff] %v1233
        %v1236 = vld [vmem:[%s1075] sm:$0xff]
        %v1237 = vld [vmem:[%s1075 + $0x8] sm:$0xff]
        %v1238 = vld [vmem:[%s1075 + $0x10] sm:$0x3]
        %v1239 = vmul.f32 %v1236, %v372
        %v1240 = vmul.f32 %v1237, %v372
        %v1241 = vadd.f32 %v1239, 0.0
        %v1242 = vadd.f32 %v1240, 0.0
        %v1243 = vmul.f32 %v1236, %v380
        %v1244 = vmul.f32 %v1237, %v380
        %v1245 = vmul.f32 %v1238, %v380
        %v1249 = vrot.slane %v1243, 1
        %v1250 = vrot.slane %v1244, 1
        %v1251 = vsel %vm387, %v1249, %v1250
        %v1252 = vrot.slane %v1245, 1
        %v1253 = vsel %vm387, %v1250, %v1252
        %v1256 = vadd.f32 %v1241, %v1251
        %v1257 = vadd.f32 %v1242, %v1253
        %v1258 = vmul.f32 %v1236, %v400
        %v1259 = vmul.f32 %v1237, %v400
        %v1260 = vmul.f32 %v1238, %v400
        %v1264 = vrot.slane %v1258, 2
        %v1265 = vrot.slane %v1259, 2
        %v1266 = vsel %vm407, %v1264, %v1265
        %v1267 = vrot.slane %v1260, 2
        %v1268 = vsel %vm407, %v1265, %v1267
        %v1271 = vadd.f32 %v1256, %v1266
        %v1272 = vadd.f32 %v1257, %v1268
        %v1273 = vld [vmem:[%s357] sm:$0xff]
        %v1274 = vld [vmem:[%s357 + $0x8] sm:$0xff]
        %v1275 = vld [vmem:[%s357 + $0x10] sm:$0x3]
        %v1276 = vmul.f32 %v1273, %v424
        %v1277 = vmul.f32 %v1274, %v424
        %v1278 = vadd.f32 %v1271, %v1276
        %v1279 = vadd.f32 %v1272, %v1277
        %v1280 = vmul.f32 %v1273, %v432
        %v1281 = vmul.f32 %v1274, %v432
        %v1282 = vmul.f32 %v1275, %v432
        %v1286 = vrot.slane %v1280, 1
        %v1287 = vrot.slane %v1281, 1
        %v1288 = vsel %vm387, %v1286, %v1287
        %v1289 = vrot.slane %v1282, 1
        %v1290 = vsel %vm387, %v1287, %v1289
        %v1293 = vadd.f32 %v1278, %v1288
        %v1294 = vadd.f32 %v1279, %v1290
        %v1295 = vmul.f32 %v1273, %v451
        %v1296 = vmul.f32 %v1274, %v451
        %v1297 = vmul.f32 %v1275, %v451
        %v1301 = vrot.slane %v1295, 2
        %v1302 = vrot.slane %v1296, 2
        %v1303 = vsel %vm407, %v1301, %v1302
        %v1304 = vrot.slane %v1297, 2
        %v1305 = vsel %vm407, %v1302, %v1304
        %v1308 = vadd.f32 %v1293, %v1303
        %v1309 = vadd.f32 %v1294, %v1305
        %s1310 = scalar_lea.vmem %s357, 24
        %v1311 = vld [vmem:[%s1310] sm:$0xff]
        %v1312 = vld [vmem:[%s1310 + $0x8] sm:$0xff]
        %v1313 = vld [vmem:[%s1310 + $0x10] sm:$0x3]
        %v1314 = vmul.f32 %v1311, %v474
        %v1315 = vmul.f32 %v1312, %v474
        %v1316 = vadd.f32 %v1308, %v1314
        %v1317 = vadd.f32 %v1309, %v1315
        %v1318 = vmul.f32 %v1311, %v482
        %v1319 = vmul.f32 %v1312, %v482
        %v1320 = vmul.f32 %v1313, %v482
        %v1324 = vrot.slane %v1318, 1
        %v1325 = vrot.slane %v1319, 1
        %v1326 = vsel %vm387, %v1324, %v1325
        %v1327 = vrot.slane %v1320, 1
        %v1328 = vsel %vm387, %v1325, %v1327
        %v1331 = vadd.f32 %v1316, %v1326
        %v1332 = vadd.f32 %v1317, %v1328
        %v1333 = vmul.f32 %v1311, %v501
        %v1334 = vmul.f32 %v1312, %v501
        %v1335 = vmul.f32 %v1313, %v501
        %v1339 = vrot.slane %v1333, 2
        %v1340 = vrot.slane %v1334, 2
        %v1341 = vsel %vm407, %v1339, %v1340
        %v1342 = vrot.slane %v1335, 2
        %v1343 = vsel %vm407, %v1340, %v1342
        %v1346 = vadd.f32 %v1331, %v1341
        %v1347 = vadd.f32 %v1332, %v1343
        %v1348 = vadd.f32 %v1346, %v521
        %v1349 = vadd.f32 %v1347, %v521
        %v1350 = vmax.f32 %v1348, 0.0
        %v1351 = vmax.f32 %v1349, 0.0
        %1352 = vst [vmem:[#allocation2 + $0x70] sm:$0xff] %v1350
        %1353 = vst [vmem:[#allocation2 + $0x78] sm:$0xff] %v1351
        %v1354 = vld [vmem:[#allocation2] sm:$0xff]
        %v1355 = vld [vmem:[#allocation2 + $0x8] sm:$0xff]
        %v1356 = vld [vmem:[#allocation2 + $0x10] sm:$0xff]
        %v1357 = vld [vmem:[#allocation2 + $0x18] sm:$0xff]
        %v1358 = vld [vmem:[#allocation2 + $0x20] sm:$0xff]
        %v1359 = vld [vmem:[#allocation2 + $0x28] sm:$0xff]
        %v1360 = vld [vmem:[#allocation2 + $0x30] sm:$0xff]
        %v1361 = vld [vmem:[#allocation2 + $0x38] sm:$0xff]
        %v1362 = vld [vmem:[#allocation2 + $0x40] sm:$0xff]
        %v1363 = vld [vmem:[#allocation2 + $0x48] sm:$0xff]
        %v1364 = vld [vmem:[#allocation2 + $0x50] sm:$0xff]
        %v1365 = vld [vmem:[#allocation2 + $0x58] sm:$0xff]
        %v1366 = vld [vmem:[#allocation2 + $0x60] sm:$0xff]
        %v1367 = vld [vmem:[#allocation2 + $0x68] sm:$0xff]
        %v1368 = vld [vmem:[#allocation2 + $0x70] sm:$0xff]
        %v1369 = vld [vmem:[#allocation2 + $0x78] sm:$0xff]
        %v1370 = vld [vmem:[%s4] sm:$0xff]
        %v1371 = vld [vmem:[%s4 + $0x8] sm:$0xff]
        %v1372 = vld [vmem:[%s4 + $0x10] sm:$0xff]
        %v1373 = vld [vmem:[%s4 + $0x18] sm:$0xff]
        %v1374 = vld [vmem:[%s4 + $0x20] sm:$0xff]
        %v1375 = vld [vmem:[%s4 + $0x28] sm:$0xff]
        %v1376 = vld [vmem:[%s4 + $0x30] sm:$0xff]
        %v1377 = vld [vmem:[%s4 + $0x38] sm:$0xff]
        %v1378 = vld [vmem:[%s4 + $0x40] sm:$0xff]
        %v1379 = vld [vmem:[%s4 + $0x48] sm:$0xff]
        %v1380 = vld [vmem:[%s4 + $0x50] sm:$0xff]
        %v1381 = vld [vmem:[%s4 + $0x58] sm:$0xff]
        %v1382 = vld [vmem:[%s4 + $0x60] sm:$0xff]
        %v1383 = vld [vmem:[%s4 + $0x68] sm:$0xff]
        %v1384 = vld [vmem:[%s4 + $0x70] sm:$0xff]
        %v1385 = vld [vmem:[%s4 + $0x78] sm:$0xff]
        %v1386 = vld [vmem:[%s5] sm:$0x1]
        %v1388 = vlaneseq
        %v1389 = vshrl.u32 %v1388, 7
        %v1390 = vsub.s32 0, %v1389
        %v1391 = vrot.slane %v1386, %v1390
        %1393 = vmatprep.subr.mxu0 0.0
        %1394 = vmatpush1.msra.mxu0 %v1370
        %1395 = vmatprep.subr.mxu0 0.0
        %1396 = vmatpush1.msra.mxu0 %v1371
        %1397 = vmatprep.subr.mxu0 0.0
        %1398 = vmatpush1.msra.mxu0 %v1372
        %1399 = vmatprep.subr.mxu0 0.0
        %1400 = vmatpush1.msra.mxu0 %v1373
        %1401 = vmatprep.subr.mxu0 0.0
        %1402 = vmatpush1.msra.mxu0 %v1374
        %1403 = vmatprep.subr.mxu0 0.0
        %1404 = vmatpush1.msra.mxu0 %v1375
        %1405 = vmatprep.subr.mxu0 0.0
        %1406 = vmatpush1.msra.mxu0 %v1376
        %1407 = vmatprep.subr.mxu0 0.0
        %1408 = vmatpush1.msra.mxu0 %v1377
        %1409 = vmatprep.subr.mxu0 0.0
        %1410 = vmatpush1.msra.mxu0 %v1378
        %1411 = vmatprep.subr.mxu0 0.0
        %1412 = vmatpush1.msra.mxu0 %v1379
        %1413 = vmatprep.subr.mxu0 0.0
        %1414 = vmatpush1.msra.mxu0 %v1380
        %1415 = vmatprep.subr.mxu0 0.0
        %1416 = vmatpush1.msra.mxu0 %v1381
        %1417 = vmatprep.subr.mxu0 0.0
        %1418 = vmatpush1.msra.mxu0 %v1382
        %1419 = vmatprep.subr.mxu0 0.0
        %1420 = vmatpush1.msra.mxu0 %v1383
        %1421 = vmatprep.subr.mxu0 0.0
        %1422 = vmatpush1.msra.mxu0 %v1384
        %1423 = vmatprep.subr.mxu0 0.0
        %1424 = vmatpush1.msra.mxu0 %v1385
        %1425 = vmatprep.subr.mxu0 0.0
        %1426 = vmatpush1.msra.mxu0 0.0
        %1427 = vmatprep.subr.mxu0 0.0
        %1428 = vmatpush1.msra.mxu0 0.0
        %1429 = vmatprep.subr.mxu0 0.0
        %1430 = vmatpush1.msra.mxu0 0.0
        %1431 = vmatprep.subr.mxu0 0.0
        %1432 = vmatpush1.msra.mxu0 0.0
        %1433 = vmatprep.subr.mxu0 0.0
        %1434 = vmatpush1.msra.mxu0 0.0
        %1435 = vmatprep.subr.mxu0 0.0
        %1436 = vmatpush1.msra.mxu0 0.0
        %1437 = vmatprep.subr.mxu0 0.0
        %1438 = vmatpush1.msra.mxu0 0.0
        %1439 = vmatprep.subr.mxu0 0.0
        %1440 = vmatpush1.msra.mxu0 0.0
        %1441 = vmatprep.subr.mxu0 0.0
        %1442 = vmatpush1.msra.mxu0 0.0
        %1443 = vmatprep.subr.mxu0 0.0
        %1444 = vmatpush1.msra.mxu0 0.0
        %1445 = vmatprep.subr.mxu0 0.0
        %1446 = vmatpush1.msra.mxu0 0.0
        %1447 = vmatprep.subr.mxu0 0.0
        %1448 = vmatpush1.msra.mxu0 0.0
        %1449 = vmatprep.subr.mxu0 0.0
        %1450 = vmatpush1.msra.mxu0 0.0
        %1451 = vmatprep.subr.mxu0 0.0
        %1452 = vmatpush1.msra.mxu0 0.0
        %1453 = vmatprep.subr.mxu0 0.0
        %1454 = vmatpush1.msra.mxu0 0.0
        %1455 = vmatprep.subr.mxu0 0.0
        %1456 = vmatpush1.msra.mxu0 0.0
        %1457 = vmatprep.mubr.f32.mxu0 0.0
        %1458 = vmatmul.mubr.f32.gmra.mrb[0].mxu0 %v1354
        %v1459 = vpop.f32.mrb[0].mxu0
        %v1460 = vadd.f32 %v1391, %v1459
        %v1461 = vpop.f32.mrb[0].mxu0
        %1462 = vmatprep.mubr.f32.mxu0 0.0
        %1463 = vmatmul.mubr.f32.gmra.mrb[0].mxu0 %v1355
        %v1464 = vpop.f32.mrb[0].mxu0
        %v1465 = vadd.f32 %v1391, %v1464
        %v1466 = vpop.f32.mrb[0].mxu0
        %1467 = vmatprep.mubr.f32.mxu0 0.0
        %1468 = vmatmul.mubr.f32.gmra.mrb[0].mxu0 %v1356
        %v1469 = vpop.f32.mrb[0].mxu0
        %v1470 = vadd.f32 %v1391, %v1469
        %v1471 = vpop.f32.mrb[0].mxu0
        %1472 = vmatprep.mubr.f32.mxu0 0.0
        %1473 = vmatmul.mubr.f32.gmra.mrb[0].mxu0 %v1357
        %v1474 = vpop.f32.mrb[0].mxu0
        %v1475 = vadd.f32 %v1391, %v1474
        %v1476 = vpop.f32.mrb[0].mxu0
        %1477 = vmatprep.mubr.f32.mxu0 0.0
        %1478 = vmatmul.mubr.f32.gmra.mrb[0].mxu0 %v1358
        %v1479 = vpop.f32.mrb[0].mxu0
        %v1480 = vadd.f32 %v1391, %v1479
        %v1481 = vpop.f32.mrb[0].mxu0
        %1482 = vmatprep.mubr.f32.mxu0 0.0
        %1483 = vmatmul.mubr.f32.gmra.mrb[0].mxu0 %v1359
        %v1484 = vpop.f32.mrb[0].mxu0
        %v1485 = vadd.f32 %v1391, %v1484
        %v1486 = vpop.f32.mrb[0].mxu0
        %1487 = vmatprep.mubr.f32.mxu0 0.0
        %1488 = vmatmul.mubr.f32.gmra.mrb[0].mxu0 %v1360
        %v1489 = vpop.f32.mrb[0].mxu0
        %v1490 = vadd.f32 %v1391, %v1489
        %v1491 = vpop.f32.mrb[0].mxu0
        %1492 = vmatprep.mubr.f32.mxu0 0.0
        %1493 = vmatmul.mubr.f32.gmra.mrb[0].mxu0 %v1361
        %v1494 = vpop.f32.mrb[0].mxu0
        %v1495 = vadd.f32 %v1391, %v1494
        %v1496 = vpop.f32.mrb[0].mxu0
        %1497 = vmatprep.mubr.f32.mxu0 0.0
        %1498 = vmatmul.mubr.f32.gmra.mrb[0].mxu0 %v1362
        %v1499 = vpop.f32.mrb[0].mxu0
        %v1500 = vadd.f32 %v1391, %v1499
        %v1501 = vpop.f32.mrb[0].mxu0
        %1502 = vmatprep.mubr.f32.mxu0 0.0
        %1503 = vmatmul.mubr.f32.gmra.mrb[0].mxu0 %v1363
        %v1504 = vpop.f32.mrb[0].mxu0
        %v1505 = vadd.f32 %v1391, %v1504
        %v1506 = vpop.f32.mrb[0].mxu0
        %1507 = vmatprep.mubr.f32.mxu0 0.0
        %1508 = vmatmul.mubr.f32.gmra.mrb[0].mxu0 %v1364
        %v1509 = vpop.f32.mrb[0].mxu0
        %v1510 = vadd.f32 %v1391, %v1509
        %v1511 = vpop.f32.mrb[0].mxu0
        %1512 = vmatprep.mubr.f32.mxu0 0.0
        %1513 = vmatmul.mubr.f32.gmra.mrb[0].mxu0 %v1365
        %v1514 = vpop.f32.mrb[0].mxu0
        %v1515 = vadd.f32 %v1391, %v1514
        %v1516 = vpop.f32.mrb[0].mxu0
        %1517 = vmatprep.mubr.f32.mxu0 0.0
        %1518 = vmatmul.mubr.f32.gmra.mrb[0].mxu0 %v1366
        %v1519 = vpop.f32.mrb[0].mxu0
        %v1520 = vadd.f32 %v1391, %v1519
        %v1521 = vpop.f32.mrb[0].mxu0
        %1522 = vmatprep.mubr.f32.mxu0 0.0
        %1523 = vmatmul.mubr.f32.gmra.mrb[0].mxu0 %v1367
        %v1524 = vpop.f32.mrb[0].mxu0
        %v1525 = vadd.f32 %v1391, %v1524
        %v1526 = vpop.f32.mrb[0].mxu0
        %1527 = vmatprep.mubr.f32.mxu0 0.0
        %1528 = vmatmul.mubr.f32.gmra.mrb[0].mxu0 %v1368
        %v1529 = vpop.f32.mrb[0].mxu0
        %v1530 = vadd.f32 %v1391, %v1529
        %v1531 = vpop.f32.mrb[0].mxu0
        %1532 = vmatprep.mubr.f32.mxu0 0.0
        %1533 = vmatmul.mubr.f32.gmra.mrb[0].mxu0 %v1369
        %v1534 = vpop.f32.mrb[0].mxu0
        %v1535 = vadd.f32 %v1391, %v1534
        %v1536 = vpop.f32.mrb[0].mxu0
        %1537 = vdwg.mxu0
        %v1538 = vmax.f32 %v1460, 0.0
        %v1539 = vmax.f32 %v1465, 0.0
        %v1540 = vmax.f32 %v1470, 0.0
        %v1541 = vmax.f32 %v1475, 0.0
        %v1542 = vmax.f32 %v1480, 0.0
        %v1543 = vmax.f32 %v1485, 0.0
        %v1544 = vmax.f32 %v1490, 0.0
        %v1545 = vmax.f32 %v1495, 0.0
        %v1546 = vmax.f32 %v1500, 0.0
        %v1547 = vmax.f32 %v1505, 0.0
        %v1548 = vmax.f32 %v1510, 0.0
        %v1549 = vmax.f32 %v1515, 0.0
        %v1550 = vmax.f32 %v1520, 0.0
        %v1551 = vmax.f32 %v1525, 0.0
        %v1552 = vmax.f32 %v1530, 0.0
        %v1553 = vmax.f32 %v1535, 0.0
        %1554 = vst [vmem:[%s324] sm:$0xff] %v1538
        %1555 = vst [vmem:[%s324 + $0x8] sm:$0xff] %v1539
        %1556 = vst [vmem:[%s324 + $0x10] sm:$0xff] %v1540
        %1557 = vst [vmem:[%s324 + $0x18] sm:$0xff] %v1541
        %1558 = vst [vmem:[%s324 + $0x20] sm:$0xff] %v1542
        %1559 = vst [vmem:[%s324 + $0x28] sm:$0xff] %v1543
        %1560 = vst [vmem:[%s324 + $0x30] sm:$0xff] %v1544
        %1561 = vst [vmem:[%s324 + $0x38] sm:$0xff] %v1545
        %1562 = vst [vmem:[%s324 + $0x40] sm:$0xff] %v1546
        %1563 = vst [vmem:[%s324 + $0x48] sm:$0xff] %v1547
        %1564 = vst [vmem:[%s324 + $0x50] sm:$0xff] %v1548
        %1565 = vst [vmem:[%s324 + $0x58] sm:$0xff] %v1549
        %1566 = vst [vmem:[%s324 + $0x60] sm:$0xff] %v1550
        %1567 = vst [vmem:[%s324 + $0x68] sm:$0xff] %v1551
        %1568 = vst [vmem:[%s324 + $0x70] sm:$0xff] %v1552
        %1569 = vst [vmem:[%s324 + $0x78] sm:$0xff] %v1553
        %s1570 = sand.u32 %s186, 1
        %s1571 = scalar_lea.sflag [#allocation4], %s1570
        %s1572 = sand.u32 %s186, 1
        %s1573 = smul.addr %s1572, 128
        %s1574 = scalar_lea.vmem [#allocation3], %s1573
        // Predicated region
        $region45: #{tpu_custom_call.1} parent=43 // pred_check
          %p1575 = pneg %p196
        $region46: #{tpu_custom_call.1} parent=43 // pred_check_branch
          %1577 = sbr.rel (%p1575) target = $region48
        $region47: #{tpu_custom_call.1} parent=43 // pred_region
          %s1578 = smul.u32 16, %s25
          %s1580 = ssub.s32 2048, 2048
          %1581 = vsyncadd %s1571, %s1580
          %s1582 = smul.addr %s24, 32
          %s1583 = sadd.s32 %s1578, %s1582
          %s1584 = smul.addr %s1583, 128
          %s1585 = scalar_lea.hbm %s6, %s1584
          %s1586 = sshll.u32 %s1574, 4
          %s1587 = int_to_ptr.vmem [resolvable:$true] %s1586
          %1592 = dma.vmem_to_hbm [thread:$0]  %s1587, 2048, %s1585, %s1571, 128, 128, 8
        $region48: #{tpu_custom_call.1} parent=43 // pred_fallthru
          _
      $region44: #{tpu_custom_call.1} parent=5 // pred_fallthru
        _
      %p1593 = scmp.le.s32.totalorder 2, %s15
      // Predicated region
      $region49: #{tpu_custom_call.1} parent=5 // pred_check
        %p1594 = pneg %p1593
      $region50: #{tpu_custom_call.1} parent=5 // pred_check_branch
        %1596 = sbr.rel (%p1594) target = $region52
      $region51: #{tpu_custom_call.1} parent=5 // pred_region
        %s1597 = ssub.s32 %s15, 2
        // Predicated region
        $region53: #{tpu_custom_call.1} parent=51 // pred_check
          %p1598 = pneg %p202
        $region54: #{tpu_custom_call.1} parent=51 // pred_check_branch
          %1600 = sbr.rel (%p1598) target = $region56
        $region55: #{tpu_custom_call.1} parent=51 // pred_region
          %s1601 = sand.u32 %s187, 1
          %s1602 = scalar_lea.sflag [#allocation4], %s1601
          %s1603 = sand.u32 %s187, 1
          %s1604 = smul.addr %s1603, 128
          %s1605 = scalar_lea.vmem [#allocation3], %s1604
          %1606 = dma.done %s1602, 2048
        $region56: #{tpu_custom_call.1} parent=51 // pred_fallthru
          _
      $region52: #{tpu_custom_call.1} parent=5 // pred_fallthru
        _
    $region6: #{tpu_custom_call.1} parent=1 // loop_footer
      %s19 = sadd.s32 1, %s15
    $region7: #{tpu_custom_call.1} parent=1 // loop_footer_branch
      %14 = sbr.rel target = $region3
    $region8: #{tpu_custom_call.1} parent=1 // loop_exit
      _
    %1607 = vsyncpa [#allocation4], 1
    %s1608 = scalar_lea.sflag [#allocation4], 1
    %1609 = vsyncpa %s1608, 1

// kernel: tpu_custom_call.1
$region0: #{tpu_custom_call.1}
  #allocation0 [shape = 'u32[]', space=smem, size = 0x4, offset = 0x4, fixed_abs, tag = 'smem constant byte address 0x4 - core index']
  #allocation1 [shape = 'u32[144,128]{1,0:T(1,128)}', space=vmem, size = 0x12000, scoped, tag = 'internal scratch']
  #allocation2 [shape = 'f32[128,128]{1,0:T(8,128)}', space=vmem, size = 0x10000, scoped, tag = 'scratch operand']
  %s0 = inlined_call_operand.vmem [shape: f32[2,18,18,128], index: 0, kind: input, shape index: {}]
  %s1 = inlined_call_operand.vmem [shape: f32[2,18,18,128], index: 1, kind: input, shape index: {}]
  %s2 = inlined_call_operand.vmem [shape: f32[3,3,128], index: 2, kind: input, shape index: {}]
  %s3 = inlined_call_operand.vmem [shape: f32[1,128], index: 3, kind: input, shape index: {}]
  %s4 = inlined_call_operand.vmem [shape: f32[128,128], index: 4, kind: input, shape index: {}]
  %s5 = inlined_call_operand.vmem [shape: f32[1,128], index: 5, kind: input, shape index: {}]
  %s6 = inlined_call_operand.hbm [shape: f32[2,256,128], index: 6, kind: output, shape index: {}]
  %s7 = sld [smem:[#allocation0]]
  $region57: #{tpu_custom_call.1} parent=0
    _
  %s9 = ssub.s32 1, %s7
  %s10 = scalar_select 0, %s9, %s7
  $region1: #{tpu_custom_call.1} parent=0
    #allocation3 [shape = 'u8[131072]{0}', space=vmem, size = 0x20000, scoped, tag = 'output window, operand 0']
    #allocation4 [shape = 's32[2]{0}', space=sflag, size = 0x8, scoped, tag = 'scoped memory for tpu_custom_call.1']
    %11 = vsyncpa [#allocation4], 0
    %s12 = scalar_lea.sflag [#allocation4], 1
    %13 = vsyncpa %s12, 0
    loop: start=0, step=1, limit=6
    $region2: #{tpu_custom_call.1} parent=1 // loop_pre_header
      _
    $region3: #{tpu_custom_call.1} parent=1 // loop_header
      %s15 = sphi 0, %s19
      %p16 = scmp.ge.s32.totalorder %s15, 6
      %s22 = sphi 0, %s34
      %s23 = sphi 0, %s30
      %s24 = sphi 0, %s22
      %s25 = sphi 0, %s23
      %s26 = sphi 0, %s24
      %s27 = sphi 0, %s25
      %s39 = sphi 0, %s41
      %s42 = sphi 0, %s39
      %s43 = sphi 0, %s42
      %s59 = sphi 0, %s43
      %s71 = sphi 0, %s73
      %s74 = sphi 0, %s71
      %s75 = sphi 0, %s74
      %s91 = sphi 0, %s75
      %s95 = sphi 0, %s95
      %s97 = sphi 0, %s95
      %s98 = sphi 0, %s97
      %s112 = sphi 0, %s98
      %s116 = sphi 0, %s116
      %s118 = sphi 0, %s116
      %s119 = sphi 0, %s118
      %s133 = sphi 0, %s119
      %s137 = sphi 0, %s137
      %s139 = sphi 0, %s137
      %s140 = sphi 0, %s139
      %s154 = sphi 0, %s140
      %s158 = sphi 0, %s158
      %s160 = sphi 0, %s158
      %s161 = sphi 0, %s160
      %s175 = sphi 0, %s161
      %s183 = sphi 0, %s185
      %s186 = sphi 0, %s183
      %s187 = sphi 0, %s186
      %s203 = sphi 0, %s187
    $region4: #{tpu_custom_call.1} parent=1 // loop_header_branch
      %18 = sbr.rel (%p16) target = $region8
    $region5: #{tpu_custom_call.1} parent=1 // loop_body
      %s20 = ssub.s32 %s15, 1
      %s21 = ssub.s32 %s15, 2
      %s28 = sadd.s32 1, %s23
      %p29 = scmp.ge.s32.totalorder %s28, 2
      %s30 = scalar_select %p29, 0, %s28
      %s31 = sadd.s32 1, %s22
      %s32 = scalar_select %p29, %s31, %s22
      %p33 = scmp.ge.s32.totalorder %s32, 2
      %s34 = scalar_select %p33, 0, %s32
      %s35 = ssub.s32 %s22, %s34
      %s36 = ssub.s32 %s23, %s30
      %s37 = sor.u32 %s35, %s36
      %p38 = scmp.eq.s32.totalorder %s37, 0
      %s40 = sadd.s32 %s39, 1
      %s41 = scalar_select %p38, %s39, %s40
      %p44 = pneg %p38
      %p45 = scmp.eq.s32.totalorder %s15, 3
      %p46 = por %p44, %p45
      %p47 = scmp.ne.s32.totalorder %s39, %s42
      %p48 = scmp.eq.s32.totalorder %s15, 0
      %p49 = por %p47, %p48
      %p50 = scmp.ne.s32.totalorder %s39, %s42
      %p51 = scmp.eq.s32.totalorder %s20, 3
      %p52 = por %p50, %p51
      %p53 = scmp.ne.s32.totalorder %s42, %s43
      %p54 = scmp.eq.s32.totalorder %s20, 0
      %p55 = por %p53, %p54
      %p56 = scmp.ne.s32.totalorder %s42, %s43
      %p57 = scmp.eq.s32.totalorder %s21, 3
      %p58 = por %p56, %p57
      %p60 = scmp.ne.s32.totalorder %s43, %s59
      %p61 = scmp.eq.s32.totalorder %s21, 0
      %p62 = por %p60, %p61
      %s63 = sadd.s32 %s23, 1
      %s64 = smul.u32 %s63, 4
      %s65 = sadd.s32 %s30, 1
      %s66 = smul.u32 %s65, 4
      %s67 = ssub.s32 %s22, %s34
      %s68 = ssub.s32 %s64, %s66
      %s69 = sor.u32 %s67, %s68
      %p70 = scmp.eq.s32.totalorder %s69, 0
      %s72 = sadd.s32 %s71, 1
      %s73 = scalar_select %p70, %s71, %s72
      %p76 = pneg %p70
      %p77 = scmp.eq.s32.totalorder %s15, 3
      %p78 = por %p76, %p77
      %p79 = scmp.ne.s32.totalorder %s71, %s74
      %p80 = scmp.eq.s32.totalorder %s15, 0
      %p81 = por %p79, %p80
      %p82 = scmp.ne.s32.totalorder %s71, %s74
      %p83 = scmp.eq.s32.totalorder %s20, 3
      %p84 = por %p82, %p83
      %p85 = scmp.ne.s32.totalorder %s74, %s75
      %p86 = scmp.eq.s32.totalorder %s20, 0
      %p87 = por %p85, %p86
      %p88 = scmp.ne.s32.totalorder %s74, %s75
      %p89 = scmp.eq.s32.totalorder %s21, 3
      %p90 = por %p88, %p89
      %p92 = scmp.ne.s32.totalorder %s75, %s91
      %p93 = scmp.eq.s32.totalorder %s21, 0
      %p94 = por %p92, %p93
      %s96 = sadd.s32 %s95, 1
      %p99 = scmp.eq.s32.totalorder %s15, 3
      %p100 = scmp.ne.s32.totalorder %s95, %s97
      %p101 = scmp.eq.s32.totalorder %s15, 0
      %p102 = por %p100, %p101
      %p103 = scmp.ne.s32.totalorder %s95, %s97
      %p104 = scmp.eq.s32.totalorder %s20, 3
      %p105 = por %p103, %p104
      %p106 = scmp.ne.s32.totalorder %s97, %s98
      %p107 = scmp.eq.s32.totalorder %s20, 0
      %p108 = por %p106, %p107
      %p109 = scmp.ne.s32.totalorder %s97, %s98
      %p110 = scmp.eq.s32.totalorder %s21, 3
      %p111 = por %p109, %p110
      %p113 = scmp.ne.s32.totalorder %s98, %s112
      %p114 = scmp.eq.s32.totalorder %s21, 0
      %p115 = por %p113, %p114
      %s117 = sadd.s32 %s116, 1
      %p120 = scmp.eq.s32.totalorder %s15, 3
      %p121 = scmp.ne.s32.totalorder %s116, %s118
      %p122 = scmp.eq.s32.totalorder %s15, 0
      %p123 = por %p121, %p122
      %p124 = scmp.ne.s32.totalorder %s116, %s118
      %p125 = scmp.eq.s32.totalorder %s20, 3
      %p126 = por %p124, %p125
      %p127 = scmp.ne.s32.totalorder %s118, %s119
      %p128 = scmp.eq.s32.totalorder %s20, 0
      %p129 = por %p127, %p128
      %p130 = scmp.ne.s32.totalorder %s118, %s119
      %p131 = scmp.eq.s32.totalorder %s21, 3
      %p132 = por %p130, %p131
      %p134 = scmp.ne.s32.totalorder %s119, %s133
      %p135 = scmp.eq.s32.totalorder %s21, 0
      %p136 = por %p134, %p135
      %s138 = sadd.s32 %s137, 1
      %p141 = scmp.eq.s32.totalorder %s15, 3
      %p142 = scmp.ne.s32.totalorder %s137, %s139
      %p143 = scmp.eq.s32.totalorder %s15, 0
      %p144 = por %p142, %p143
      %p145 = scmp.ne.s32.totalorder %s137, %s139
      %p146 = scmp.eq.s32.totalorder %s20, 3
      %p147 = por %p145, %p146
      %p148 = scmp.ne.s32.totalorder %s139, %s140
      %p149 = scmp.eq.s32.totalorder %s20, 0
      %p150 = por %p148, %p149
      %p151 = scmp.ne.s32.totalorder %s139, %s140
      %p152 = scmp.eq.s32.totalorder %s21, 3
      %p153 = por %p151, %p152
      %p155 = scmp.ne.s32.totalorder %s140, %s154
      %p156 = scmp.eq.s32.totalorder %s21, 0
      %p157 = por %p155, %p156
      %s159 = sadd.s32 %s158, 1
      %p162 = scmp.eq.s32.totalorder %s15, 3
      %p163 = scmp.ne.s32.totalorder %s158, %s160
      %p164 = scmp.eq.s32.totalorder %s15, 0
      %p165 = por %p163, %p164
      %p166 = scmp.ne.s32.totalorder %s158, %s160
      %p167 = scmp.eq.s32.totalorder %s20, 3
      %p168 = por %p166, %p167
      %p169 = scmp.ne.s32.totalorder %s160, %s161
      %p170 = scmp.eq.s32.totalorder %s20, 0
      %p171 = por %p169, %p170
      %p172 = scmp.ne.s32.totalorder %s160, %s161
      %p173 = scmp.eq.s32.totalorder %s21, 3
      %p174 = por %p172, %p173
      %p176 = scmp.ne.s32.totalorder %s161, %s175
      %p177 = scmp.eq.s32.totalorder %s21, 0
      %p178 = por %p176, %p177
      %s179 = ssub.s32 %s22, %s34
      %s180 = ssub.s32 %s23, %s30
      %s181 = sor.u32 %s179, %s180
      %p182 = scmp.eq.s32.totalorder %s181, 0
      %s184 = sadd.s32 %s183, 1
      %s185 = scalar_select %p182, %s183, %s184
      %p188 = pneg %p182
      %p189 = scmp.eq.s32.totalorder %s15, 3
      %p190 = por %p188, %p189
      %p191 = scmp.ne.s32.totalorder %s183, %s186
      %p192 = scmp.eq.s32.totalorder %s15, 0
      %p193 = por %p191, %p192
      %p194 = scmp.ne.s32.totalorder %s183, %s186
      %p195 = scmp.eq.s32.totalorder %s20, 3
      %p196 = por %p194, %p195
      %p197 = scmp.ne.s32.totalorder %s186, %s187
      %p198 = scmp.eq.s32.totalorder %s20, 0
      %p199 = por %p197, %p198
      %p200 = scmp.ne.s32.totalorder %s186, %s187
      %p201 = scmp.eq.s32.totalorder %s21, 3
      %p202 = por %p200, %p201
      %p204 = scmp.ne.s32.totalorder %s187, %s203
      %p205 = scmp.eq.s32.totalorder %s21, 0
      %p206 = por %p204, %p205
      %p207 = scmp.le.s32.totalorder 1, %s15
      %p208 = scmp.lt.s32.totalorder %s15, 5
      %p209 = pnand %p207, %p208
      %p210 = pneg %p209
      // Predicated region
      $region9: #{tpu_custom_call.1} parent=5 // pred_check
        _
      $region10: #{tpu_custom_call.1} parent=5 // pred_check_branch
        %212 = sbr.rel (%p209) target = $region12
      $region11: #{tpu_custom_call.1} parent=5 // pred_region
        %s213 = ssub.s32 %s15, 1
        // Predicated region
        $region13: #{tpu_custom_call.1} parent=11 // pred_check
          %p214 = pneg %p108
        $region14: #{tpu_custom_call.1} parent=11 // pred_check_branch
          %216 = sbr.rel (%p214) target = $region16
        $region15: #{tpu_custom_call.1} parent=11 // pred_region
          _
        $region16: #{tpu_custom_call.1} parent=11 // pred_fallthru
          _
        // Predicated region
        $region17: #{tpu_custom_call.1} parent=11 // pred_check
          %p217 = pneg %p129
        $region18: #{tpu_custom_call.1} parent=11 // pred_check_branch
          %219 = sbr.rel (%p217) target = $region20
        $region19: #{tpu_custom_call.1} parent=11 // pred_region
          _
        $region20: #{tpu_custom_call.1} parent=11 // pred_fallthru
          _
        // Predicated region
        $region21: #{tpu_custom_call.1} parent=11 // pred_check
          %p220 = pneg %p150
        $region22: #{tpu_custom_call.1} parent=11 // pred_check_branch
          %222 = sbr.rel (%p220) target = $region24
        $region23: #{tpu_custom_call.1} parent=11 // pred_region
          _
        $region24: #{tpu_custom_call.1} parent=11 // pred_fallthru
          _
        // Predicated region
        $region25: #{tpu_custom_call.1} parent=11 // pred_check
          %p223 = pneg %p171
        $region26: #{tpu_custom_call.1} parent=11 // pred_check_branch
          %225 = sbr.rel (%p223) target = $region28
        $region27: #{tpu_custom_call.1} parent=11 // pred_region
          _
        $region28: #{tpu_custom_call.1} parent=11 // pred_fallthru
          _
      $region12: #{tpu_custom_call.1} parent=5 // pred_fallthru
        _
      %p226 = scmp.lt.s32.totalorder %s15, 4
      // Predicated region
      $region29: #{tpu_custom_call.1} parent=5 // pred_check
        %p227 = pneg %p226
      $region30: #{tpu_custom_call.1} parent=5 // pred_check_branch
        %229 = sbr.rel (%p227) target = $region32
      $region31: #{tpu_custom_call.1} parent=5 // pred_region
        // Predicated region
        $region33: #{tpu_custom_call.1} parent=31 // pred_check
          %p230 = pneg %p49
        $region34: #{tpu_custom_call.1} parent=31 // pred_check_branch
          %232 = sbr.rel (%p230) target = $region36
        $region35: #{tpu_custom_call.1} parent=31 // pred_region
          %s233 = smul.u32 8, %s23
          %s234 = ssub.s32 18, %s233
          %p235 = scmp.lt.s32.totalorder %s234, 8
          %s236 = scalar_select %p235, %s234, 8
          %s237 = smul.u32 128, %s236
          %s238 = smul.u32 %s237, 3
          %p239 = scmp.lt.s32.totalorder %s22, 1
          %s240 = scalar_select %p239, %s22, 1
          %p241 = scmp.lt.s32.totalorder %s233, 17
          %s242 = scalar_select %p241, %s233, 17
          %s243 = smul.addr %s242, 3
          %s244 = smul.addr %s240, 54
          %s245 = sadd.s32 %s243, %s244
          %s246 = smul.addr %s245, 8
          %s247 = scalar_lea.vmem %s0, %s246
          %s248 = smul.u32 8, %s23
          %s249 = ssub.s32 18, %s248
          %p250 = scmp.lt.s32.totalorder %s249, 8
          %s251 = scalar_select %p250, %s249, 8
          %s252 = smul.u32 128, %s251
          %s253 = smul.u32 %s252, 3
        $region36: #{tpu_custom_call.1} parent=31 // pred_fallthru
          _
        // Predicated region
        $region37: #{tpu_custom_call.1} parent=31 // pred_check
          %p254 = pneg %p81
        $region38: #{tpu_custom_call.1} parent=31 // pred_check_branch
          %256 = sbr.rel (%p254) target = $region40
        $region39: #{tpu_custom_call.1} parent=31 // pred_region
          %s257 = sadd.s32 %s23, 1
          %s258 = smul.u32 %s257, 4
          %s259 = smul.u32 2, %s258
          %p260 = scmp.lt.s32.totalorder %s22, 1
          %s261 = scalar_select %p260, %s22, 1
          %p262 = scmp.lt.s32.totalorder %s259, 17
          %s263 = scalar_select %p262, %s259, 17
          %s264 = smul.addr %s263, 3
          %s265 = smul.addr %s261, 54
          %s266 = sadd.s32 %s264, %s265
          %s267 = smul.addr %s266, 8
          %s268 = scalar_lea.vmem %s1, %s267
          %s269 = sadd.s32 %s23, 1
          %s270 = smul.u32 %s269, 4
          %s271 = smul.u32 2, %s270
        $region40: #{tpu_custom_call.1} parent=31 // pred_fallthru
          _
      $region32: #{tpu_custom_call.1} parent=5 // pred_fallthru
        _
      %p272 = scmp.le.s32.totalorder 1, %s15
      %p273 = scmp.lt.s32.totalorder %s15, 5
      %p274 = pnand %p272, %p273
      %p275 = pneg %p274
      // Predicated region
      $region41: #{tpu_custom_call.1} parent=5 // pred_check
        _
      $region42: #{tpu_custom_call.1} parent=5 // pred_check_branch
        %277 = sbr.rel (%p274) target = $region44
      $region43: #{tpu_custom_call.1} parent=5 // pred_region
        %s278 = ssub.s32 %s15, 1
        %s279 = smul.u32 8, %s25
        %s280 = ssub.s32 18, %s279
        %p281 = scmp.lt.s32.totalorder %s280, 8
        %s282 = scalar_select %p281, %s280, 8
        %s283 = smul.u32 128, %s282
        %s284 = smul.u32 %s283, 3
        %p285 = scmp.lt.s32.totalorder %s24, 1
        %s286 = scalar_select %p285, %s24, 1
        %p287 = scmp.lt.s32.totalorder %s279, 17
        %s288 = scalar_select %p287, %s279, 17
        %s289 = smul.addr %s288, 3
        %s290 = smul.addr %s286, 54
        %s291 = sadd.s32 %s289, %s290
        %s292 = smul.addr %s291, 8
        %s293 = scalar_lea.vmem %s0, %s292
        %p294 = pneg %p55
        %p295 = pneg %p52
        %s296 = sadd.s32 %s25, 1
        %s297 = smul.u32 %s296, 4
        %s298 = smul.u32 2, %s297
        %p299 = scmp.lt.s32.totalorder %s24, 1
        %s300 = scalar_select %p299, %s24, 1
        %p301 = scmp.lt.s32.totalorder %s298, 17
        %s302 = scalar_select %p301, %s298, 17
        %s303 = smul.addr %s302, 3
        %s304 = smul.addr %s300, 54
        %s305 = sadd.s32 %s303, %s304
        %s306 = smul.addr %s305, 8
        %s307 = scalar_lea.vmem %s1, %s306
        %p308 = pneg %p87
        %p309 = pneg %p84
        %p310 = pneg %p108
        %p311 = pneg %p105
        %p312 = pneg %p129
        %p313 = pneg %p126
        %p314 = pneg %p150
        %p315 = pneg %p147
        %p316 = pneg %p171
        %p317 = pneg %p168
        %p318 = pneg %p199
        %p319 = pneg %p196
        %s320 = sand.u32 %s186, 1
        %s321 = scalar_lea.sflag [#allocation4], %s320
        %s322 = sand.u32 %s186, 1
        %s323 = smul.addr %s322, 128
        %s324 = scalar_lea.vmem [#allocation3], %s323
        %s325 = smul.u32 8, %s25
        %s326 = ssub.s32 18, %s325
        %p327 = scmp.lt.s32.totalorder %s326, 8
        %s328 = scalar_select %p327, %s326, 8
        %s329 = smul.u32 128, %s328
        %s330 = smul.u32 %s329, 3
        %p331 = scmp.lt.s32.totalorder %s24, 1
        %s332 = scalar_select %p331, %s24, 1
        %p333 = scmp.lt.s32.totalorder %s325, 17
        %s334 = scalar_select %p333, %s325, 17
        %s335 = smul.addr %s334, 3
        %s336 = smul.addr %s332, 54
        %s337 = sadd.s32 %s335, %s336
        %s338 = smul.addr %s337, 8
        %s339 = scalar_lea.vmem %s0, %s338
        %s340 = smul.u32 8, %s25
        %s341 = ssub.s32 18, %s340
        %p342 = scmp.lt.s32.totalorder %s341, 8
        %s343 = scalar_select %p342, %s341, 8
        %s344 = smul.u32 128, %s343
        %s345 = smul.u32 %s344, 3
        %s346 = sadd.s32 %s25, 1
        %s347 = smul.u32 %s346, 4
        %s348 = smul.u32 2, %s347
        %p349 = scmp.lt.s32.totalorder %s24, 1
        %s350 = scalar_select %p349, %s24, 1
        %p351 = scmp.lt.s32.totalorder %s348, 17
        %s352 = scalar_select %p351, %s348, 17
        %s353 = smul.addr %s352, 3
        %s354 = smul.addr %s350, 54
        %s355 = sadd.s32 %s353, %s354
        %s356 = smul.addr %s355, 8
        %s357 = scalar_lea.vmem %s1, %s356
        %s358 = sadd.s32 %s25, 1
        %s359 = smul.u32 %s358, 4
        %s360 = smul.u32 2, %s359
        %s361 = smul.u32 16, %s25
        %v362 = vld [vmem:[%s2] sm:$0x7]
        %v363 = vld [vmem:[%s2 + $0x4] sm:$0x7]
        %v364 = vld [vmem:[%s2 + $0x8] sm:$0x7]
        %v365 = vld [vmem:[%s3] sm:$0x1]
        %v366 = vld [vmem:[%s339] sm:$0xff]
        %v367 = vld [vmem:[%s339 + $0x8] sm:$0xff]
        %v368 = vld [vmem:[%s339 + $0x10] sm:$0x3]
        %v369 = vlaneseq
        %v370 = vshrl.u32 %v369, 7
        %v371 = vsub.s32 0, %v370
        %v372 = vrot.slane %v362, %v371
        %v373 = vmul.f32 %v366, %v372
        %v374 = vmul.f32 %v367, %v372
        %v375 = vadd.f32 %v373, 0.0
        %v376 = vadd.f32 %v374, 0.0
        %v377 = vlaneseq
        %v378 = vshrl.u32 %v377, 7
        %v379 = vsub.s32 1, %v378
        %v380 = vrot.slane %v362, %v379
        %v381 = vmul.f32 %v366, %v380
        %v382 = vmul.f32 %v367, %v380
        %v383 = vmul.f32 %v368, %v380
        %vm387 = vcmask 1046528
        %v388 = vrot.slane %v381, 1
        %v389 = vrot.slane %v382, 1
        %v390 = vsel %vm387, %v388, %v389
        %v391 = vrot.slane %v383, 1
        %v392 = vsel %vm387, %v389, %v391
        %v395 = vadd.f32 %v375, %v390
        %v396 = vadd.f32 %v376, %v392
        %v397 = vlaneseq
        %v398 = vshrl.u32 %v397, 7
        %v399 = vsub.s32 2, %v398
        %v400 = vrot.slane %v362, %v399
        %v401 = vmul.f32 %v366, %v400
        %v402 = vmul.f32 %v367, %v400
        %v403 = vmul.f32 %v368, %v400
        %vm407 = vcmask 1045504
        %v408 = vrot.slane %v401, 2
        %v409 = vrot.slane %v402, 2
        %v410 = vsel %vm407, %v408, %v409
        %v411 = vrot.slane %v403, 2
        %v412 = vsel %vm407, %v409, %v411
        %v415 = vadd.f32 %v395, %v410
        %v416 = vadd.f32 %v396, %v412
        %s417 = scalar_lea.vmem %s339, 24
        %v418 = vld [vmem:[%s417] sm:$0xff]
        %v419 = vld [vmem:[%s417 + $0x8] sm:$0xff]
        %v420 = vld [vmem:[%s417 + $0x10] sm:$0x3]
        %v421 = vlaneseq
        %v422 = vshrl.u32 %v421, 7
        %v423 = vsub.s32 0, %v422
        %v424 = vrot.slane %v363, %v423
        %v425 = vmul.f32 %v418, %v424
        %v426 = vmul.f32 %v419, %v424
        %v427 = vadd.f32 %v415, %v425
        %v428 = vadd.f32 %v416, %v426
        %v429 = vlaneseq
        %v430 = vshrl.u32 %v429, 7
        %v431 = vsub.s32 1, %v430
        %v432 = vrot.slane %v363, %v431
        %v433 = vmul.f32 %v418, %v432
        %v434 = vmul.f32 %v419, %v432
        %v435 = vmul.f32 %v420, %v432
        %v439 = vrot.slane %v433, 1
        %v440 = vrot.slane %v434, 1
        %v441 = vsel %vm387, %v439, %v440
        %v442 = vrot.slane %v435, 1
        %v443 = vsel %vm387, %v440, %v442
        %v446 = vadd.f32 %v427, %v441
        %v447 = vadd.f32 %v428, %v443
        %v448 = vlaneseq
        %v449 = vshrl.u32 %v448, 7
        %v450 = vsub.s32 2, %v449
        %v451 = vrot.slane %v363, %v450
        %v452 = vmul.f32 %v418, %v451
        %v453 = vmul.f32 %v419, %v451
        %v454 = vmul.f32 %v420, %v451
        %v458 = vrot.slane %v452, 2
        %v459 = vrot.slane %v453, 2
        %v460 = vsel %vm407, %v458, %v459
        %v461 = vrot.slane %v454, 2
        %v462 = vsel %vm407, %v459, %v461
        %v465 = vadd.f32 %v446, %v460
        %v466 = vadd.f32 %v447, %v462
        %s467 = scalar_lea.vmem %s339, 48
        %v468 = vld [vmem:[%s467] sm:$0xff]
        %v469 = vld [vmem:[%s467 + $0x8] sm:$0xff]
        %v470 = vld [vmem:[%s467 + $0x10] sm:$0x3]
        %v471 = vlaneseq
        %v472 = vshrl.u32 %v471, 7
        %v473 = vsub.s32 0, %v472
        %v474 = vrot.slane %v364, %v473
        %v475 = vmul.f32 %v468, %v474
        %v476 = vmul.f32 %v469, %v474
        %v477 = vadd.f32 %v465, %v475
        %v478 = vadd.f32 %v466, %v476
        %v479 = vlaneseq
        %v480 = vshrl.u32 %v479, 7
        %v481 = vsub.s32 1, %v480
        %v482 = vrot.slane %v364, %v481
        %v483 = vmul.f32 %v468, %v482
        %v484 = vmul.f32 %v469, %v482
        %v485 = vmul.f32 %v470, %v482
        %v489 = vrot.slane %v483, 1
        %v490 = vrot.slane %v484, 1
        %v491 = vsel %vm387, %v489, %v490
        %v492 = vrot.slane %v485, 1
        %v493 = vsel %vm387, %v490, %v492
        %v496 = vadd.f32 %v477, %v491
        %v497 = vadd.f32 %v478, %v493
        %v498 = vlaneseq
        %v499 = vshrl.u32 %v498, 7
        %v500 = vsub.s32 2, %v499
        %v501 = vrot.slane %v364, %v500
        %v502 = vmul.f32 %v468, %v501
        %v503 = vmul.f32 %v469, %v501
        %v504 = vmul.f32 %v470, %v501
        %v508 = vrot.slane %v502, 2
        %v509 = vrot.slane %v503, 2
        %v510 = vsel %vm407, %v508, %v509
        %v511 = vrot.slane %v504, 2
        %v512 = vsel %vm407, %v509, %v511
        %v515 = vadd.f32 %v496, %v510
        %v516 = vadd.f32 %v497, %v512
        %v518 = vlaneseq
        %v519 = vshrl.u32 %v518, 7
        %v520 = vsub.s32 0, %v519
        %v521 = vrot.slane %v365, %v520
        %v523 = vadd.f32 %v515, %v521
        %v524 = vadd.f32 %v516, %v521
        %v525 = vmax.f32 %v523, 0.0
        %v526 = vmax.f32 %v524, 0.0
        %527 = vst [vmem:[#allocation2] sm:$0xff] %v525
        %528 = vst [vmem:[#allocation2 + $0x8] sm:$0xff] %v526
        %v529 = vld [vmem:[%s417] sm:$0xff]
        %v530 = vld [vmem:[%s417 + $0x8] sm:$0xff]
        %v531 = vld [vmem:[%s417 + $0x10] sm:$0x3]
        %v532 = vmul.f32 %v529, %v372
        %v533 = vmul.f32 %v530, %v372
        %v534 = vadd.f32 %v532, 0.0
        %v535 = vadd.f32 %v533, 0.0
        %v536 = vmul.f32 %v529, %v380
        %v537 = vmul.f32 %v530, %v380
        %v538 = vmul.f32 %v531, %v380
        %v542 = vrot.slane %v536, 1
        %v543 = vrot.slane %v537, 1
        %v544 = vsel %vm387, %v542, %v543
        %v545 = vrot.slane %v538, 1
        %v546 = vsel %vm387, %v543, %v545
        %v549 = vadd.f32 %v534, %v544
        %v550 = vadd.f32 %v535, %v546
        %v551 = vmul.f32 %v529, %v400
        %v552 = vmul.f32 %v530, %v400
        %v553 = vmul.f32 %v531, %v400
        %v557 = vrot.slane %v551, 2
        %v558 = vrot.slane %v552, 2
        %v559 = vsel %vm407, %v557, %v558
        %v560 = vrot.slane %v553, 2
        %v561 = vsel %vm407, %v558, %v560
        %v564 = vadd.f32 %v549, %v559
        %v565 = vadd.f32 %v550, %v561
        %v566 = vld [vmem:[%s467] sm:$0xff]
        %v567 = vld [vmem:[%s467 + $0x8] sm:$0xff]
        %v568 = vld [vmem:[%s467 + $0x10] sm:$0x3]
        %v569 = vmul.f32 %v566, %v424
        %v570 = vmul.f32 %v567, %v424
        %v571 = vadd.f32 %v564, %v569
        %v572 = vadd.f32 %v565, %v570
        %v573 = vmul.f32 %v566, %v432
        %v574 = vmul.f32 %v567, %v432
        %v575 = vmul.f32 %v568, %v432
        %v579 = vrot.slane %v573, 1
        %v580 = vrot.slane %v574, 1
        %v581 = vsel %vm387, %v579, %v580
        %v582 = vrot.slane %v575, 1
        %v583 = vsel %vm387, %v580, %v582
        %v586 = vadd.f32 %v571, %v581
        %v587 = vadd.f32 %v572, %v583
        %v588 = vmul.f32 %v566, %v451
        %v589 = vmul.f32 %v567, %v451
        %v590 = vmul.f32 %v568, %v451
        %v594 = vrot.slane %v588, 2
        %v595 = vrot.slane %v589, 2
        %v596 = vsel %vm407, %v594, %v595
        %v597 = vrot.slane %v590, 2
        %v598 = vsel %vm407, %v595, %v597
        %v601 = vadd.f32 %v586, %v596
        %v602 = vadd.f32 %v587, %v598
        %s603 = scalar_lea.vmem %s339, 72
        %v604 = vld [vmem:[%s603] sm:$0xff]
        %v605 = vld [vmem:[%s603 + $0x8] sm:$0xff]
        %v606 = vld [vmem:[%s603 + $0x10] sm:$0x3]
        %v607 = vmul.f32 %v604, %v474
        %v608 = vmul.f32 %v605, %v474
        %v609 = vadd.f32 %v601, %v607
        %v610 = vadd.f32 %v602, %v608
        %v611 = vmul.f32 %v604, %v482
        %v612 = vmul.f32 %v605, %v482
        %v613 = vmul.f32 %v606, %v482
        %v617 = vrot.slane %v611, 1
        %v618 = vrot.slane %v612, 1
        %v619 = vsel %vm387, %v617, %v618
        %v620 = vrot.slane %v613, 1
        %v621 = vsel %vm387, %v618, %v620
        %v624 = vadd.f32 %v609, %v619
        %v625 = vadd.f32 %v610, %v621
        %v626 = vmul.f32 %v604, %v501
        %v627 = vmul.f32 %v605, %v501
        %v628 = vmul.f32 %v606, %v501
        %v632 = vrot.slane %v626, 2
        %v633 = vrot.slane %v627, 2
        %v634 = vsel %vm407, %v632, %v633
        %v635 = vrot.slane %v628, 2
        %v636 = vsel %vm407, %v633, %v635
        %v639 = vadd.f32 %v624, %v634
        %v640 = vadd.f32 %v625, %v636
        %v641 = vadd.f32 %v639, %v521
        %v642 = vadd.f32 %v640, %v521
        %v643 = vmax.f32 %v641, 0.0
        %v644 = vmax.f32 %v642, 0.0
        %645 = vst [vmem:[#allocation2 + $0x10] sm:$0xff] %v643
        %646 = vst [vmem:[#allocation2 + $0x18] sm:$0xff] %v644
        %v647 = vld [vmem:[%s467] sm:$0xff]
        %v648 = vld [vmem:[%s467 + $0x8] sm:$0xff]
        %v649 = vld [vmem:[%s467 + $0x10] sm:$0x3]
        %v650 = vmul.f32 %v647, %v372
        %v651 = vmul.f32 %v648, %v372
        %v652 = vadd.f32 %v650, 0.0
        %v653 = vadd.f32 %v651, 0.0
        %v654 = vmul.f32 %v647, %v380
        %v655 = vmul.f32 %v648, %v380
        %v656 = vmul.f32 %v649, %v380
        %v660 = vrot.slane %v654, 1
        %v661 = vrot.slane %v655, 1
        %v662 = vsel %vm387, %v660, %v661
        %v663 = vrot.slane %v656, 1
        %v664 = vsel %vm387, %v661, %v663
        %v667 = vadd.f32 %v652, %v662
        %v668 = vadd.f32 %v653, %v664
        %v669 = vmul.f32 %v647, %v400
        %v670 = vmul.f32 %v648, %v400
        %v671 = vmul.f32 %v649, %v400
        %v675 = vrot.slane %v669, 2
        %v676 = vrot.slane %v670, 2
        %v677 = vsel %vm407, %v675, %v676
        %v678 = vrot.slane %v671, 2
        %v679 = vsel %vm407, %v676, %v678
        %v682 = vadd.f32 %v667, %v677
        %v683 = vadd.f32 %v668, %v679
        %v684 = vld [vmem:[%s603] sm:$0xff]
        %v685 = vld [vmem:[%s603 + $0x8] sm:$0xff]
        %v686 = vld [vmem:[%s603 + $0x10] sm:$0x3]
        %v687 = vmul.f32 %v684, %v424
        %v688 = vmul.f32 %v685, %v424
        %v689 = vadd.f32 %v682, %v687
        %v690 = vadd.f32 %v683, %v688
        %v691 = vmul.f32 %v684, %v432
        %v692 = vmul.f32 %v685, %v432
        %v693 = vmul.f32 %v686, %v432
        %v697 = vrot.slane %v691, 1
        %v698 = vrot.slane %v692, 1
        %v699 = vsel %vm387, %v697, %v698
        %v700 = vrot.slane %v693, 1
        %v701 = vsel %vm387, %v698, %v700
        %v704 = vadd.f32 %v689, %v699
        %v705 = vadd.f32 %v690, %v701
        %v706 = vmul.f32 %v684, %v451
        %v707 = vmul.f32 %v685, %v451
        %v708 = vmul.f32 %v686, %v451
        %v712 = vrot.slane %v706, 2
        %v713 = vrot.slane %v707, 2
        %v714 = vsel %vm407, %v712, %v713
        %v715 = vrot.slane %v708, 2
        %v716 = vsel %vm407, %v713, %v715
        %v719 = vadd.f32 %v704, %v714
        %v720 = vadd.f32 %v705, %v716
        %s721 = scalar_lea.vmem %s339, 96
        %v722 = vld [vmem:[%s721] sm:$0xff]
        %v723 = vld [vmem:[%s721 + $0x8] sm:$0xff]
        %v724 = vld [vmem:[%s721 + $0x10] sm:$0x3]
        %v725 = vmul.f32 %v722, %v474
        %v726 = vmul.f32 %v723, %v474
        %v727 = vadd.f32 %v719, %v725
        %v728 = vadd.f32 %v720, %v726
        %v729 = vmul.f32 %v722, %v482
        %v730 = vmul.f32 %v723, %v482
        %v731 = vmul.f32 %v724, %v482
        %v735 = vrot.slane %v729, 1
        %v736 = vrot.slane %v730, 1
        %v737 = vsel %vm387, %v735, %v736
        %v738 = vrot.slane %v731, 1
        %v739 = vsel %vm387, %v736, %v738
        %v742 = vadd.f32 %v727, %v737
        %v743 = vadd.f32 %v728, %v739
        %v744 = vmul.f32 %v722, %v501
        %v745 = vmul.f32 %v723, %v501
        %v746 = vmul.f32 %v724, %v501
        %v750 = vrot.slane %v744, 2
        %v751 = vrot.slane %v745, 2
        %v752 = vsel %vm407, %v750, %v751
        %v753 = vrot.slane %v746, 2
        %v754 = vsel %vm407, %v751, %v753
        %v757 = vadd.f32 %v742, %v752
        %v758 = vadd.f32 %v743, %v754
        %v759 = vadd.f32 %v757, %v521
        %v760 = vadd.f32 %v758, %v521
        %v761 = vmax.f32 %v759, 0.0
        %v762 = vmax.f32 %v760, 0.0
        %763 = vst [vmem:[#allocation2 + $0x20] sm:$0xff] %v761
        %764 = vst [vmem:[#allocation2 + $0x28] sm:$0xff] %v762
        %v765 = vld [vmem:[%s603] sm:$0xff]
        %v766 = vld [vmem:[%s603 + $0x8] sm:$0xff]
        %v767 = vld [vmem:[%s603 + $0x10] sm:$0x3]
        %v768 = vmul.f32 %v765, %v372
        %v769 = vmul.f32 %v766, %v372
        %v770 = vadd.f32 %v768, 0.0
        %v771 = vadd.f32 %v769, 0.0
        %v772 = vmul.f32 %v765, %v380
        %v773 = vmul.f32 %v766, %v380
        %v774 = vmul.f32 %v767, %v380
        %v778 = vrot.slane %v772, 1
        %v779 = vrot.slane %v773, 1
        %v780 = vsel %vm387, %v778, %v779
        %v781 = vrot.slane %v774, 1
        %v782 = vsel %vm387, %v779, %v781
        %v785 = vadd.f32 %v770, %v780
        %v786 = vadd.f32 %v771, %v782
        %v787 = vmul.f32 %v765, %v400
        %v788 = vmul.f32 %v766, %v400
        %v789 = vmul.f32 %v767, %v400
        %v793 = vrot.slane %v787, 2
        %v794 = vrot.slane %v788, 2
        %v795 = vsel %vm407, %v793, %v794
        %v796 = vrot.slane %v789, 2
        %v797 = vsel %vm407, %v794, %v796
        %v800 = vadd.f32 %v785, %v795
        %v801 = vadd.f32 %v786, %v797
        %v802 = vld [vmem:[%s721] sm:$0xff]
        %v803 = vld [vmem:[%s721 + $0x8] sm:$0xff]
        %v804 = vld [vmem:[%s721 + $0x10] sm:$0x3]
        %v805 = vmul.f32 %v802, %v424
        %v806 = vmul.f32 %v803, %v424
        %v807 = vadd.f32 %v800, %v805
        %v808 = vadd.f32 %v801, %v806
        %v809 = vmul.f32 %v802, %v432
        %v810 = vmul.f32 %v803, %v432
        %v811 = vmul.f32 %v804, %v432
        %v815 = vrot.slane %v809, 1
        %v816 = vrot.slane %v810, 1
        %v817 = vsel %vm387, %v815, %v816
        %v818 = vrot.slane %v811, 1
        %v819 = vsel %vm387, %v816, %v818
        %v822 = vadd.f32 %v807, %v817
        %v823 = vadd.f32 %v808, %v819
        %v824 = vmul.f32 %v802, %v451
        %v825 = vmul.f32 %v803, %v451
        %v826 = vmul.f32 %v804, %v451
        %v830 = vrot.slane %v824, 2
        %v831 = vrot.slane %v825, 2
        %v832 = vsel %vm407, %v830, %v831
        %v833 = vrot.slane %v826, 2
        %v834 = vsel %vm407, %v831, %v833
        %v837 = vadd.f32 %v822, %v832
        %v838 = vadd.f32 %v823, %v834
        %s839 = scalar_lea.vmem %s339, 120
        %v840 = vld [vmem:[%s839] sm:$0xff]
        %v841 = vld [vmem:[%s839 + $0x8] sm:$0xff]
        %v842 = vld [vmem:[%s839 + $0x10] sm:$0x3]
        %v843 = vmul.f32 %v840, %v474
        %v844 = vmul.f32 %v841, %v474
        %v845 = vadd.f32 %v837, %v843
        %v846 = vadd.f32 %v838, %v844
        %v847 = vmul.f32 %v840, %v482
        %v848 = vmul.f32 %v841, %v482
        %v849 = vmul.f32 %v842, %v482
        %v853 = vrot.slane %v847, 1
        %v854 = vrot.slane %v848, 1
        %v855 = vsel %vm387, %v853, %v854
        %v856 = vrot.slane %v849, 1
        %v857 = vsel %vm387, %v854, %v856
        %v860 = vadd.f32 %v845, %v855
        %v861 = vadd.f32 %v846, %v857
        %v862 = vmul.f32 %v840, %v501
        %v863 = vmul.f32 %v841, %v501
        %v864 = vmul.f32 %v842, %v501
        %v868 = vrot.slane %v862, 2
        %v869 = vrot.slane %v863, 2
        %v870 = vsel %vm407, %v868, %v869
        %v871 = vrot.slane %v864, 2
        %v872 = vsel %vm407, %v869, %v871
        %v875 = vadd.f32 %v860, %v870
        %v876 = vadd.f32 %v861, %v872
        %v877 = vadd.f32 %v875, %v521
        %v878 = vadd.f32 %v876, %v521
        %v879 = vmax.f32 %v877, 0.0
        %v880 = vmax.f32 %v878, 0.0
        %881 = vst [vmem:[#allocation2 + $0x30] sm:$0xff] %v879
        %882 = vst [vmem:[#allocation2 + $0x38] sm:$0xff] %v880
        %v883 = vld [vmem:[%s721] sm:$0xff]
        %v884 = vld [vmem:[%s721 + $0x8] sm:$0xff]
        %v885 = vld [vmem:[%s721 + $0x10] sm:$0x3]
        %v886 = vmul.f32 %v883, %v372
        %v887 = vmul.f32 %v884, %v372
        %v888 = vadd.f32 %v886, 0.0
        %v889 = vadd.f32 %v887, 0.0
        %v890 = vmul.f32 %v883, %v380
        %v891 = vmul.f32 %v884, %v380
        %v892 = vmul.f32 %v885, %v380
        %v896 = vrot.slane %v890, 1
        %v897 = vrot.slane %v891, 1
        %v898 = vsel %vm387, %v896, %v897
        %v899 = vrot.slane %v892, 1
        %v900 = vsel %vm387, %v897, %v899
        %v903 = vadd.f32 %v888, %v898
        %v904 = vadd.f32 %v889, %v900
        %v905 = vmul.f32 %v883, %v400
        %v906 = vmul.f32 %v884, %v400
        %v907 = vmul.f32 %v885, %v400
        %v911 = vrot.slane %v905, 2
        %v912 = vrot.slane %v906, 2
        %v913 = vsel %vm407, %v911, %v912
        %v914 = vrot.slane %v907, 2
        %v915 = vsel %vm407, %v912, %v914
        %v918 = vadd.f32 %v903, %v913
        %v919 = vadd.f32 %v904, %v915
        %v920 = vld [vmem:[%s839] sm:$0xff]
        %v921 = vld [vmem:[%s839 + $0x8] sm:$0xff]
        %v922 = vld [vmem:[%s839 + $0x10] sm:$0x3]
        %v923 = vmul.f32 %v920, %v424
        %v924 = vmul.f32 %v921, %v424
        %v925 = vadd.f32 %v918, %v923
        %v926 = vadd.f32 %v919, %v924
        %v927 = vmul.f32 %v920, %v432
        %v928 = vmul.f32 %v921, %v432
        %v929 = vmul.f32 %v922, %v432
        %v933 = vrot.slane %v927, 1
        %v934 = vrot.slane %v928, 1
        %v935 = vsel %vm387, %v933, %v934
        %v936 = vrot.slane %v929, 1
        %v937 = vsel %vm387, %v934, %v936
        %v940 = vadd.f32 %v925, %v935
        %v941 = vadd.f32 %v926, %v937
        %v942 = vmul.f32 %v920, %v451
        %v943 = vmul.f32 %v921, %v451
        %v944 = vmul.f32 %v922, %v451
        %v948 = vrot.slane %v942, 2
        %v949 = vrot.slane %v943, 2
        %v950 = vsel %vm407, %v948, %v949
        %v951 = vrot.slane %v944, 2
        %v952 = vsel %vm407, %v949, %v951
        %v955 = vadd.f32 %v940, %v950
        %v956 = vadd.f32 %v941, %v952
        %s957 = scalar_lea.vmem %s339, 144
        %v958 = vld [vmem:[%s957] sm:$0xff]
        %v959 = vld [vmem:[%s957 + $0x8] sm:$0xff]
        %v960 = vld [vmem:[%s957 + $0x10] sm:$0x3]
        %v961 = vmul.f32 %v958, %v474
        %v962 = vmul.f32 %v959, %v474
        %v963 = vadd.f32 %v955, %v961
        %v964 = vadd.f32 %v956, %v962
        %v965 = vmul.f32 %v958, %v482
        %v966 = vmul.f32 %v959, %v482
        %v967 = vmul.f32 %v960, %v482
        %v971 = vrot.slane %v965, 1
        %v972 = vrot.slane %v966, 1
        %v973 = vsel %vm387, %v971, %v972
        %v974 = vrot.slane %v967, 1
        %v975 = vsel %vm387, %v972, %v974
        %v978 = vadd.f32 %v963, %v973
        %v979 = vadd.f32 %v964, %v975
        %v980 = vmul.f32 %v958, %v501
        %v981 = vmul.f32 %v959, %v501
        %v982 = vmul.f32 %v960, %v501
        %v986 = vrot.slane %v980, 2
        %v987 = vrot.slane %v981, 2
        %v988 = vsel %vm407, %v986, %v987
        %v989 = vrot.slane %v982, 2
        %v990 = vsel %vm407, %v987, %v989
        %v993 = vadd.f32 %v978, %v988
        %v994 = vadd.f32 %v979, %v990
        %v995 = vadd.f32 %v993, %v521
        %v996 = vadd.f32 %v994, %v521
        %v997 = vmax.f32 %v995, 0.0
        %v998 = vmax.f32 %v996, 0.0
        %999 = vst [vmem:[#allocation2 + $0x40] sm:$0xff] %v997
        %1000 = vst [vmem:[#allocation2 + $0x48] sm:$0xff] %v998
        %v1001 = vld [vmem:[%s839] sm:$0xff]
        %v1002 = vld [vmem:[%s839 + $0x8] sm:$0xff]
        %v1003 = vld [vmem:[%s839 + $0x10] sm:$0x3]
        %v1004 = vmul.f32 %v1001, %v372
        %v1005 = vmul.f32 %v1002, %v372
        %v1006 = vadd.f32 %v1004, 0.0
        %v1007 = vadd.f32 %v1005, 0.0
        %v1008 = vmul.f32 %v1001, %v380
        %v1009 = vmul.f32 %v1002, %v380
        %v1010 = vmul.f32 %v1003, %v380
        %v1014 = vrot.slane %v1008, 1
        %v1015 = vrot.slane %v1009, 1
        %v1016 = vsel %vm387, %v1014, %v1015
        %v1017 = vrot.slane %v1010, 1
        %v1018 = vsel %vm387, %v1015, %v1017
        %v1021 = vadd.f32 %v1006, %v1016
        %v1022 = vadd.f32 %v1007, %v1018
        %v1023 = vmul.f32 %v1001, %v400
        %v1024 = vmul.f32 %v1002, %v400
        %v1025 = vmul.f32 %v1003, %v400
        %v1029 = vrot.slane %v1023, 2
        %v1030 = vrot.slane %v1024, 2
        %v1031 = vsel %vm407, %v1029, %v1030
        %v1032 = vrot.slane %v1025, 2
        %v1033 = vsel %vm407, %v1030, %v1032
        %v1036 = vadd.f32 %v1021, %v1031
        %v1037 = vadd.f32 %v1022, %v1033
        %v1038 = vld [vmem:[%s957] sm:$0xff]
        %v1039 = vld [vmem:[%s957 + $0x8] sm:$0xff]
        %v1040 = vld [vmem:[%s957 + $0x10] sm:$0x3]
        %v1041 = vmul.f32 %v1038, %v424
        %v1042 = vmul.f32 %v1039, %v424
        %v1043 = vadd.f32 %v1036, %v1041
        %v1044 = vadd.f32 %v1037, %v1042
        %v1045 = vmul.f32 %v1038, %v432
        %v1046 = vmul.f32 %v1039, %v432
        %v1047 = vmul.f32 %v1040, %v432
        %v1051 = vrot.slane %v1045, 1
        %v1052 = vrot.slane %v1046, 1
        %v1053 = vsel %vm387, %v1051, %v1052
        %v1054 = vrot.slane %v1047, 1
        %v1055 = vsel %vm387, %v1052, %v1054
        %v1058 = vadd.f32 %v1043, %v1053
        %v1059 = vadd.f32 %v1044, %v1055
        %v1060 = vmul.f32 %v1038, %v451
        %v1061 = vmul.f32 %v1039, %v451
        %v1062 = vmul.f32 %v1040, %v451
        %v1066 = vrot.slane %v1060, 2
        %v1067 = vrot.slane %v1061, 2
        %v1068 = vsel %vm407, %v1066, %v1067
        %v1069 = vrot.slane %v1062, 2
        %v1070 = vsel %vm407, %v1067, %v1069
        %v1073 = vadd.f32 %v1058, %v1068
        %v1074 = vadd.f32 %v1059, %v1070
        %s1075 = scalar_lea.vmem %s339, 168
        %v1076 = vld [vmem:[%s1075] sm:$0xff]
        %v1077 = vld [vmem:[%s1075 + $0x8] sm:$0xff]
        %v1078 = vld [vmem:[%s1075 + $0x10] sm:$0x3]
        %v1079 = vmul.f32 %v1076, %v474
        %v1080 = vmul.f32 %v1077, %v474
        %v1081 = vadd.f32 %v1073, %v1079
        %v1082 = vadd.f32 %v1074, %v1080
        %v1083 = vmul.f32 %v1076, %v482
        %v1084 = vmul.f32 %v1077, %v482
        %v1085 = vmul.f32 %v1078, %v482
        %v1089 = vrot.slane %v1083, 1
        %v1090 = vrot.slane %v1084, 1
        %v1091 = vsel %vm387, %v1089, %v1090
        %v1092 = vrot.slane %v1085, 1
        %v1093 = vsel %vm387, %v1090, %v1092
        %v1096 = vadd.f32 %v1081, %v1091
        %v1097 = vadd.f32 %v1082, %v1093
        %v1098 = vmul.f32 %v1076, %v501
        %v1099 = vmul.f32 %v1077, %v501
        %v1100 = vmul.f32 %v1078, %v501
        %v1104 = vrot.slane %v1098, 2
        %v1105 = vrot.slane %v1099, 2
        %v1106 = vsel %vm407, %v1104, %v1105
        %v1107 = vrot.slane %v1100, 2
        %v1108 = vsel %vm407, %v1105, %v1107
        %v1111 = vadd.f32 %v1096, %v1106
        %v1112 = vadd.f32 %v1097, %v1108
        %v1113 = vadd.f32 %v1111, %v521
        %v1114 = vadd.f32 %v1112, %v521
        %v1115 = vmax.f32 %v1113, 0.0
        %v1116 = vmax.f32 %v1114, 0.0
        %1117 = vst [vmem:[#allocation2 + $0x50] sm:$0xff] %v1115
        %1118 = vst [vmem:[#allocation2 + $0x58] sm:$0xff] %v1116
        %v1119 = vld [vmem:[%s957] sm:$0xff]
        %v1120 = vld [vmem:[%s957 + $0x8] sm:$0xff]
        %v1121 = vld [vmem:[%s957 + $0x10] sm:$0x3]
        %v1122 = vmul.f32 %v1119, %v372
        %v1123 = vmul.f32 %v1120, %v372
        %v1124 = vadd.f32 %v1122, 0.0
        %v1125 = vadd.f32 %v1123, 0.0
        %v1126 = vmul.f32 %v1119, %v380
        %v1127 = vmul.f32 %v1120, %v380
        %v1128 = vmul.f32 %v1121, %v380
        %v1132 = vrot.slane %v1126, 1
        %v1133 = vrot.slane %v1127, 1
        %v1134 = vsel %vm387, %v1132, %v1133
        %v1135 = vrot.slane %v1128, 1
        %v1136 = vsel %vm387, %v1133, %v1135
        %v1139 = vadd.f32 %v1124, %v1134
        %v1140 = vadd.f32 %v1125, %v1136
        %v1141 = vmul.f32 %v1119, %v400
        %v1142 = vmul.f32 %v1120, %v400
        %v1143 = vmul.f32 %v1121, %v400
        %v1147 = vrot.slane %v1141, 2
        %v1148 = vrot.slane %v1142, 2
        %v1149 = vsel %vm407, %v1147, %v1148
        %v1150 = vrot.slane %v1143, 2
        %v1151 = vsel %vm407, %v1148, %v1150
        %v1154 = vadd.f32 %v1139, %v1149
        %v1155 = vadd.f32 %v1140, %v1151
        %v1156 = vld [vmem:[%s1075] sm:$0xff]
        %v1157 = vld [vmem:[%s1075 + $0x8] sm:$0xff]
        %v1158 = vld [vmem:[%s1075 + $0x10] sm:$0x3]
        %v1159 = vmul.f32 %v1156, %v424
        %v1160 = vmul.f32 %v1157, %v424
        %v1161 = vadd.f32 %v1154, %v1159
        %v1162 = vadd.f32 %v1155, %v1160
        %v1163 = vmul.f32 %v1156, %v432
        %v1164 = vmul.f32 %v1157, %v432
        %v1165 = vmul.f32 %v1158, %v432
        %v1169 = vrot.slane %v1163, 1
        %v1170 = vrot.slane %v1164, 1
        %v1171 = vsel %vm387, %v1169, %v1170
        %v1172 = vrot.slane %v1165, 1
        %v1173 = vsel %vm387, %v1170, %v1172
        %v1176 = vadd.f32 %v1161, %v1171
        %v1177 = vadd.f32 %v1162, %v1173
        %v1178 = vmul.f32 %v1156, %v451
        %v1179 = vmul.f32 %v1157, %v451
        %v1180 = vmul.f32 %v1158, %v451
        %v1184 = vrot.slane %v1178, 2
        %v1185 = vrot.slane %v1179, 2
        %v1186 = vsel %vm407, %v1184, %v1185
        %v1187 = vrot.slane %v1180, 2
        %v1188 = vsel %vm407, %v1185, %v1187
        %v1191 = vadd.f32 %v1176, %v1186
        %v1192 = vadd.f32 %v1177, %v1188
        %v1193 = vld [vmem:[%s357] sm:$0xff]
        %v1194 = vld [vmem:[%s357 + $0x8] sm:$0xff]
        %v1195 = vld [vmem:[%s357 + $0x10] sm:$0x3]
        %v1196 = vmul.f32 %v1193, %v474
        %v1197 = vmul.f32 %v1194, %v474
        %v1198 = vadd.f32 %v1191, %v1196
        %v1199 = vadd.f32 %v1192, %v1197
        %v1200 = vmul.f32 %v1193, %v482
        %v1201 = vmul.f32 %v1194, %v482
        %v1202 = vmul.f32 %v1195, %v482
        %v1206 = vrot.slane %v1200, 1
        %v1207 = vrot.slane %v1201, 1
        %v1208 = vsel %vm387, %v1206, %v1207
        %v1209 = vrot.slane %v1202, 1
        %v1210 = vsel %vm387, %v1207, %v1209
        %v1213 = vadd.f32 %v1198, %v1208
        %v1214 = vadd.f32 %v1199, %v1210
        %v1215 = vmul.f32 %v1193, %v501
        %v1216 = vmul.f32 %v1194, %v501
        %v1217 = vmul.f32 %v1195, %v501
        %v1221 = vrot.slane %v1215, 2
        %v1222 = vrot.slane %v1216, 2
        %v1223 = vsel %vm407, %v1221, %v1222
        %v1224 = vrot.slane %v1217, 2
        %v1225 = vsel %vm407, %v1222, %v1224
        %v1228 = vadd.f32 %v1213, %v1223
        %v1229 = vadd.f32 %v1214, %v1225
        %v1230 = vadd.f32 %v1228, %v521
        %v1231 = vadd.f32 %v1229, %v521
        %v1232 = vmax.f32 %v1230, 0.0
        %v1233 = vmax.f32 %v1231, 0.0
        %1234 = vst [vmem:[#allocation2 + $0x60] sm:$0xff] %v1232
        %1235 = vst [vmem:[#allocation2 + $0x68] sm:$0xff] %v1233
        %v1236 = vld [vmem:[%s1075] sm:$0xff]
        %v1237 = vld [vmem:[%s1075 + $0x8] sm:$0xff]
        %v1238 = vld [vmem:[%s1075 + $0x10] sm:$0x3]
        %v1239 = vmul.f32 %v1236, %v372
        %v1240 = vmul.f32 %v1237, %v372
        %v1241 = vadd.f32 %v1239, 0.0
        %v1242 = vadd.f32 %v1240, 0.0
        %v1243 = vmul.f32 %v1236, %v380
        %v1244 = vmul.f32 %v1237, %v380
        %v1245 = vmul.f32 %v1238, %v380
        %v1249 = vrot.slane %v1243, 1
        %v1250 = vrot.slane %v1244, 1
        %v1251 = vsel %vm387, %v1249, %v1250
        %v1252 = vrot.slane %v1245, 1
        %v1253 = vsel %vm387, %v1250, %v1252
        %v1256 = vadd.f32 %v1241, %v1251
        %v1257 = vadd.f32 %v1242, %v1253
        %v1258 = vmul.f32 %v1236, %v400
        %v1259 = vmul.f32 %v1237, %v400
        %v1260 = vmul.f32 %v1238, %v400
        %v1264 = vrot.slane %v1258, 2
        %v1265 = vrot.slane %v1259, 2
        %v1266 = vsel %vm407, %v1264, %v1265
        %v1267 = vrot.slane %v1260, 2
        %v1268 = vsel %vm407, %v1265, %v1267
        %v1271 = vadd.f32 %v1256, %v1266
        %v1272 = vadd.f32 %v1257, %v1268
        %v1273 = vld [vmem:[%s357] sm:$0xff]
        %v1274 = vld [vmem:[%s357 + $0x8] sm:$0xff]
        %v1275 = vld [vmem:[%s357 + $0x10] sm:$0x3]
        %v1276 = vmul.f32 %v1273, %v424
        %v1277 = vmul.f32 %v1274, %v424
        %v1278 = vadd.f32 %v1271, %v1276
        %v1279 = vadd.f32 %v1272, %v1277
        %v1280 = vmul.f32 %v1273, %v432
        %v1281 = vmul.f32 %v1274, %v432
        %v1282 = vmul.f32 %v1275, %v432
        %v1286 = vrot.slane %v1280, 1
        %v1287 = vrot.slane %v1281, 1
        %v1288 = vsel %vm387, %v1286, %v1287
        %v1289 = vrot.slane %v1282, 1
        %v1290 = vsel %vm387, %v1287, %v1289
        %v1293 = vadd.f32 %v1278, %v1288
        %v1294 = vadd.f32 %v1279, %v1290
        %v1295 = vmul.f32 %v1273, %v451
        %v1296 = vmul.f32 %v1274, %v451
        %v1297 = vmul.f32 %v1275, %v451
        %v1301 = vrot.slane %v1295, 2
        %v1302 = vrot.slane %v1296, 2
        %v1303 = vsel %vm407, %v1301, %v1302
        %v1304 = vrot.slane %v1297, 2
        %v1305 = vsel %vm407, %v1302, %v1304
        %v1308 = vadd.f32 %v1293, %v1303
        %v1309 = vadd.f32 %v1294, %v1305
        %s1310 = scalar_lea.vmem %s357, 24
        %v1311 = vld [vmem:[%s1310] sm:$0xff]
        %v1312 = vld [vmem:[%s1310 + $0x8] sm:$0xff]
        %v1313 = vld [vmem:[%s1310 + $0x10] sm:$0x3]
        %v1314 = vmul.f32 %v1311, %v474
        %v1315 = vmul.f32 %v1312, %v474
        %v1316 = vadd.f32 %v1308, %v1314
        %v1317 = vadd.f32 %v1309, %v1315
        %v1318 = vmul.f32 %v1311, %v482
        %v1319 = vmul.f32 %v1312, %v482
        %v1320 = vmul.f32 %v1313, %v482
        %v1324 = vrot.slane %v1318, 1
        %v1325 = vrot.slane %v1319, 1
        %v1326 = vsel %vm387, %v1324, %v1325
        %v1327 = vrot.slane %v1320, 1
        %v1328 = vsel %vm387, %v1325, %v1327
        %v1331 = vadd.f32 %v1316, %v1326
        %v1332 = vadd.f32 %v1317, %v1328
        %v1333 = vmul.f32 %v1311, %v501
        %v1334 = vmul.f32 %v1312, %v501
        %v1335 = vmul.f32 %v1313, %v501
        %v1339 = vrot.slane %v1333, 2
        %v1340 = vrot.slane %v1334, 2
        %v1341 = vsel %vm407, %v1339, %v1340
        %v1342 = vrot.slane %v1335, 2
        %v1343 = vsel %vm407, %v1340, %v1342
        %v1346 = vadd.f32 %v1331, %v1341
        %v1347 = vadd.f32 %v1332, %v1343
        %v1348 = vadd.f32 %v1346, %v521
        %v1349 = vadd.f32 %v1347, %v521
        %v1350 = vmax.f32 %v1348, 0.0
        %v1351 = vmax.f32 %v1349, 0.0
        %1352 = vst [vmem:[#allocation2 + $0x70] sm:$0xff] %v1350
        %1353 = vst [vmem:[#allocation2 + $0x78] sm:$0xff] %v1351
        %v1354 = vld [vmem:[#allocation2] sm:$0xff]
        %v1355 = vld [vmem:[#allocation2 + $0x8] sm:$0xff]
        %v1356 = vld [vmem:[#allocation2 + $0x10] sm:$0xff]
        %v1357 = vld [vmem:[#allocation2 + $0x18] sm:$0xff]
        %v1358 = vld [vmem:[#allocation2 + $0x20] sm:$0xff]
        %v1359 = vld [vmem:[#allocation2 + $0x28] sm:$0xff]
        %v1360 = vld [vmem:[#allocation2 + $0x30] sm:$0xff]
        %v1361 = vld [vmem:[#allocation2 + $0x38] sm:$0xff]
        %v1362 = vld [vmem:[#allocation2 + $0x40] sm:$0xff]
        %v1363 = vld [vmem:[#allocation2 + $0x48] sm:$0xff]
        %v1364 = vld [vmem:[#allocation2 + $0x50] sm:$0xff]
        %v1365 = vld [vmem:[#allocation2 + $0x58] sm:$0xff]
        %v1366 = vld [vmem:[#allocation2 + $0x60] sm:$0xff]
        %v1367 = vld [vmem:[#allocation2 + $0x68] sm:$0xff]
        %v1368 = vld [vmem:[#allocation2 + $0x70] sm:$0xff]
        %v1369 = vld [vmem:[#allocation2 + $0x78] sm:$0xff]
        %v1370 = vld [vmem:[%s4] sm:$0xff]
        %v1371 = vld [vmem:[%s4 + $0x8] sm:$0xff]
        %v1372 = vld [vmem:[%s4 + $0x10] sm:$0xff]
        %v1373 = vld [vmem:[%s4 + $0x18] sm:$0xff]
        %v1374 = vld [vmem:[%s4 + $0x20] sm:$0xff]
        %v1375 = vld [vmem:[%s4 + $0x28] sm:$0xff]
        %v1376 = vld [vmem:[%s4 + $0x30] sm:$0xff]
        %v1377 = vld [vmem:[%s4 + $0x38] sm:$0xff]
        %v1378 = vld [vmem:[%s4 + $0x40] sm:$0xff]
        %v1379 = vld [vmem:[%s4 + $0x48] sm:$0xff]
        %v1380 = vld [vmem:[%s4 + $0x50] sm:$0xff]
        %v1381 = vld [vmem:[%s4 + $0x58] sm:$0xff]
        %v1382 = vld [vmem:[%s4 + $0x60] sm:$0xff]
        %v1383 = vld [vmem:[%s4 + $0x68] sm:$0xff]
        %v1384 = vld [vmem:[%s4 + $0x70] sm:$0xff]
        %v1385 = vld [vmem:[%s4 + $0x78] sm:$0xff]
        %v1386 = vld [vmem:[%s5] sm:$0x1]
        %v1388 = vlaneseq
        %v1389 = vshrl.u32 %v1388, 7
        %v1390 = vsub.s32 0, %v1389
        %v1391 = vrot.slane %v1386, %v1390
        %1393 = vmatprep.subr.mxu0 0.0
        %1394 = vmatpush1.msra.mxu0 %v1370
        %1395 = vmatprep.subr.mxu0 0.0
        %1396 = vmatpush1.msra.mxu0 %v1371
        %1397 = vmatprep.subr.mxu0 0.0
        %1398 = vmatpush1.msra.mxu0 %v1372
        %1399 = vmatprep.subr.mxu0 0.0
        %1400 = vmatpush1.msra.mxu0 %v1373
        %1401 = vmatprep.subr.mxu0 0.0
        %1402 = vmatpush1.msra.mxu0 %v1374
        %1403 = vmatprep.subr.mxu0 0.0
        %1404 = vmatpush1.msra.mxu0 %v1375
        %1405 = vmatprep.subr.mxu0 0.0
        %1406 = vmatpush1.msra.mxu0 %v1376
        %1407 = vmatprep.subr.mxu0 0.0
        %1408 = vmatpush1.msra.mxu0 %v1377
        %1409 = vmatprep.subr.mxu0 0.0
        %1410 = vmatpush1.msra.mxu0 %v1378
        %1411 = vmatprep.subr.mxu0 0.0
        %1412 = vmatpush1.msra.mxu0 %v1379
        %1413 = vmatprep.subr.mxu0 0.0
        %1414 = vmatpush1.msra.mxu0 %v1380
        %1415 = vmatprep.subr.mxu0 0.0
        %1416 = vmatpush1.msra.mxu0 %v1381
        %1417 = vmatprep.subr.mxu0 0.0
        %1418 = vmatpush1.msra.mxu0 %v1382
        %1419 = vmatprep.subr.mxu0 0.0
        %1420 = vmatpush1.msra.mxu0 %v1383
        %1421 = vmatprep.subr.mxu0 0.0
        %1422 = vmatpush1.msra.mxu0 %v1384
        %1423 = vmatprep.subr.mxu0 0.0
        %1424 = vmatpush1.msra.mxu0 %v1385
        %1425 = vmatprep.subr.mxu0 0.0
        %1426 = vmatpush1.msra.mxu0 0.0
        %1427 = vmatprep.subr.mxu0 0.0
        %1428 = vmatpush1.msra.mxu0 0.0
        %1429 = vmatprep.subr.mxu0 0.0
        %1430 = vmatpush1.msra.mxu0 0.0
        %1431 = vmatprep.subr.mxu0 0.0
        %1432 = vmatpush1.msra.mxu0 0.0
        %1433 = vmatprep.subr.mxu0 0.0
        %1434 = vmatpush1.msra.mxu0 0.0
        %1435 = vmatprep.subr.mxu0 0.0
        %1436 = vmatpush1.msra.mxu0 0.0
        %1437 = vmatprep.subr.mxu0 0.0
        %1438 = vmatpush1.msra.mxu0 0.0
        %1439 = vmatprep.subr.mxu0 0.0
        %1440 = vmatpush1.msra.mxu0 0.0
        %1441 = vmatprep.subr.mxu0 0.0
        %1442 = vmatpush1.msra.mxu0 0.0
        %1443 = vmatprep.subr.mxu0 0.0
        %1444 = vmatpush1.msra.mxu0 0.0
        %1445 = vmatprep.subr.mxu0 0.0
        %1446 = vmatpush1.msra.mxu0 0.0
        %1447 = vmatprep.subr.mxu0 0.0
        %1448 = vmatpush1.msra.mxu0 0.0
        %1449 = vmatprep.subr.mxu0 0.0
        %1450 = vmatpush1.msra.mxu0 0.0
        %1451 = vmatprep.subr.mxu0 0.0
        %1452 = vmatpush1.msra.mxu0 0.0
        %1453 = vmatprep.subr.mxu0 0.0
        %1454 = vmatpush1.msra.mxu0 0.0
        %1455 = vmatprep.subr.mxu0 0.0
        %1456 = vmatpush1.msra.mxu0 0.0
        %1457 = vmatprep.mubr.f32.mxu0 0.0
        %1458 = vmatmul.mubr.f32.gmra.mrb[0].mxu0 %v1354
        %v1459 = vpop.f32.mrb[0].mxu0
        %v1460 = vadd.f32 %v1391, %v1459
        %v1461 = vpop.f32.mrb[0].mxu0
        %1462 = vmatprep.mubr.f32.mxu0 0.0
        %1463 = vmatmul.mubr.f32.gmra.mrb[0].mxu0 %v1355
        %v1464 = vpop.f32.mrb[0].mxu0
        %v1465 = vadd.f32 %v1391, %v1464
        %v1466 = vpop.f32.mrb[0].mxu0
        %1467 = vmatprep.mubr.f32.mxu0 0.0
        %1468 = vmatmul.mubr.f32.gmra.mrb[0].mxu0 %v1356
        %v1469 = vpop.f32.mrb[0].mxu0
        %v1470 = vadd.f32 %v1391, %v1469
        %v1471 = vpop.f32.mrb[0].mxu0
        %1472 = vmatprep.mubr.f32.mxu0 0.0
        %1473 = vmatmul.mubr.f32.gmra.mrb[0].mxu0 %v1357
        %v1474 = vpop.f32.mrb[0].mxu0
        %v1475 = vadd.f32 %v1391, %v1474
        %v1476 = vpop.f32.mrb[0].mxu0
        %1477 = vmatprep.mubr.f32.mxu0 0.0
        %1478 = vmatmul.mubr.f32.gmra.mrb[0].mxu0 %v1358
        %v1479 = vpop.f32.mrb[0].mxu0
        %v1480 = vadd.f32 %v1391, %v1479
        %v1481 = vpop.f32.mrb[0].mxu0
        %1482 = vmatprep.mubr.f32.mxu0 0.0
        %1483 = vmatmul.mubr.f32.gmra.mrb[0].mxu0 %v1359
        %v1484 = vpop.f32.mrb[0].mxu0
        %v1485 = vadd.f32 %v1391, %v1484
        %v1486 = vpop.f32.mrb[0].mxu0
        %1487 = vmatprep.mubr.f32.mxu0 0.0
        %1488 = vmatmul.mubr.f32.gmra.mrb[0].mxu0 %v1360
        %v1489 = vpop.f32.mrb[0].mxu0
        %v1490 = vadd.f32 %v1391, %v1489
        %v1491 = vpop.f32.mrb[0].mxu0
        %1492 = vmatprep.mubr.f32.mxu0 0.0
        %1493 = vmatmul.mubr.f32.gmra.mrb[0].mxu0 %v1361
        %v1494 = vpop.f32.mrb[0].mxu0
        %v1495 = vadd.f32 %v1391, %v1494
        %v1496 = vpop.f32.mrb[0].mxu0
        %1497 = vmatprep.mubr.f32.mxu0 0.0
        %1498 = vmatmul.mubr.f32.gmra.mrb[0].mxu0 %v1362
        %v1499 = vpop.f32.mrb[0].mxu0
        %v1500 = vadd.f32 %v1391, %v1499
        %v1501 = vpop.f32.mrb[0].mxu0
        %1502 = vmatprep.mubr.f32.mxu0 0.0
        %1503 = vmatmul.mubr.f32.gmra.mrb[0].mxu0 %v1363
        %v1504 = vpop.f32.mrb[0].mxu0
        %v1505 = vadd.f32 %v1391, %v1504
        %v1506 = vpop.f32.mrb[0].mxu0
        %1507 = vmatprep.mubr.f32.mxu0 0.0
        %1508 = vmatmul.mubr.f32.gmra.mrb[0].mxu0 %v1364
        %v1509 = vpop.f32.mrb[0].mxu0
        %v1510 = vadd.f32 %v1391, %v1509
        %v1511 = vpop.f32.mrb[0].mxu0
        %1512 = vmatprep.mubr.f32.mxu0 0.0
        %1513 = vmatmul.mubr.f32.gmra.mrb[0].mxu0 %v1365
        %v1514 = vpop.f32.mrb[0].mxu0
        %v1515 = vadd.f32 %v1391, %v1514
        %v1516 = vpop.f32.mrb[0].mxu0
        %1517 = vmatprep.mubr.f32.mxu0 0.0
        %1518 = vmatmul.mubr.f32.gmra.mrb[0].mxu0 %v1366
        %v1519 = vpop.f32.mrb[0].mxu0
        %v1520 = vadd.f32 %v1391, %v1519
        %v1521 = vpop.f32.mrb[0].mxu0
        %1522 = vmatprep.mubr.f32.mxu0 0.0
        %1523 = vmatmul.mubr.f32.gmra.mrb[0].mxu0 %v1367
        %v1524 = vpop.f32.mrb[0].mxu0
        %v1525 = vadd.f32 %v1391, %v1524
        %v1526 = vpop.f32.mrb[0].mxu0
        %1527 = vmatprep.mubr.f32.mxu0 0.0
        %1528 = vmatmul.mubr.f32.gmra.mrb[0].mxu0 %v1368
        %v1529 = vpop.f32.mrb[0].mxu0
        %v1530 = vadd.f32 %v1391, %v1529
        %v1531 = vpop.f32.mrb[0].mxu0
        %1532 = vmatprep.mubr.f32.mxu0 0.0
        %1533 = vmatmul.mubr.f32.gmra.mrb[0].mxu0 %v1369
        %v1534 = vpop.f32.mrb[0].mxu0
        %v1535 = vadd.f32 %v1391, %v1534
        %v1536 = vpop.f32.mrb[0].mxu0
        %1537 = vdwg.mxu0
        %v1538 = vmax.f32 %v1460, 0.0
        %v1539 = vmax.f32 %v1465, 0.0
        %v1540 = vmax.f32 %v1470, 0.0
        %v1541 = vmax.f32 %v1475, 0.0
        %v1542 = vmax.f32 %v1480, 0.0
        %v1543 = vmax.f32 %v1485, 0.0
        %v1544 = vmax.f32 %v1490, 0.0
        %v1545 = vmax.f32 %v1495, 0.0
        %v1546 = vmax.f32 %v1500, 0.0
        %v1547 = vmax.f32 %v1505, 0.0
        %v1548 = vmax.f32 %v1510, 0.0
        %v1549 = vmax.f32 %v1515, 0.0
        %v1550 = vmax.f32 %v1520, 0.0
        %v1551 = vmax.f32 %v1525, 0.0
        %v1552 = vmax.f32 %v1530, 0.0
        %v1553 = vmax.f32 %v1535, 0.0
        %1554 = vst [vmem:[%s324] sm:$0xff] %v1538
        %1555 = vst [vmem:[%s324 + $0x8] sm:$0xff] %v1539
        %1556 = vst [vmem:[%s324 + $0x10] sm:$0xff] %v1540
        %1557 = vst [vmem:[%s324 + $0x18] sm:$0xff] %v1541
        %1558 = vst [vmem:[%s324 + $0x20] sm:$0xff] %v1542
        %1559 = vst [vmem:[%s324 + $0x28] sm:$0xff] %v1543
        %1560 = vst [vmem:[%s324 + $0x30] sm:$0xff] %v1544
        %1561 = vst [vmem:[%s324 + $0x38] sm:$0xff] %v1545
        %1562 = vst [vmem:[%s324 + $0x40] sm:$0xff] %v1546
        %1563 = vst [vmem:[%s324 + $0x48] sm:$0xff] %v1547
        %1564 = vst [vmem:[%s324 + $0x50] sm:$0xff] %v1548
        %1565 = vst [vmem:[%s324 + $0x58] sm:$0xff] %v1549
        %1566 = vst [vmem:[%s324 + $0x60] sm:$0xff] %v1550
        %1567 = vst [vmem:[%s324 + $0x68] sm:$0xff] %v1551
        %1568 = vst [vmem:[%s324 + $0x70] sm:$0xff] %v1552
        %1569 = vst [vmem:[%s324 + $0x78] sm:$0xff] %v1553
        %s1570 = sand.u32 %s186, 1
        %s1571 = scalar_lea.sflag [#allocation4], %s1570
        %s1572 = sand.u32 %s186, 1
        %s1573 = smul.addr %s1572, 128
        %s1574 = scalar_lea.vmem [#allocation3], %s1573
        // Predicated region
        $region45: #{tpu_custom_call.1} parent=43 // pred_check
          %p1575 = pneg %p196
        $region46: #{tpu_custom_call.1} parent=43 // pred_check_branch
          %1577 = sbr.rel (%p1575) target = $region48
        $region47: #{tpu_custom_call.1} parent=43 // pred_region
          %s1578 = smul.u32 16, %s25
          %s1580 = ssub.s32 2048, 2048
          %1581 = vsyncadd %s1571, %s1580
          %s1582 = smul.addr %s24, 32
          %s1583 = sadd.s32 %s1578, %s1582
          %s1584 = smul.addr %s1583, 128
          %s1585 = scalar_lea.hbm %s6, %s1584
          %s1586 = sshll.u32 %s1574, 4
          %s1587 = int_to_ptr.vmem [resolvable:$true] %s1586
          %1592 = dma.vmem_to_hbm [thread:$0]  %s1587, 2048, %s1585, %s1571, 128, 128, 8
        $region48: #{tpu_custom_call.1} parent=43 // pred_fallthru
          _
      $region44: #{tpu_custom_call.1} parent=5 // pred_fallthru
        _
      %p1593 = scmp.le.s32.totalorder 2, %s15
      // Predicated region
      $region49: #{tpu_custom_call.1} parent=5 // pred_check
        %p1594 = pneg %p1593
      $region50: #{tpu_custom_call.1} parent=5 // pred_check_branch
        %1596 = sbr.rel (%p1594) target = $region52
      $region51: #{tpu_custom_call.1} parent=5 // pred_region
        %s1597 = ssub.s32 %s15, 2
        // Predicated region
        $region53: #{tpu_custom_call.1} parent=51 // pred_check
          %p1598 = pneg %p202
        $region54: #{tpu_custom_call.1} parent=51 // pred_check_branch
          %1600 = sbr.rel (%p1598) target = $region56
        $region55: #{tpu_custom_call.1} parent=51 // pred_region
          %s1601 = sand.u32 %s187, 1
          %s1602 = scalar_lea.sflag [#allocation4], %s1601
          %s1603 = sand.u32 %s187, 1
          %s1604 = smul.addr %s1603, 128
          %s1605 = scalar_lea.vmem [#allocation3], %s1604
          %1606 = dma.done %s1602, 2048
        $region56: #{tpu_custom_call.1} parent=51 // pred_fallthru
          _
      $region52: #{tpu_custom_call.1} parent=5 // pred_fallthru
        _
    $region6: #{tpu_custom_call.1} parent=1 // loop_footer
      %s19 = sadd.s32 1, %s15
    $region7: #{tpu_custom_call.1} parent=1 // loop_footer_branch
      %14 = sbr.rel target = $region3
    $region8: #{tpu_custom_call.1} parent=1 // loop_exit
      _
    %1607 = vsyncpa [#allocation4], 1
    %s1608 = scalar_lea.sflag [#allocation4], 1
    %1609 = vsyncpa %s1608, 1

</llo_original>
